<compile_context>
chip_gen: v6e
topology: v6e:2x2x1
jax: 0.10.0
libtpu: 0.0.40
codegen_flags: <defaults>
</compile_context>

<pallas_src>
import functools
from collections import namedtuple

import numpy as np
import jax
import jax.numpy as jnp
from jax.experimental import pallas as pl
from jax.experimental.pallas import tpu as pltpu

Genotype = namedtuple("Genotype", "normal normal_concat reduce reduce_concat")

DARTS_V2 = Genotype(
    normal=[('sep_conv_3x3', 0), ('sep_conv_3x3', 1),
            ('sep_conv_3x3', 0), ('sep_conv_3x3', 1),
            ('sep_conv_3x3', 1), ('skip_connect', 0),
            ('skip_connect', 0), ('dil_conv_3x3', 2)],
    normal_concat=[2, 3, 4, 5],
    reduce=[('max_pool_3x3', 0), ('max_pool_3x3', 1),
            ('skip_connect', 2), ('max_pool_3x3', 1),
            ('max_pool_3x3', 0), ('skip_connect', 2),
            ('skip_connect', 2), ('max_pool_3x3', 1)],
    reduce_concat=[2, 3, 4, 5],
)

BN_EPS = 1e-5
_HI = jax.lax.Precision.HIGHEST


# ----------------------------------------------------------------------------
# Fused Pallas kernel: the entire cell in one pallas_call.
# Layout: every state is (C sublanes, M = N*H*W lanes); with N=2, H=W=8, C=8
# each state is exactly one (8,128) f32 vreg.
# ----------------------------------------------------------------------------
def _cell_kernel(s0_ref, s1_ref, pw_ref, bns_ref, bnb_ref, dw_ref, msk_ref,
                 o_ref, *, plan, concat, C, W):
    M = s0_ref.shape[-1]
    pre0, pre1, op_specs = plan

    def pw_bn(x, i, relu):
        """[ReLU] -> 1x1 conv (VPU broadcast-FMAs over channels) -> folded BN."""
        if relu:
            x = jnp.maximum(x, 0.0)
        wmat = pw_ref[i]                                    # (C_out, C_in)
        acc = wmat[:, 0:1] * x[0:1, :]
        for ci in range(1, wmat.shape[1]):
            acc = acc + wmat[:, ci:ci + 1] * x[ci:ci + 1, :]
        return acc * bns_ref[i] + bnb_ref[i]

    def dw3x3(x, i, dil, relu):
        """[ReLU] -> depthwise 3x3 (stride 1, zero pad = dil) via lane rolls."""
        if relu:
            x = jnp.maximum(x, 0.0)
        w = dw_ref[i]                                       # (C, 9) = (c, kh*3+kw)
        base = (dil - 1) * 9
        acc = None
        for kh in range(3):
            for kw in range(3):
                t = kh * 3 + kw
                off = (kh - 1) * dil * W + (kw - 1) * dil    # lane offset of tap
                if off == 0:
                    tap = x
                else:
                    # tap[m] = x[m + off]; border / cross-image lanes zeroed by
                    # the precomputed mask (pltpu.roll == jnp.roll semantics).
                    tap = pltpu.roll(x, shift=(-off) % M, axis=1) * msk_ref[base + t]
                contrib = tap * w[:, t:t + 1]
                acc = contrib if acc is None else acc + contrib
        return acc

    def apply_op(spec):
        kind, src = spec[0], spec[1]
        x = states[src]
        if kind == "skip":                  # stride 1 -> Identity
            return x
        if kind == "sep":                   # ReLU,dw3x3,pw1x1,BN, ReLU,dw3x3,pw1x1,BN
            _, _, d1, p1, d2, p2 = spec
            h = dw3x3(x, d1, 1, True)
            h = pw_bn(h, p1, False)
            h = dw3x3(h, d2, 1, True)
            return pw_bn(h, p2, False)
        if kind == "dil":                   # ReLU, dw3x3 dil=2 pad=2, pw1x1, BN
            _, _, d, p = spec
            return pw_bn(dw3x3(x, d, 2, True), p, False)
        raise ValueError(kind)

    # preprocess0 / preprocess1: ReLUConvBN(C_in, C, 1, 1, 0)
    states = [pw_bn(s0_ref[...], pre0, True),
              pw_bn(s1_ref[...], pre1, True)]
    for i in range(len(op_specs) // 2):
        h1 = apply_op(op_specs[2 * i])
        h2 = apply_op(op_specs[2 * i + 1])
        states.append(h1 + h2)              # node add fused; eval: no Dropout2d
    # channel concat folded into lane-dense output stores
    for j, si in enumerate(concat):
        o_ref[j * C:(j + 1) * C, :] = states[si]


# ----------------------------------------------------------------------------
# Host-side packing: tap-border masks, stacked parameters, static op plan.
# ----------------------------------------------------------------------------
def _build_tap_masks(N, C, H, W):
    """Validity masks for the 9 taps of a 3x3 conv, dilation 1 and 2."""
    M = N * H * W
    m = np.arange(M)
    h = (m // W) % H
    w = m % W
    masks = np.zeros((18, C, M), np.float32)
    for di, dil in enumerate((1, 2)):
        for kh in range(3):
            for kw in range(3):
                dy, dx = (kh - 1) * dil, (kw - 1) * dil
                valid = ((h + dy >= 0) & (h + dy < H) &
                         (w + dx >= 0) & (w + dx < W))
                masks[di * 9 + kh * 3 + kw] = valid.astype(np.float32)[None, :]
    return jnp.asarray(masks)


def pack_params(params, genotype):
    """Stack all parameters into a few arrays + a static (trace-time) op plan."""
    pw_list, bns_list, bnb_list, dw_list = [], [], [], []

    def add_pw_bn(w_ci_co, s, b):
        pw_list.append(jnp.transpose(w_ci_co))              # -> (C_out, C_in)
        bns_list.append(s.reshape(-1, 1))
        bnb_list.append(b.reshape(-1, 1))
        return len(pw_list) - 1

    def add_dw(w33):
        c = w33.shape[-1]
        dw_list.append(jnp.transpose(w33, (2, 0, 1)).reshape(c, 9))   # (C, kh*3+kw)
        return len(dw_list) - 1

    pre0 = add_pw_bn(params["pre0"]["w"], params["pre0"]["s"], params["pre0"]["b"])
    pre1 = add_pw_bn(params["pre1"]["w"], params["pre1"]["s"], params["pre1"]["b"])
    op_specs = []
    for j, (name, idx) in enumerate(genotype.normal):
        p = params["ops"][j]
        if name == "skip_connect":
            op_specs.append(("skip", idx))
        elif name == "sep_conv_3x3":
            d1 = add_dw(p["dw1"]); p1 = add_pw_bn(p["pw1"], p["s1"], p["b1"])
            d2 = add_dw(p["dw2"]); p2 = add_pw_bn(p["pw2"], p["s2"], p["b2"])
            op_specs.append(("sep", idx, d1, p1, d2, p2))
        elif name == "dil_conv_3x3":
            d = add_dw(p["dw"]); pb = add_pw_bn(p["pw"], p["s"], p["b"])
            op_specs.append(("dil", idx, d, pb))
        else:
            raise ValueError(name)
    packed = dict(pw=jnp.stack(pw_list), bns=jnp.stack(bns_list),
                  bnb=jnp.stack(bnb_list), dw=jnp.stack(dw_list))
    plan = (pre0, pre1, tuple(op_specs))
    return packed, plan


def cell_forward_pallas(s0_nchw, s1_nchw, *, packed, masks, plan, concat, C):
    n, c0, h, w = s0_nchw.shape
    c1 = s1_nchw.shape[1]
    m = n * h * w
    # NCHW -> (C, N*H*W): thin layout plumbing so the kernel is lane-dense.
    s0 = jnp.transpose(s0_nchw, (1, 0, 2, 3)).reshape(c0, m)
    s1 = jnp.transpose(s1_nchw, (1, 0, 2, 3)).reshape(c1, m)
    out = pl.pallas_call(
        functools.partial(_cell_kernel, plan=plan, concat=tuple(concat), C=C, W=w),
        out_shape=jax.ShapeDtypeStruct((len(concat) * C, m), jnp.float32),
    )(s0, s1, packed["pw"], packed["bns"], packed["bnb"], packed["dw"], masks)
    out = out.reshape(len(concat) * C, n, h, w)
    return jnp.transpose(out, (1, 0, 2, 3))                 # back to NCHW


# ----------------------------------------------------------------------------
# Pure-JAX reference (correctness checking only)
# ----------------------------------------------------------------------------
def pw_conv_bn_ref(x, w, scale, bias, apply_relu):
    if apply_relu:
        x = jnp.maximum(x, 0.0)
    return jnp.einsum("nhwc,cd->nhwd", x, w, precision=_HI) * scale + bias


def dw_conv_ref(x, w33, dilation, apply_relu):
    if apply_relu:
        x = jnp.maximum(x, 0.0)
    n, h, wd, c = x.shape
    pad = dilation
    xp = jnp.pad(x, ((0, 0), (pad, pad), (pad, pad), (0, 0)))
    acc = jnp.zeros_like(x)
    for kh in range(3):
        for kw in range(3):
            dy, dx = kh * dilation, kw * dilation
            acc = acc + xp[:, dy:dy + h, dx:dx + wd, :] * w33[kh, kw]
    return acc


def _apply_op_ref(name, p, x):
    if name == "skip_connect":
        return x
    if name == "sep_conv_3x3":
        h = dw_conv_ref(x, p["dw1"], 1, True)
        h = pw_conv_bn_ref(h, p["pw1"], p["s1"], p["b1"], False)
        h = dw_conv_ref(h, p["dw2"], 1, True)
        return pw_conv_bn_ref(h, p["pw2"], p["s2"], p["b2"], False)
    if name == "dil_conv_3x3":
        h = dw_conv_ref(x, p["dw"], 2, True)
        return pw_conv_bn_ref(h, p["pw"], p["s"], p["b"], False)
    raise ValueError(name)


def cell_forward_ref(params, s0_nchw, s1_nchw, genotype):
    s0 = jnp.transpose(s0_nchw, (0, 2, 3, 1))
    s1 = jnp.transpose(s1_nchw, (0, 2, 3, 1))
    s0 = pw_conv_bn_ref(s0, params["pre0"]["w"], params["pre0"]["s"],
                        params["pre0"]["b"], True)
    s1 = pw_conv_bn_ref(s1, params["pre1"]["w"], params["pre1"]["s"],
                        params["pre1"]["b"], True)
    op_names, indices = zip(*genotype.normal)
    states = [s0, s1]
    for i in range(len(op_names) // 2):
        h1 = _apply_op_ref(op_names[2 * i], params["ops"][2 * i],
                           states[indices[2 * i]])
        h2 = _apply_op_ref(op_names[2 * i + 1], params["ops"][2 * i + 1],
                           states[indices[2 * i + 1]])
        states.append(h1 + h2)
    out = jnp.concatenate([states[i] for i in genotype.normal_concat], axis=-1)
    return jnp.transpose(out, (0, 3, 1, 2))


# ----------------------------------------------------------------------------
# Parameter init (deterministic, synthetic) — BN folded to (scale, bias)
# ----------------------------------------------------------------------------
def _fold_bn(gamma, beta, mean, var):
    scale = gamma / jnp.sqrt(var + BN_EPS)
    return scale, beta - mean * scale


def _init_bn(key, c):
    k1, k2, k3, k4 = jax.random.split(key, 4)
    gamma = 1.0 + 0.1 * jax.random.normal(k1, (c,), jnp.float32)
    beta = 0.1 * jax.random.normal(k2, (c,), jnp.float32)
    mean = 0.1 * jax.random.normal(k3, (c,), jnp.float32)
    var = 1.0 + 0.1 * jnp.abs(jax.random.normal(k4, (c,), jnp.float32))
    return _fold_bn(gamma, beta, mean, var)


def init_relu_conv_bn(key, c_in, c_out):
    kw, kb = jax.random.split(key)
    w = 0.3 * jax.random.normal(kw, (c_in, c_out), jnp.float32)   # w[ci, co]
    s, b = _init_bn(kb, c_out)
    return dict(w=w, s=s, b=b)


def init_sep_conv(key, c):
    k = jax.random.split(key, 6)
    s1, b1 = _init_bn(k[2], c)
    s2, b2 = _init_bn(k[5], c)
    return dict(
        dw1=0.3 * jax.random.normal(k[0], (3, 3, c), jnp.float32),
        pw1=0.3 * jax.random.normal(k[1], (c, c), jnp.float32), s1=s1, b1=b1,
        dw2=0.3 * jax.random.normal(k[3], (3, 3, c), jnp.float32),
        pw2=0.3 * jax.random.normal(k[4], (c, c), jnp.float32), s2=s2, b2=b2)


def init_dil_conv(key, c):
    k = jax.random.split(key, 3)
    s, b = _init_bn(k[2], c)
    return dict(
        dw=0.3 * jax.random.normal(k[0], (3, 3, c), jnp.float32),
        pw=0.3 * jax.random.normal(k[1], (c, c), jnp.float32), s=s, b=b)


# ----------------------------------------------------------------------------
if __name__ == "__main__":
    N, C_PP, C_P, C, H, W = 2, 8, 8, 8, 8, 8

    # deterministic example inputs
    k0, k1 = jax.random.split(jax.random.PRNGKey(0))
    s0 = jax.random.normal(k0, (N, C_PP, H, W), jnp.float32)
    s1 = jax.random.normal(k1, (N, C_P, H, W), jnp.float32)

    # deterministic synthetic parameters
    keys = jax.random.split(jax.random.PRNGKey(1), 2 + len(DARTS_V2.normal))
    params = dict(
        pre0=init_relu_conv_bn(keys[0], C_PP, C),
        pre1=init_relu_conv_bn(keys[1], C_P, C),
        ops=[],
    )
    for j, (name, _idx) in enumerate(DARTS_V2.normal):
        if name == "sep_conv_3x3":
            params["ops"].append(init_sep_conv(keys[2 + j], C))
        elif name == "dil_conv_3x3":
            params["ops"].append(init_dil_conv(keys[2 + j], C))
        else:
            params["ops"].append({})

    packed, plan = pack_params(params, DARTS_V2)
    masks = _build_tap_masks(N, C, H, W)

    fwd = jax.jit(functools.partial(
        cell_forward_pallas, packed=packed, masks=masks, plan=plan,
        concat=tuple(DARTS_V2.normal_concat), C=C))
    out = jax.block_until_ready(fwd(s0, s1))

    expected_shape = (N, len(DARTS_V2.normal_concat) * C, H, W)
    assert out.shape == expected_shape, (out.shape, expected_shape)

    ref = cell_forward_ref(params, s0, s1, DARTS_V2)
    if not jnp.allclose(out, ref, rtol=2e-2, atol=2e-2):
        err = float(jnp.max(jnp.abs(out - ref)))
        raise AssertionError(f"Pallas output does not match reference (max |err|={err})")

    print("KERNEL_OK")
</pallas_src>

<mosaic_0001>
module attributes {stable_mosaic.version = 11 : i64} {
  func.func @_cell_kernel(%arg0: memref<8x128xf32, #tpu.memory_space<vmem>>, %arg1: memref<8x128xf32, #tpu.memory_space<vmem>>, %arg2: memref<13x8x8xf32, #tpu.memory_space<vmem>>, %arg3: memref<13x8x1xf32, #tpu.memory_space<vmem>>, %arg4: memref<13x8x1xf32, #tpu.memory_space<vmem>>, %arg5: memref<11x8x9xf32, #tpu.memory_space<vmem>>, %arg6: memref<18x8x128xf32, #tpu.memory_space<vmem>>, %arg7: memref<32x128xf32, #tpu.memory_space<vmem>>) attributes {dimension_semantics = [], scalar_prefetch = 0 : i64, scratch_operands = 0 : i64, tpu.core_type = #tpu.core_type<tc>} {
    %c0 = arith.constant 0 : index
    %c0_0 = arith.constant 0 : index
    %0 = vector.load %arg0[%c0, %c0_0] : memref<8x128xf32, #tpu.memory_space<vmem>>, vector<8x128xf32>
    %cst = arith.constant 0.000000e+00 : f32
    %1 = vector.broadcast %cst : f32 to vector<8x128xf32>
    %2 = arith.maximumf %0, %1 : vector<8x128xf32>
    %c0_1 = arith.constant 0 : index
    %c0_2 = arith.constant 0 : index
    %c0_3 = arith.constant 0 : index
    %3 = vector.load %arg2[%c0_1, %c0_2, %c0_3] : memref<13x8x8xf32, #tpu.memory_space<vmem>>, vector<1x8x8xf32>
    %4 = vector.shape_cast %3 : vector<1x8x8xf32> to vector<8x8xf32>
    %5 = vector.extract_strided_slice %4 {offsets = [0, 0], sizes = [8, 1], strides = [1, 1]} : vector<8x8xf32> to vector<8x1xf32>
    %6 = vector.extract_strided_slice %2 {offsets = [0, 0], sizes = [1, 128], strides = [1, 1]} : vector<8x128xf32> to vector<1x128xf32>
    %7 = vector.broadcast %5 : vector<8x1xf32> to vector<8x128xf32>
    %8 = vector.broadcast %6 : vector<1x128xf32> to vector<8x128xf32>
    %9 = arith.mulf %7, %8 : vector<8x128xf32>
    %10 = vector.extract_strided_slice %4 {offsets = [0, 1], sizes = [8, 1], strides = [1, 1]} : vector<8x8xf32> to vector<8x1xf32>
    %11 = vector.extract_strided_slice %2 {offsets = [1, 0], sizes = [1, 128], strides = [1, 1]} : vector<8x128xf32> to vector<1x128xf32>
    %12 = vector.broadcast %10 : vector<8x1xf32> to vector<8x128xf32>
    %13 = vector.broadcast %11 : vector<1x128xf32> to vector<8x128xf32>
    %14 = arith.mulf %12, %13 : vector<8x128xf32>
    %15 = arith.addf %9, %14 : vector<8x128xf32>
    %16 = vector.extract_strided_slice %4 {offsets = [0, 2], sizes = [8, 1], strides = [1, 1]} : vector<8x8xf32> to vector<8x1xf32>
    %17 = vector.extract_strided_slice %2 {offsets = [2, 0], sizes = [1, 128], strides = [1, 1]} : vector<8x128xf32> to vector<1x128xf32>
    %18 = vector.broadcast %16 : vector<8x1xf32> to vector<8x128xf32>
    %19 = vector.broadcast %17 : vector<1x128xf32> to vector<8x128xf32>
    %20 = arith.mulf %18, %19 : vector<8x128xf32>
    %21 = arith.addf %15, %20 : vector<8x128xf32>
    %22 = vector.extract_strided_slice %4 {offsets = [0, 3], sizes = [8, 1], strides = [1, 1]} : vector<8x8xf32> to vector<8x1xf32>
    %23 = vector.extract_strided_slice %2 {offsets = [3, 0], sizes = [1, 128], strides = [1, 1]} : vector<8x128xf32> to vector<1x128xf32>
    %24 = vector.broadcast %22 : vector<8x1xf32> to vector<8x128xf32>
    %25 = vector.broadcast %23 : vector<1x128xf32> to vector<8x128xf32>
    %26 = arith.mulf %24, %25 : vector<8x128xf32>
    %27 = arith.addf %21, %26 : vector<8x128xf32>
    %28 = vector.extract_strided_slice %4 {offsets = [0, 4], sizes = [8, 1], strides = [1, 1]} : vector<8x8xf32> to vector<8x1xf32>
    %29 = vector.extract_strided_slice %2 {offsets = [4, 0], sizes = [1, 128], strides = [1, 1]} : vector<8x128xf32> to vector<1x128xf32>
    %30 = vector.broadcast %28 : vector<8x1xf32> to vector<8x128xf32>
    %31 = vector.broadcast %29 : vector<1x128xf32> to vector<8x128xf32>
    %32 = arith.mulf %30, %31 : vector<8x128xf32>
    %33 = arith.addf %27, %32 : vector<8x128xf32>
    %34 = vector.extract_strided_slice %4 {offsets = [0, 5], sizes = [8, 1], strides = [1, 1]} : vector<8x8xf32> to vector<8x1xf32>
    %35 = vector.extract_strided_slice %2 {offsets = [5, 0], sizes = [1, 128], strides = [1, 1]} : vector<8x128xf32> to vector<1x128xf32>
    %36 = vector.broadcast %34 : vector<8x1xf32> to vector<8x128xf32>
    %37 = vector.broadcast %35 : vector<1x128xf32> to vector<8x128xf32>
    %38 = arith.mulf %36, %37 : vector<8x128xf32>
    %39 = arith.addf %33, %38 : vector<8x128xf32>
    %40 = vector.extract_strided_slice %4 {offsets = [0, 6], sizes = [8, 1], strides = [1, 1]} : vector<8x8xf32> to vector<8x1xf32>
    %41 = vector.extract_strided_slice %2 {offsets = [6, 0], sizes = [1, 128], strides = [1, 1]} : vector<8x128xf32> to vector<1x128xf32>
    %42 = vector.broadcast %40 : vector<8x1xf32> to vector<8x128xf32>
    %43 = vector.broadcast %41 : vector<1x128xf32> to vector<8x128xf32>
    %44 = arith.mulf %42, %43 : vector<8x128xf32>
    %45 = arith.addf %39, %44 : vector<8x128xf32>
    %46 = vector.extract_strided_slice %4 {offsets = [0, 7], sizes = [8, 1], strides = [1, 1]} : vector<8x8xf32> to vector<8x1xf32>
    %47 = vector.extract_strided_slice %2 {offsets = [7, 0], sizes = [1, 128], strides = [1, 1]} : vector<8x128xf32> to vector<1x128xf32>
    %48 = vector.broadcast %46 : vector<8x1xf32> to vector<8x128xf32>
    %49 = vector.broadcast %47 : vector<1x128xf32> to vector<8x128xf32>
    %50 = arith.mulf %48, %49 : vector<8x128xf32>
    %51 = arith.addf %45, %50 : vector<8x128xf32>
    %c0_4 = arith.constant 0 : index
    %c0_5 = arith.constant 0 : index
    %c0_6 = arith.constant 0 : index
    %52 = vector.load %arg3[%c0_4, %c0_5, %c0_6] : memref<13x8x1xf32, #tpu.memory_space<vmem>>, vector<1x8x1xf32>
    %53 = vector.shape_cast %52 : vector<1x8x1xf32> to vector<8x1xf32>
    %54 = vector.broadcast %53 : vector<8x1xf32> to vector<8x128xf32>
    %55 = arith.mulf %51, %54 : vector<8x128xf32>
    %c0_7 = arith.constant 0 : index
    %c0_8 = arith.constant 0 : index
    %c0_9 = arith.constant 0 : index
    %56 = vector.load %arg4[%c0_7, %c0_8, %c0_9] : memref<13x8x1xf32, #tpu.memory_space<vmem>>, vector<1x8x1xf32>
    %57 = vector.shape_cast %56 : vector<1x8x1xf32> to vector<8x1xf32>
    %58 = vector.broadcast %57 : vector<8x1xf32> to vector<8x128xf32>
    %59 = arith.addf %55, %58 : vector<8x128xf32>
    %c0_10 = arith.constant 0 : index
    %c0_11 = arith.constant 0 : index
    %60 = vector.load %arg1[%c0_10, %c0_11] : memref<8x128xf32, #tpu.memory_space<vmem>>, vector<8x128xf32>
    %cst_12 = arith.constant 0.000000e+00 : f32
    %61 = vector.broadcast %cst_12 : f32 to vector<8x128xf32>
    %62 = arith.maximumf %60, %61 : vector<8x128xf32>
    %c1 = arith.constant 1 : index
    %c0_13 = arith.constant 0 : index
    %c0_14 = arith.constant 0 : index
    %63 = vector.load %arg2[%c1, %c0_13, %c0_14] : memref<13x8x8xf32, #tpu.memory_space<vmem>>, vector<1x8x8xf32>
    %64 = vector.shape_cast %63 : vector<1x8x8xf32> to vector<8x8xf32>
    %65 = vector.extract_strided_slice %64 {offsets = [0, 0], sizes = [8, 1], strides = [1, 1]} : vector<8x8xf32> to vector<8x1xf32>
    %66 = vector.extract_strided_slice %62 {offsets = [0, 0], sizes = [1, 128], strides = [1, 1]} : vector<8x128xf32> to vector<1x128xf32>
    %67 = vector.broadcast %65 : vector<8x1xf32> to vector<8x128xf32>
    %68 = vector.broadcast %66 : vector<1x128xf32> to vector<8x128xf32>
    %69 = arith.mulf %67, %68 : vector<8x128xf32>
    %70 = vector.extract_strided_slice %64 {offsets = [0, 1], sizes = [8, 1], strides = [1, 1]} : vector<8x8xf32> to vector<8x1xf32>
    %71 = vector.extract_strided_slice %62 {offsets = [1, 0], sizes = [1, 128], strides = [1, 1]} : vector<8x128xf32> to vector<1x128xf32>
    %72 = vector.broadcast %70 : vector<8x1xf32> to vector<8x128xf32>
    %73 = vector.broadcast %71 : vector<1x128xf32> to vector<8x128xf32>
    %74 = arith.mulf %72, %73 : vector<8x128xf32>
    %75 = arith.addf %69, %74 : vector<8x128xf32>
    %76 = vector.extract_strided_slice %64 {offsets = [0, 2], sizes = [8, 1], strides = [1, 1]} : vector<8x8xf32> to vector<8x1xf32>
    %77 = vector.extract_strided_slice %62 {offsets = [2, 0], sizes = [1, 128], strides = [1, 1]} : vector<8x128xf32> to vector<1x128xf32>
    %78 = vector.broadcast %76 : vector<8x1xf32> to vector<8x128xf32>
    %79 = vector.broadcast %77 : vector<1x128xf32> to vector<8x128xf32>
    %80 = arith.mulf %78, %79 : vector<8x128xf32>
    %81 = arith.addf %75, %80 : vector<8x128xf32>
    %82 = vector.extract_strided_slice %64 {offsets = [0, 3], sizes = [8, 1], strides = [1, 1]} : vector<8x8xf32> to vector<8x1xf32>
    %83 = vector.extract_strided_slice %62 {offsets = [3, 0], sizes = [1, 128], strides = [1, 1]} : vector<8x128xf32> to vector<1x128xf32>
    %84 = vector.broadcast %82 : vector<8x1xf32> to vector<8x128xf32>
    %85 = vector.broadcast %83 : vector<1x128xf32> to vector<8x128xf32>
    %86 = arith.mulf %84, %85 : vector<8x128xf32>
    %87 = arith.addf %81, %86 : vector<8x128xf32>
    %88 = vector.extract_strided_slice %64 {offsets = [0, 4], sizes = [8, 1], strides = [1, 1]} : vector<8x8xf32> to vector<8x1xf32>
    %89 = vector.extract_strided_slice %62 {offsets = [4, 0], sizes = [1, 128], strides = [1, 1]} : vector<8x128xf32> to vector<1x128xf32>
    %90 = vector.broadcast %88 : vector<8x1xf32> to vector<8x128xf32>
    %91 = vector.broadcast %89 : vector<1x128xf32> to vector<8x128xf32>
    %92 = arith.mulf %90, %91 : vector<8x128xf32>
    %93 = arith.addf %87, %92 : vector<8x128xf32>
    %94 = vector.extract_strided_slice %64 {offsets = [0, 5], sizes = [8, 1], strides = [1, 1]} : vector<8x8xf32> to vector<8x1xf32>
    %95 = vector.extract_strided_slice %62 {offsets = [5, 0], sizes = [1, 128], strides = [1, 1]} : vector<8x128xf32> to vector<1x128xf32>
    %96 = vector.broadcast %94 : vector<8x1xf32> to vector<8x128xf32>
    %97 = vector.broadcast %95 : vector<1x128xf32> to vector<8x128xf32>
    %98 = arith.mulf %96, %97 : vector<8x128xf32>
    %99 = arith.addf %93, %98 : vector<8x128xf32>
    %100 = vector.extract_strided_slice %64 {offsets = [0, 6], sizes = [8, 1], strides = [1, 1]} : vector<8x8xf32> to vector<8x1xf32>
    %101 = vector.extract_strided_slice %62 {offsets = [6, 0], sizes = [1, 128], strides = [1, 1]} : vector<8x128xf32> to vector<1x128xf32>
    %102 = vector.broadcast %100 : vector<8x1xf32> to vector<8x128xf32>
    %103 = vector.broadcast %101 : vector<1x128xf32> to vector<8x128xf32>
    %104 = arith.mulf %102, %103 : vector<8x128xf32>
    %105 = arith.addf %99, %104 : vector<8x128xf32>
    %106 = vector.extract_strided_slice %64 {offsets = [0, 7], sizes = [8, 1], strides = [1, 1]} : vector<8x8xf32> to vector<8x1xf32>
    %107 = vector.extract_strided_slice %62 {offsets = [7, 0], sizes = [1, 128], strides = [1, 1]} : vector<8x128xf32> to vector<1x128xf32>
    %108 = vector.broadcast %106 : vector<8x1xf32> to vector<8x128xf32>
    %109 = vector.broadcast %107 : vector<1x128xf32> to vector<8x128xf32>
    %110 = arith.mulf %108, %109 : vector<8x128xf32>
    %111 = arith.addf %105, %110 : vector<8x128xf32>
    %c1_15 = arith.constant 1 : index
    %c0_16 = arith.constant 0 : index
    %c0_17 = arith.constant 0 : index
    %112 = vector.load %arg3[%c1_15, %c0_16, %c0_17] : memref<13x8x1xf32, #tpu.memory_space<vmem>>, vector<1x8x1xf32>
    %113 = vector.shape_cast %112 : vector<1x8x1xf32> to vector<8x1xf32>
    %114 = vector.broadcast %113 : vector<8x1xf32> to vector<8x128xf32>
    %115 = arith.mulf %111, %114 : vector<8x128xf32>
    %c1_18 = arith.constant 1 : index
    %c0_19 = arith.constant 0 : index
    %c0_20 = arith.constant 0 : index
    %116 = vector.load %arg4[%c1_18, %c0_19, %c0_20] : memref<13x8x1xf32, #tpu.memory_space<vmem>>, vector<1x8x1xf32>
    %117 = vector.shape_cast %116 : vector<1x8x1xf32> to vector<8x1xf32>
    %118 = vector.broadcast %117 : vector<8x1xf32> to vector<8x128xf32>
    %119 = arith.addf %115, %118 : vector<8x128xf32>
    %cst_21 = arith.constant 0.000000e+00 : f32
    %120 = vector.broadcast %cst_21 : f32 to vector<8x128xf32>
    %121 = arith.maximumf %59, %120 : vector<8x128xf32>
    %c0_22 = arith.constant 0 : index
    %c0_23 = arith.constant 0 : index
    %c0_24 = arith.constant 0 : index
    %122 = vector.load %arg5[%c0_22, %c0_23, %c0_24] : memref<11x8x9xf32, #tpu.memory_space<vmem>>, vector<1x8x9xf32>
    %123 = vector.shape_cast %122 : vector<1x8x9xf32> to vector<8x9xf32>
    %c9_i32 = arith.constant 9 : i32
    %124 = tpu.dynamic_rotate %121 by %c9_i32 dim 1 : vector<8x128xf32>, i32 -> vector<8x128xf32>
    %c0_25 = arith.constant 0 : index
    %c0_26 = arith.constant 0 : index
    %c0_27 = arith.constant 0 : index
    %125 = vector.load %arg6[%c0_25, %c0_26, %c0_27] : memref<18x8x128xf32, #tpu.memory_space<vmem>>, vector<1x8x128xf32>
    %126 = vector.shape_cast %125 : vector<1x8x128xf32> to vector<8x128xf32>
    %127 = arith.mulf %124, %126 : vector<8x128xf32>
    %128 = vector.extract_strided_slice %123 {offsets = [0, 0], sizes = [8, 1], strides = [1, 1]} : vector<8x9xf32> to vector<8x1xf32>
    %129 = vector.broadcast %128 : vector<8x1xf32> to vector<8x128xf32>
    %130 = arith.mulf %127, %129 : vector<8x128xf32>
    %c8_i32 = arith.constant 8 : i32
    %131 = tpu.dynamic_rotate %121 by %c8_i32 dim 1 : vector<8x128xf32>, i32 -> vector<8x128xf32>
    %c1_28 = arith.constant 1 : index
    %c0_29 = arith.constant 0 : index
    %c0_30 = arith.constant 0 : index
    %132 = vector.load %arg6[%c1_28, %c0_29, %c0_30] : memref<18x8x128xf32, #tpu.memory_space<vmem>>, vector<1x8x128xf32>
    %133 = vector.shape_cast %132 : vector<1x8x128xf32> to vector<8x128xf32>
    %134 = arith.mulf %131, %133 : vector<8x128xf32>
    %135 = vector.extract_strided_slice %123 {offsets = [0, 1], sizes = [8, 1], strides = [1, 1]} : vector<8x9xf32> to vector<8x1xf32>
    %136 = vector.broadcast %135 : vector<8x1xf32> to vector<8x128xf32>
    %137 = arith.mulf %134, %136 : vector<8x128xf32>
    %138 = arith.addf %130, %137 : vector<8x128xf32>
    %c7_i32 = arith.constant 7 : i32
    %139 = tpu.dynamic_rotate %121 by %c7_i32 dim 1 : vector<8x128xf32>, i32 -> vector<8x128xf32>
    %c2 = arith.constant 2 : index
    %c0_31 = arith.constant 0 : index
    %c0_32 = arith.constant 0 : index
    %140 = vector.load %arg6[%c2, %c0_31, %c0_32] : memref<18x8x128xf32, #tpu.memory_space<vmem>>, vector<1x8x128xf32>
    %141 = vector.shape_cast %140 : vector<1x8x128xf32> to vector<8x128xf32>
    %142 = arith.mulf %139, %141 : vector<8x128xf32>
    %143 = vector.extract_strided_slice %123 {offsets = [0, 2], sizes = [8, 1], strides = [1, 1]} : vector<8x9xf32> to vector<8x1xf32>
    %144 = vector.broadcast %143 : vector<8x1xf32> to vector<8x128xf32>
    %145 = arith.mulf %142, %144 : vector<8x128xf32>
    %146 = arith.addf %138, %145 : vector<8x128xf32>
    %c1_i32 = arith.constant 1 : i32
    %147 = tpu.dynamic_rotate %121 by %c1_i32 dim 1 : vector<8x128xf32>, i32 -> vector<8x128xf32>
    %c3 = arith.constant 3 : index
    %c0_33 = arith.constant 0 : index
    %c0_34 = arith.constant 0 : index
    %148 = vector.load %arg6[%c3, %c0_33, %c0_34] : memref<18x8x128xf32, #tpu.memory_space<vmem>>, vector<1x8x128xf32>
    %149 = vector.shape_cast %148 : vector<1x8x128xf32> to vector<8x128xf32>
    %150 = arith.mulf %147, %149 : vector<8x128xf32>
    %151 = vector.extract_strided_slice %123 {offsets = [0, 3], sizes = [8, 1], strides = [1, 1]} : vector<8x9xf32> to vector<8x1xf32>
    %152 = vector.broadcast %151 : vector<8x1xf32> to vector<8x128xf32>
    %153 = arith.mulf %150, %152 : vector<8x128xf32>
    %154 = arith.addf %146, %153 : vector<8x128xf32>
    %155 = vector.extract_strided_slice %123 {offsets = [0, 4], sizes = [8, 1], strides = [1, 1]} : vector<8x9xf32> to vector<8x1xf32>
    %156 = vector.broadcast %155 : vector<8x1xf32> to vector<8x128xf32>
    %157 = arith.mulf %121, %156 : vector<8x128xf32>
    %158 = arith.addf %154, %157 : vector<8x128xf32>
    %c127_i32 = arith.constant 127 : i32
    %159 = tpu.dynamic_rotate %121 by %c127_i32 dim 1 : vector<8x128xf32>, i32 -> vector<8x128xf32>
    %c5 = arith.constant 5 : index
    %c0_35 = arith.constant 0 : index
    %c0_36 = arith.constant 0 : index
    %160 = vector.load %arg6[%c5, %c0_35, %c0_36] : memref<18x8x128xf32, #tpu.memory_space<vmem>>, vector<1x8x128xf32>
    %161 = vector.shape_cast %160 : vector<1x8x128xf32> to vector<8x128xf32>
    %162 = arith.mulf %159, %161 : vector<8x128xf32>
    %163 = vector.extract_strided_slice %123 {offsets = [0, 5], sizes = [8, 1], strides = [1, 1]} : vector<8x9xf32> to vector<8x1xf32>
    %164 = vector.broadcast %163 : vector<8x1xf32> to vector<8x128xf32>
    %165 = arith.mulf %162, %164 : vector<8x128xf32>
    %166 = arith.addf %158, %165 : vector<8x128xf32>
    %c121_i32 = arith.constant 121 : i32
    %167 = tpu.dynamic_rotate %121 by %c121_i32 dim 1 : vector<8x128xf32>, i32 -> vector<8x128xf32>
    %c6 = arith.constant 6 : index
    %c0_37 = arith.constant 0 : index
    %c0_38 = arith.constant 0 : index
    %168 = vector.load %arg6[%c6, %c0_37, %c0_38] : memref<18x8x128xf32, #tpu.memory_space<vmem>>, vector<1x8x128xf32>
    %169 = vector.shape_cast %168 : vector<1x8x128xf32> to vector<8x128xf32>
    %170 = arith.mulf %167, %169 : vector<8x128xf32>
    %171 = vector.extract_strided_slice %123 {offsets = [0, 6], sizes = [8, 1], strides = [1, 1]} : vector<8x9xf32> to vector<8x1xf32>
    %172 = vector.broadcast %171 : vector<8x1xf32> to vector<8x128xf32>
    %173 = arith.mulf %170, %172 : vector<8x128xf32>
    %174 = arith.addf %166, %173 : vector<8x128xf32>
    %c120_i32 = arith.constant 120 : i32
    %175 = tpu.dynamic_rotate %121 by %c120_i32 dim 1 : vector<8x128xf32>, i32 -> vector<8x128xf32>
    %c7 = arith.constant 7 : index
    %c0_39 = arith.constant 0 : index
    %c0_40 = arith.constant 0 : index
    %176 = vector.load %arg6[%c7, %c0_39, %c0_40] : memref<18x8x128xf32, #tpu.memory_space<vmem>>, vector<1x8x128xf32>
    %177 = vector.shape_cast %176 : vector<1x8x128xf32> to vector<8x128xf32>
    %178 = arith.mulf %175, %177 : vector<8x128xf32>
    %179 = vector.extract_strided_slice %123 {offsets = [0, 7], sizes = [8, 1], strides = [1, 1]} : vector<8x9xf32> to vector<8x1xf32>
    %180 = vector.broadcast %179 : vector<8x1xf32> to vector<8x128xf32>
    %181 = arith.mulf %178, %180 : vector<8x128xf32>
    %182 = arith.addf %174, %181 : vector<8x128xf32>
    %c119_i32 = arith.constant 119 : i32
    %183 = tpu.dynamic_rotate %121 by %c119_i32 dim 1 : vector<8x128xf32>, i32 -> vector<8x128xf32>
    %c8 = arith.constant 8 : index
    %c0_41 = arith.constant 0 : index
    %c0_42 = arith.constant 0 : index
    %184 = vector.load %arg6[%c8, %c0_41, %c0_42] : memref<18x8x128xf32, #tpu.memory_space<vmem>>, vector<1x8x128xf32>
    %185 = vector.shape_cast %184 : vector<1x8x128xf32> to vector<8x128xf32>
    %186 = arith.mulf %183, %185 : vector<8x128xf32>
    %187 = vector.extract_strided_slice %123 {offsets = [0, 8], sizes = [8, 1], strides = [1, 1]} : vector<8x9xf32> to vector<8x1xf32>
    %188 = vector.broadcast %187 : vector<8x1xf32> to vector<8x128xf32>
    %189 = arith.mulf %186, %188 : vector<8x128xf32>
    %190 = arith.addf %182, %189 : vector<8x128xf32>
    %c2_43 = arith.constant 2 : index
    %c0_44 = arith.constant 0 : index
    %c0_45 = arith.constant 0 : index
    %191 = vector.load %arg2[%c2_43, %c0_44, %c0_45] : memref<13x8x8xf32, #tpu.memory_space<vmem>>, vector<1x8x8xf32>
    %192 = vector.shape_cast %191 : vector<1x8x8xf32> to vector<8x8xf32>
    %193 = vector.extract_strided_slice %192 {offsets = [0, 0], sizes = [8, 1], strides = [1, 1]} : vector<8x8xf32> to vector<8x1xf32>
    %194 = vector.extract_strided_slice %190 {offsets = [0, 0], sizes = [1, 128], strides = [1, 1]} : vector<8x128xf32> to vector<1x128xf32>
    %195 = vector.broadcast %193 : vector<8x1xf32> to vector<8x128xf32>
    %196 = vector.broadcast %194 : vector<1x128xf32> to vector<8x128xf32>
    %197 = arith.mulf %195, %196 : vector<8x128xf32>
    %198 = vector.extract_strided_slice %192 {offsets = [0, 1], sizes = [8, 1], strides = [1, 1]} : vector<8x8xf32> to vector<8x1xf32>
    %199 = vector.extract_strided_slice %190 {offsets = [1, 0], sizes = [1, 128], strides = [1, 1]} : vector<8x128xf32> to vector<1x128xf32>
    %200 = vector.broadcast %198 : vector<8x1xf32> to vector<8x128xf32>
    %201 = vector.broadcast %199 : vector<1x128xf32> to vector<8x128xf32>
    %202 = arith.mulf %200, %201 : vector<8x128xf32>
    %203 = arith.addf %197, %202 : vector<8x128xf32>
    %204 = vector.extract_strided_slice %192 {offsets = [0, 2], sizes = [8, 1], strides = [1, 1]} : vector<8x8xf32> to vector<8x1xf32>
    %205 = vector.extract_strided_slice %190 {offsets = [2, 0], sizes = [1, 128], strides = [1, 1]} : vector<8x128xf32> to vector<1x128xf32>
    %206 = vector.broadcast %204 : vector<8x1xf32> to vector<8x128xf32>
    %207 = vector.broadcast %205 : vector<1x128xf32> to vector<8x128xf32>
    %208 = arith.mulf %206, %207 : vector<8x128xf32>
    %209 = arith.addf %203, %208 : vector<8x128xf32>
    %210 = vector.extract_strided_slice %192 {offsets = [0, 3], sizes = [8, 1], strides = [1, 1]} : vector<8x8xf32> to vector<8x1xf32>
    %211 = vector.extract_strided_slice %190 {offsets = [3, 0], sizes = [1, 128], strides = [1, 1]} : vector<8x128xf32> to vector<1x128xf32>
    %212 = vector.broadcast %210 : vector<8x1xf32> to vector<8x128xf32>
    %213 = vector.broadcast %211 : vector<1x128xf32> to vector<8x128xf32>
    %214 = arith.mulf %212, %213 : vector<8x128xf32>
    %215 = arith.addf %209, %214 : vector<8x128xf32>
    %216 = vector.extract_strided_slice %192 {offsets = [0, 4], sizes = [8, 1], strides = [1, 1]} : vector<8x8xf32> to vector<8x1xf32>
    %217 = vector.extract_strided_slice %190 {offsets = [4, 0], sizes = [1, 128], strides = [1, 1]} : vector<8x128xf32> to vector<1x128xf32>
    %218 = vector.broadcast %216 : vector<8x1xf32> to vector<8x128xf32>
    %219 = vector.broadcast %217 : vector<1x128xf32> to vector<8x128xf32>
    %220 = arith.mulf %218, %219 : vector<8x128xf32>
    %221 = arith.addf %215, %220 : vector<8x128xf32>
    %222 = vector.extract_strided_slice %192 {offsets = [0, 5], sizes = [8, 1], strides = [1, 1]} : vector<8x8xf32> to vector<8x1xf32>
    %223 = vector.extract_strided_slice %190 {offsets = [5, 0], sizes = [1, 128], strides = [1, 1]} : vector<8x128xf32> to vector<1x128xf32>
    %224 = vector.broadcast %222 : vector<8x1xf32> to vector<8x128xf32>
    %225 = vector.broadcast %223 : vector<1x128xf32> to vector<8x128xf32>
    %226 = arith.mulf %224, %225 : vector<8x128xf32>
    %227 = arith.addf %221, %226 : vector<8x128xf32>
    %228 = vector.extract_strided_slice %192 {offsets = [0, 6], sizes = [8, 1], strides = [1, 1]} : vector<8x8xf32> to vector<8x1xf32>
    %229 = vector.extract_strided_slice %190 {offsets = [6, 0], sizes = [1, 128], strides = [1, 1]} : vector<8x128xf32> to vector<1x128xf32>
    %230 = vector.broadcast %228 : vector<8x1xf32> to vector<8x128xf32>
    %231 = vector.broadcast %229 : vector<1x128xf32> to vector<8x128xf32>
    %232 = arith.mulf %230, %231 : vector<8x128xf32>
    %233 = arith.addf %227, %232 : vector<8x128xf32>
    %234 = vector.extract_strided_slice %192 {offsets = [0, 7], sizes = [8, 1], strides = [1, 1]} : vector<8x8xf32> to vector<8x1xf32>
    %235 = vector.extract_strided_slice %190 {offsets = [7, 0], sizes = [1, 128], strides = [1, 1]} : vector<8x128xf32> to vector<1x128xf32>
    %236 = vector.broadcast %234 : vector<8x1xf32> to vector<8x128xf32>
    %237 = vector.broadcast %235 : vector<1x128xf32> to vector<8x128xf32>
    %238 = arith.mulf %236, %237 : vector<8x128xf32>
    %239 = arith.addf %233, %238 : vector<8x128xf32>
    %c2_46 = arith.constant 2 : index
    %c0_47 = arith.constant 0 : index
    %c0_48 = arith.constant 0 : index
    %240 = vector.load %arg3[%c2_46, %c0_47, %c0_48] : memref<13x8x1xf32, #tpu.memory_space<vmem>>, vector<1x8x1xf32>
    %241 = vector.shape_cast %240 : vector<1x8x1xf32> to vector<8x1xf32>
    %242 = vector.broadcast %241 : vector<8x1xf32> to vector<8x128xf32>
    %243 = arith.mulf %239, %242 : vector<8x128xf32>
    %c2_49 = arith.constant 2 : index
    %c0_50 = arith.constant 0 : index
    %c0_51 = arith.constant 0 : index
    %244 = vector.load %arg4[%c2_49, %c0_50, %c0_51] : memref<13x8x1xf32, #tpu.memory_space<vmem>>, vector<1x8x1xf32>
    %245 = vector.shape_cast %244 : vector<1x8x1xf32> to vector<8x1xf32>
    %246 = vector.broadcast %245 : vector<8x1xf32> to vector<8x128xf32>
    %247 = arith.addf %243, %246 : vector<8x128xf32>
    %cst_52 = arith.constant 0.000000e+00 : f32
    %248 = vector.broadcast %cst_52 : f32 to vector<8x128xf32>
    %249 = arith.maximumf %247, %248 : vector<8x128xf32>
    %c1_53 = arith.constant 1 : index
    %c0_54 = arith.constant 0 : index
    %c0_55 = arith.constant 0 : index
    %250 = vector.load %arg5[%c1_53, %c0_54, %c0_55] : memref<11x8x9xf32, #tpu.memory_space<vmem>>, vector<1x8x9xf32>
    %251 = vector.shape_cast %250 : vector<1x8x9xf32> to vector<8x9xf32>
    %c9_i32_56 = arith.constant 9 : i32
    %252 = tpu.dynamic_rotate %249 by %c9_i32_56 dim 1 : vector<8x128xf32>, i32 -> vector<8x128xf32>
    %c0_57 = arith.constant 0 : index
    %c0_58 = arith.constant 0 : index
    %c0_59 = arith.constant 0 : index
    %253 = vector.load %arg6[%c0_57, %c0_58, %c0_59] : memref<18x8x128xf32, #tpu.memory_space<vmem>>, vector<1x8x128xf32>
    %254 = vector.shape_cast %253 : vector<1x8x128xf32> to vector<8x128xf32>
    %255 = arith.mulf %252, %254 : vector<8x128xf32>
    %256 = vector.extract_strided_slice %251 {offsets = [0, 0], sizes = [8, 1], strides = [1, 1]} : vector<8x9xf32> to vector<8x1xf32>
    %257 = vector.broadcast %256 : vector<8x1xf32> to vector<8x128xf32>
    %258 = arith.mulf %255, %257 : vector<8x128xf32>
    %c8_i32_60 = arith.constant 8 : i32
    %259 = tpu.dynamic_rotate %249 by %c8_i32_60 dim 1 : vector<8x128xf32>, i32 -> vector<8x128xf32>
    %c1_61 = arith.constant 1 : index
    %c0_62 = arith.constant 0 : index
    %c0_63 = arith.constant 0 : index
    %260 = vector.load %arg6[%c1_61, %c0_62, %c0_63] : memref<18x8x128xf32, #tpu.memory_space<vmem>>, vector<1x8x128xf32>
    %261 = vector.shape_cast %260 : vector<1x8x128xf32> to vector<8x128xf32>
    %262 = arith.mulf %259, %261 : vector<8x128xf32>
    %263 = vector.extract_strided_slice %251 {offsets = [0, 1], sizes = [8, 1], strides = [1, 1]} : vector<8x9xf32> to vector<8x1xf32>
    %264 = vector.broadcast %263 : vector<8x1xf32> to vector<8x128xf32>
    %265 = arith.mulf %262, %264 : vector<8x128xf32>
    %266 = arith.addf %258, %265 : vector<8x128xf32>
    %c7_i32_64 = arith.constant 7 : i32
    %267 = tpu.dynamic_rotate %249 by %c7_i32_64 dim 1 : vector<8x128xf32>, i32 -> vector<8x128xf32>
    %c2_65 = arith.constant 2 : index
    %c0_66 = arith.constant 0 : index
    %c0_67 = arith.constant 0 : index
    %268 = vector.load %arg6[%c2_65, %c0_66, %c0_67] : memref<18x8x128xf32, #tpu.memory_space<vmem>>, vector<1x8x128xf32>
    %269 = vector.shape_cast %268 : vector<1x8x128xf32> to vector<8x128xf32>
    %270 = arith.mulf %267, %269 : vector<8x128xf32>
    %271 = vector.extract_strided_slice %251 {offsets = [0, 2], sizes = [8, 1], strides = [1, 1]} : vector<8x9xf32> to vector<8x1xf32>
    %272 = vector.broadcast %271 : vector<8x1xf32> to vector<8x128xf32>
    %273 = arith.mulf %270, %272 : vector<8x128xf32>
    %274 = arith.addf %266, %273 : vector<8x128xf32>
    %c1_i32_68 = arith.constant 1 : i32
    %275 = tpu.dynamic_rotate %249 by %c1_i32_68 dim 1 : vector<8x128xf32>, i32 -> vector<8x128xf32>
    %c3_69 = arith.constant 3 : index
    %c0_70 = arith.constant 0 : index
    %c0_71 = arith.constant 0 : index
    %276 = vector.load %arg6[%c3_69, %c0_70, %c0_71] : memref<18x8x128xf32, #tpu.memory_space<vmem>>, vector<1x8x128xf32>
    %277 = vector.shape_cast %276 : vector<1x8x128xf32> to vector<8x128xf32>
    %278 = arith.mulf %275, %277 : vector<8x128xf32>
    %279 = vector.extract_strided_slice %251 {offsets = [0, 3], sizes = [8, 1], strides = [1, 1]} : vector<8x9xf32> to vector<8x1xf32>
    %280 = vector.broadcast %279 : vector<8x1xf32> to vector<8x128xf32>
    %281 = arith.mulf %278, %280 : vector<8x128xf32>
    %282 = arith.addf %274, %281 : vector<8x128xf32>
    %283 = vector.extract_strided_slice %251 {offsets = [0, 4], sizes = [8, 1], strides = [1, 1]} : vector<8x9xf32> to vector<8x1xf32>
    %284 = vector.broadcast %283 : vector<8x1xf32> to vector<8x128xf32>
    %285 = arith.mulf %249, %284 : vector<8x128xf32>
    %286 = arith.addf %282, %285 : vector<8x128xf32>
    %c127_i32_72 = arith.constant 127 : i32
    %287 = tpu.dynamic_rotate %249 by %c127_i32_72 dim 1 : vector<8x128xf32>, i32 -> vector<8x128xf32>
    %c5_73 = arith.constant 5 : index
    %c0_74 = arith.constant 0 : index
    %c0_75 = arith.constant 0 : index
    %288 = vector.load %arg6[%c5_73, %c0_74, %c0_75] : memref<18x8x128xf32, #tpu.memory_space<vmem>>, vector<1x8x128xf32>
    %289 = vector.shape_cast %288 : vector<1x8x128xf32> to vector<8x128xf32>
    %290 = arith.mulf %287, %289 : vector<8x128xf32>
    %291 = vector.extract_strided_slice %251 {offsets = [0, 5], sizes = [8, 1], strides = [1, 1]} : vector<8x9xf32> to vector<8x1xf32>
    %292 = vector.broadcast %291 : vector<8x1xf32> to vector<8x128xf32>
    %293 = arith.mulf %290, %292 : vector<8x128xf32>
    %294 = arith.addf %286, %293 : vector<8x128xf32>
    %c121_i32_76 = arith.constant 121 : i32
    %295 = tpu.dynamic_rotate %249 by %c121_i32_76 dim 1 : vector<8x128xf32>, i32 -> vector<8x128xf32>
    %c6_77 = arith.constant 6 : index
    %c0_78 = arith.constant 0 : index
    %c0_79 = arith.constant 0 : index
    %296 = vector.load %arg6[%c6_77, %c0_78, %c0_79] : memref<18x8x128xf32, #tpu.memory_space<vmem>>, vector<1x8x128xf32>
    %297 = vector.shape_cast %296 : vector<1x8x128xf32> to vector<8x128xf32>
    %298 = arith.mulf %295, %297 : vector<8x128xf32>
    %299 = vector.extract_strided_slice %251 {offsets = [0, 6], sizes = [8, 1], strides = [1, 1]} : vector<8x9xf32> to vector<8x1xf32>
    %300 = vector.broadcast %299 : vector<8x1xf32> to vector<8x128xf32>
    %301 = arith.mulf %298, %300 : vector<8x128xf32>
    %302 = arith.addf %294, %301 : vector<8x128xf32>
    %c120_i32_80 = arith.constant 120 : i32
    %303 = tpu.dynamic_rotate %249 by %c120_i32_80 dim 1 : vector<8x128xf32>, i32 -> vector<8x128xf32>
    %c7_81 = arith.constant 7 : index
    %c0_82 = arith.constant 0 : index
    %c0_83 = arith.constant 0 : index
    %304 = vector.load %arg6[%c7_81, %c0_82, %c0_83] : memref<18x8x128xf32, #tpu.memory_space<vmem>>, vector<1x8x128xf32>
    %305 = vector.shape_cast %304 : vector<1x8x128xf32> to vector<8x128xf32>
    %306 = arith.mulf %303, %305 : vector<8x128xf32>
    %307 = vector.extract_strided_slice %251 {offsets = [0, 7], sizes = [8, 1], strides = [1, 1]} : vector<8x9xf32> to vector<8x1xf32>
    %308 = vector.broadcast %307 : vector<8x1xf32> to vector<8x128xf32>
    %309 = arith.mulf %306, %308 : vector<8x128xf32>
    %310 = arith.addf %302, %309 : vector<8x128xf32>
    %c119_i32_84 = arith.constant 119 : i32
    %311 = tpu.dynamic_rotate %249 by %c119_i32_84 dim 1 : vector<8x128xf32>, i32 -> vector<8x128xf32>
    %c8_85 = arith.constant 8 : index
    %c0_86 = arith.constant 0 : index
    %c0_87 = arith.constant 0 : index
    %312 = vector.load %arg6[%c8_85, %c0_86, %c0_87] : memref<18x8x128xf32, #tpu.memory_space<vmem>>, vector<1x8x128xf32>
    %313 = vector.shape_cast %312 : vector<1x8x128xf32> to vector<8x128xf32>
    %314 = arith.mulf %311, %313 : vector<8x128xf32>
    %315 = vector.extract_strided_slice %251 {offsets = [0, 8], sizes = [8, 1], strides = [1, 1]} : vector<8x9xf32> to vector<8x1xf32>
    %316 = vector.broadcast %315 : vector<8x1xf32> to vector<8x128xf32>
    %317 = arith.mulf %314, %316 : vector<8x128xf32>
    %318 = arith.addf %310, %317 : vector<8x128xf32>
    %c3_88 = arith.constant 3 : index
    %c0_89 = arith.constant 0 : index
    %c0_90 = arith.constant 0 : index
    %319 = vector.load %arg2[%c3_88, %c0_89, %c0_90] : memref<13x8x8xf32, #tpu.memory_space<vmem>>, vector<1x8x8xf32>
    %320 = vector.shape_cast %319 : vector<1x8x8xf32> to vector<8x8xf32>
    %321 = vector.extract_strided_slice %320 {offsets = [0, 0], sizes = [8, 1], strides = [1, 1]} : vector<8x8xf32> to vector<8x1xf32>
    %322 = vector.extract_strided_slice %318 {offsets = [0, 0], sizes = [1, 128], strides = [1, 1]} : vector<8x128xf32> to vector<1x128xf32>
    %323 = vector.broadcast %321 : vector<8x1xf32> to vector<8x128xf32>
    %324 = vector.broadcast %322 : vector<1x128xf32> to vector<8x128xf32>
    %325 = arith.mulf %323, %324 : vector<8x128xf32>
    %326 = vector.extract_strided_slice %320 {offsets = [0, 1], sizes = [8, 1], strides = [1, 1]} : vector<8x8xf32> to vector<8x1xf32>
    %327 = vector.extract_strided_slice %318 {offsets = [1, 0], sizes = [1, 128], strides = [1, 1]} : vector<8x128xf32> to vector<1x128xf32>
    %328 = vector.broadcast %326 : vector<8x1xf32> to vector<8x128xf32>
    %329 = vector.broadcast %327 : vector<1x128xf32> to vector<8x128xf32>
    %330 = arith.mulf %328, %329 : vector<8x128xf32>
    %331 = arith.addf %325, %330 : vector<8x128xf32>
    %332 = vector.extract_strided_slice %320 {offsets = [0, 2], sizes = [8, 1], strides = [1, 1]} : vector<8x8xf32> to vector<8x1xf32>
    %333 = vector.extract_strided_slice %318 {offsets = [2, 0], sizes = [1, 128], strides = [1, 1]} : vector<8x128xf32> to vector<1x128xf32>
    %334 = vector.broadcast %332 : vector<8x1xf32> to vector<8x128xf32>
    %335 = vector.broadcast %333 : vector<1x128xf32> to vector<8x128xf32>
    %336 = arith.mulf %334, %335 : vector<8x128xf32>
    %337 = arith.addf %331, %336 : vector<8x128xf32>
    %338 = vector.extract_strided_slice %320 {offsets = [0, 3], sizes = [8, 1], strides = [1, 1]} : vector<8x8xf32> to vector<8x1xf32>
    %339 = vector.extract_strided_slice %318 {offsets = [3, 0], sizes = [1, 128], strides = [1, 1]} : vector<8x128xf32> to vector<1x128xf32>
    %340 = vector.broadcast %338 : vector<8x1xf32> to vector<8x128xf32>
    %341 = vector.broadcast %339 : vector<1x128xf32> to vector<8x128xf32>
    %342 = arith.mulf %340, %341 : vector<8x128xf32>
    %343 = arith.addf %337, %342 : vector<8x128xf32>
    %344 = vector.extract_strided_slice %320 {offsets = [0, 4], sizes = [8, 1], strides = [1, 1]} : vector<8x8xf32> to vector<8x1xf32>
    %345 = vector.extract_strided_slice %318 {offsets = [4, 0], sizes = [1, 128], strides = [1, 1]} : vector<8x128xf32> to vector<1x128xf32>
    %346 = vector.broadcast %344 : vector<8x1xf32> to vector<8x128xf32>
    %347 = vector.broadcast %345 : vector<1x128xf32> to vector<8x128xf32>
    %348 = arith.mulf %346, %347 : vector<8x128xf32>
    %349 = arith.addf %343, %348 : vector<8x128xf32>
    %350 = vector.extract_strided_slice %320 {offsets = [0, 5], sizes = [8, 1], strides = [1, 1]} : vector<8x8xf32> to vector<8x1xf32>
    %351 = vector.extract_strided_slice %318 {offsets = [5, 0], sizes = [1, 128], strides = [1, 1]} : vector<8x128xf32> to vector<1x128xf32>
    %352 = vector.broadcast %350 : vector<8x1xf32> to vector<8x128xf32>
    %353 = vector.broadcast %351 : vector<1x128xf32> to vector<8x128xf32>
    %354 = arith.mulf %352, %353 : vector<8x128xf32>
    %355 = arith.addf %349, %354 : vector<8x128xf32>
    %356 = vector.extract_strided_slice %320 {offsets = [0, 6], sizes = [8, 1], strides = [1, 1]} : vector<8x8xf32> to vector<8x1xf32>
    %357 = vector.extract_strided_slice %318 {offsets = [6, 0], sizes = [1, 128], strides = [1, 1]} : vector<8x128xf32> to vector<1x128xf32>
    %358 = vector.broadcast %356 : vector<8x1xf32> to vector<8x128xf32>
    %359 = vector.broadcast %357 : vector<1x128xf32> to vector<8x128xf32>
    %360 = arith.mulf %358, %359 : vector<8x128xf32>
    %361 = arith.addf %355, %360 : vector<8x128xf32>
    %362 = vector.extract_strided_slice %320 {offsets = [0, 7], sizes = [8, 1], strides = [1, 1]} : vector<8x8xf32> to vector<8x1xf32>
    %363 = vector.extract_strided_slice %318 {offsets = [7, 0], sizes = [1, 128], strides = [1, 1]} : vector<8x128xf32> to vector<1x128xf32>
    %364 = vector.broadcast %362 : vector<8x1xf32> to vector<8x128xf32>
    %365 = vector.broadcast %363 : vector<1x128xf32> to vector<8x128xf32>
    %366 = arith.mulf %364, %365 : vector<8x128xf32>
    %367 = arith.addf %361, %366 : vector<8x128xf32>
    %c3_91 = arith.constant 3 : index
    %c0_92 = arith.constant 0 : index
    %c0_93 = arith.constant 0 : index
    %368 = vector.load %arg3[%c3_91, %c0_92, %c0_93] : memref<13x8x1xf32, #tpu.memory_space<vmem>>, vector<1x8x1xf32>
    %369 = vector.shape_cast %368 : vector<1x8x1xf32> to vector<8x1xf32>
    %370 = vector.broadcast %369 : vector<8x1xf32> to vector<8x128xf32>
    %371 = arith.mulf %367, %370 : vector<8x128xf32>
    %c3_94 = arith.constant 3 : index
    %c0_95 = arith.constant 0 : index
    %c0_96 = arith.constant 0 : index
    %372 = vector.load %arg4[%c3_94, %c0_95, %c0_96] : memref<13x8x1xf32, #tpu.memory_space<vmem>>, vector<1x8x1xf32>
    %373 = vector.shape_cast %372 : vector<1x8x1xf32> to vector<8x1xf32>
    %374 = vector.broadcast %373 : vector<8x1xf32> to vector<8x128xf32>
    %375 = arith.addf %371, %374 : vector<8x128xf32>
    %cst_97 = arith.constant 0.000000e+00 : f32
    %376 = vector.broadcast %cst_97 : f32 to vector<8x128xf32>
    %377 = arith.maximumf %119, %376 : vector<8x128xf32>
    %c2_98 = arith.constant 2 : index
    %c0_99 = arith.constant 0 : index
    %c0_100 = arith.constant 0 : index
    %378 = vector.load %arg5[%c2_98, %c0_99, %c0_100] : memref<11x8x9xf32, #tpu.memory_space<vmem>>, vector<1x8x9xf32>
    %379 = vector.shape_cast %378 : vector<1x8x9xf32> to vector<8x9xf32>
    %c9_i32_101 = arith.constant 9 : i32
    %380 = tpu.dynamic_rotate %377 by %c9_i32_101 dim 1 : vector<8x128xf32>, i32 -> vector<8x128xf32>
    %c0_102 = arith.constant 0 : index
    %c0_103 = arith.constant 0 : index
    %c0_104 = arith.constant 0 : index
    %381 = vector.load %arg6[%c0_102, %c0_103, %c0_104] : memref<18x8x128xf32, #tpu.memory_space<vmem>>, vector<1x8x128xf32>
    %382 = vector.shape_cast %381 : vector<1x8x128xf32> to vector<8x128xf32>
    %383 = arith.mulf %380, %382 : vector<8x128xf32>
    %384 = vector.extract_strided_slice %379 {offsets = [0, 0], sizes = [8, 1], strides = [1, 1]} : vector<8x9xf32> to vector<8x1xf32>
    %385 = vector.broadcast %384 : vector<8x1xf32> to vector<8x128xf32>
    %386 = arith.mulf %383, %385 : vector<8x128xf32>
    %c8_i32_105 = arith.constant 8 : i32
    %387 = tpu.dynamic_rotate %377 by %c8_i32_105 dim 1 : vector<8x128xf32>, i32 -> vector<8x128xf32>
    %c1_106 = arith.constant 1 : index
    %c0_107 = arith.constant 0 : index
    %c0_108 = arith.constant 0 : index
    %388 = vector.load %arg6[%c1_106, %c0_107, %c0_108] : memref<18x8x128xf32, #tpu.memory_space<vmem>>, vector<1x8x128xf32>
    %389 = vector.shape_cast %388 : vector<1x8x128xf32> to vector<8x128xf32>
    %390 = arith.mulf %387, %389 : vector<8x128xf32>
    %391 = vector.extract_strided_slice %379 {offsets = [0, 1], sizes = [8, 1], strides = [1, 1]} : vector<8x9xf32> to vector<8x1xf32>
    %392 = vector.broadcast %391 : vector<8x1xf32> to vector<8x128xf32>
    %393 = arith.mulf %390, %392 : vector<8x128xf32>
    %394 = arith.addf %386, %393 : vector<8x128xf32>
    %c7_i32_109 = arith.constant 7 : i32
    %395 = tpu.dynamic_rotate %377 by %c7_i32_109 dim 1 : vector<8x128xf32>, i32 -> vector<8x128xf32>
    %c2_110 = arith.constant 2 : index
    %c0_111 = arith.constant 0 : index
    %c0_112 = arith.constant 0 : index
    %396 = vector.load %arg6[%c2_110, %c0_111, %c0_112] : memref<18x8x128xf32, #tpu.memory_space<vmem>>, vector<1x8x128xf32>
    %397 = vector.shape_cast %396 : vector<1x8x128xf32> to vector<8x128xf32>
    %398 = arith.mulf %395, %397 : vector<8x128xf32>
    %399 = vector.extract_strided_slice %379 {offsets = [0, 2], sizes = [8, 1], strides = [1, 1]} : vector<8x9xf32> to vector<8x1xf32>
    %400 = vector.broadcast %399 : vector<8x1xf32> to vector<8x128xf32>
    %401 = arith.mulf %398, %400 : vector<8x128xf32>
    %402 = arith.addf %394, %401 : vector<8x128xf32>
    %c1_i32_113 = arith.constant 1 : i32
    %403 = tpu.dynamic_rotate %377 by %c1_i32_113 dim 1 : vector<8x128xf32>, i32 -> vector<8x128xf32>
    %c3_114 = arith.constant 3 : index
    %c0_115 = arith.constant 0 : index
    %c0_116 = arith.constant 0 : index
    %404 = vector.load %arg6[%c3_114, %c0_115, %c0_116] : memref<18x8x128xf32, #tpu.memory_space<vmem>>, vector<1x8x128xf32>
    %405 = vector.shape_cast %404 : vector<1x8x128xf32> to vector<8x128xf32>
    %406 = arith.mulf %403, %405 : vector<8x128xf32>
    %407 = vector.extract_strided_slice %379 {offsets = [0, 3], sizes = [8, 1], strides = [1, 1]} : vector<8x9xf32> to vector<8x1xf32>
    %408 = vector.broadcast %407 : vector<8x1xf32> to vector<8x128xf32>
    %409 = arith.mulf %406, %408 : vector<8x128xf32>
    %410 = arith.addf %402, %409 : vector<8x128xf32>
    %411 = vector.extract_strided_slice %379 {offsets = [0, 4], sizes = [8, 1], strides = [1, 1]} : vector<8x9xf32> to vector<8x1xf32>
    %412 = vector.broadcast %411 : vector<8x1xf32> to vector<8x128xf32>
    %413 = arith.mulf %377, %412 : vector<8x128xf32>
    %414 = arith.addf %410, %413 : vector<8x128xf32>
    %c127_i32_117 = arith.constant 127 : i32
    %415 = tpu.dynamic_rotate %377 by %c127_i32_117 dim 1 : vector<8x128xf32>, i32 -> vector<8x128xf32>
    %c5_118 = arith.constant 5 : index
    %c0_119 = arith.constant 0 : index
    %c0_120 = arith.constant 0 : index
    %416 = vector.load %arg6[%c5_118, %c0_119, %c0_120] : memref<18x8x128xf32, #tpu.memory_space<vmem>>, vector<1x8x128xf32>
    %417 = vector.shape_cast %416 : vector<1x8x128xf32> to vector<8x128xf32>
    %418 = arith.mulf %415, %417 : vector<8x128xf32>
    %419 = vector.extract_strided_slice %379 {offsets = [0, 5], sizes = [8, 1], strides = [1, 1]} : vector<8x9xf32> to vector<8x1xf32>
    %420 = vector.broadcast %419 : vector<8x1xf32> to vector<8x128xf32>
    %421 = arith.mulf %418, %420 : vector<8x128xf32>
    %422 = arith.addf %414, %421 : vector<8x128xf32>
    %c121_i32_121 = arith.constant 121 : i32
    %423 = tpu.dynamic_rotate %377 by %c121_i32_121 dim 1 : vector<8x128xf32>, i32 -> vector<8x128xf32>
    %c6_122 = arith.constant 6 : index
    %c0_123 = arith.constant 0 : index
    %c0_124 = arith.constant 0 : index
    %424 = vector.load %arg6[%c6_122, %c0_123, %c0_124] : memref<18x8x128xf32, #tpu.memory_space<vmem>>, vector<1x8x128xf32>
    %425 = vector.shape_cast %424 : vector<1x8x128xf32> to vector<8x128xf32>
    %426 = arith.mulf %423, %425 : vector<8x128xf32>
    %427 = vector.extract_strided_slice %379 {offsets = [0, 6], sizes = [8, 1], strides = [1, 1]} : vector<8x9xf32> to vector<8x1xf32>
    %428 = vector.broadcast %427 : vector<8x1xf32> to vector<8x128xf32>
    %429 = arith.mulf %426, %428 : vector<8x128xf32>
    %430 = arith.addf %422, %429 : vector<8x128xf32>
    %c120_i32_125 = arith.constant 120 : i32
    %431 = tpu.dynamic_rotate %377 by %c120_i32_125 dim 1 : vector<8x128xf32>, i32 -> vector<8x128xf32>
    %c7_126 = arith.constant 7 : index
    %c0_127 = arith.constant 0 : index
    %c0_128 = arith.constant 0 : index
    %432 = vector.load %arg6[%c7_126, %c0_127, %c0_128] : memref<18x8x128xf32, #tpu.memory_space<vmem>>, vector<1x8x128xf32>
    %433 = vector.shape_cast %432 : vector<1x8x128xf32> to vector<8x128xf32>
    %434 = arith.mulf %431, %433 : vector<8x128xf32>
    %435 = vector.extract_strided_slice %379 {offsets = [0, 7], sizes = [8, 1], strides = [1, 1]} : vector<8x9xf32> to vector<8x1xf32>
    %436 = vector.broadcast %435 : vector<8x1xf32> to vector<8x128xf32>
    %437 = arith.mulf %434, %436 : vector<8x128xf32>
    %438 = arith.addf %430, %437 : vector<8x128xf32>
    %c119_i32_129 = arith.constant 119 : i32
    %439 = tpu.dynamic_rotate %377 by %c119_i32_129 dim 1 : vector<8x128xf32>, i32 -> vector<8x128xf32>
    %c8_130 = arith.constant 8 : index
    %c0_131 = arith.constant 0 : index
    %c0_132 = arith.constant 0 : index
    %440 = vector.load %arg6[%c8_130, %c0_131, %c0_132] : memref<18x8x128xf32, #tpu.memory_space<vmem>>, vector<1x8x128xf32>
    %441 = vector.shape_cast %440 : vector<1x8x128xf32> to vector<8x128xf32>
    %442 = arith.mulf %439, %441 : vector<8x128xf32>
    %443 = vector.extract_strided_slice %379 {offsets = [0, 8], sizes = [8, 1], strides = [1, 1]} : vector<8x9xf32> to vector<8x1xf32>
    %444 = vector.broadcast %443 : vector<8x1xf32> to vector<8x128xf32>
    %445 = arith.mulf %442, %444 : vector<8x128xf32>
    %446 = arith.addf %438, %445 : vector<8x128xf32>
    %c4 = arith.constant 4 : index
    %c0_133 = arith.constant 0 : index
    %c0_134 = arith.constant 0 : index
    %447 = vector.load %arg2[%c4, %c0_133, %c0_134] : memref<13x8x8xf32, #tpu.memory_space<vmem>>, vector<1x8x8xf32>
    %448 = vector.shape_cast %447 : vector<1x8x8xf32> to vector<8x8xf32>
    %449 = vector.extract_strided_slice %448 {offsets = [0, 0], sizes = [8, 1], strides = [1, 1]} : vector<8x8xf32> to vector<8x1xf32>
    %450 = vector.extract_strided_slice %446 {offsets = [0, 0], sizes = [1, 128], strides = [1, 1]} : vector<8x128xf32> to vector<1x128xf32>
    %451 = vector.broadcast %449 : vector<8x1xf32> to vector<8x128xf32>
    %452 = vector.broadcast %450 : vector<1x128xf32> to vector<8x128xf32>
    %453 = arith.mulf %451, %452 : vector<8x128xf32>
    %454 = vector.extract_strided_slice %448 {offsets = [0, 1], sizes = [8, 1], strides = [1, 1]} : vector<8x8xf32> to vector<8x1xf32>
    %455 = vector.extract_strided_slice %446 {offsets = [1, 0], sizes = [1, 128], strides = [1, 1]} : vector<8x128xf32> to vector<1x128xf32>
    %456 = vector.broadcast %454 : vector<8x1xf32> to vector<8x128xf32>
    %457 = vector.broadcast %455 : vector<1x128xf32> to vector<8x128xf32>
    %458 = arith.mulf %456, %457 : vector<8x128xf32>
    %459 = arith.addf %453, %458 : vector<8x128xf32>
    %460 = vector.extract_strided_slice %448 {offsets = [0, 2], sizes = [8, 1], strides = [1, 1]} : vector<8x8xf32> to vector<8x1xf32>
    %461 = vector.extract_strided_slice %446 {offsets = [2, 0], sizes = [1, 128], strides = [1, 1]} : vector<8x128xf32> to vector<1x128xf32>
    %462 = vector.broadcast %460 : vector<8x1xf32> to vector<8x128xf32>
    %463 = vector.broadcast %461 : vector<1x128xf32> to vector<8x128xf32>
    %464 = arith.mulf %462, %463 : vector<8x128xf32>
    %465 = arith.addf %459, %464 : vector<8x128xf32>
    %466 = vector.extract_strided_slice %448 {offsets = [0, 3], sizes = [8, 1], strides = [1, 1]} : vector<8x8xf32> to vector<8x1xf32>
    %467 = vector.extract_strided_slice %446 {offsets = [3, 0], sizes = [1, 128], strides = [1, 1]} : vector<8x128xf32> to vector<1x128xf32>
    %468 = vector.broadcast %466 : vector<8x1xf32> to vector<8x128xf32>
    %469 = vector.broadcast %467 : vector<1x128xf32> to vector<8x128xf32>
    %470 = arith.mulf %468, %469 : vector<8x128xf32>
    %471 = arith.addf %465, %470 : vector<8x128xf32>
    %472 = vector.extract_strided_slice %448 {offsets = [0, 4], sizes = [8, 1], strides = [1, 1]} : vector<8x8xf32> to vector<8x1xf32>
    %473 = vector.extract_strided_slice %446 {offsets = [4, 0], sizes = [1, 128], strides = [1, 1]} : vector<8x128xf32> to vector<1x128xf32>
    %474 = vector.broadcast %472 : vector<8x1xf32> to vector<8x128xf32>
    %475 = vector.broadcast %473 : vector<1x128xf32> to vector<8x128xf32>
    %476 = arith.mulf %474, %475 : vector<8x128xf32>
    %477 = arith.addf %471, %476 : vector<8x128xf32>
    %478 = vector.extract_strided_slice %448 {offsets = [0, 5], sizes = [8, 1], strides = [1, 1]} : vector<8x8xf32> to vector<8x1xf32>
    %479 = vector.extract_strided_slice %446 {offsets = [5, 0], sizes = [1, 128], strides = [1, 1]} : vector<8x128xf32> to vector<1x128xf32>
    %480 = vector.broadcast %478 : vector<8x1xf32> to vector<8x128xf32>
    %481 = vector.broadcast %479 : vector<1x128xf32> to vector<8x128xf32>
    %482 = arith.mulf %480, %481 : vector<8x128xf32>
    %483 = arith.addf %477, %482 : vector<8x128xf32>
    %484 = vector.extract_strided_slice %448 {offsets = [0, 6], sizes = [8, 1], strides = [1, 1]} : vector<8x8xf32> to vector<8x1xf32>
    %485 = vector.extract_strided_slice %446 {offsets = [6, 0], sizes = [1, 128], strides = [1, 1]} : vector<8x128xf32> to vector<1x128xf32>
    %486 = vector.broadcast %484 : vector<8x1xf32> to vector<8x128xf32>
    %487 = vector.broadcast %485 : vector<1x128xf32> to vector<8x128xf32>
    %488 = arith.mulf %486, %487 : vector<8x128xf32>
    %489 = arith.addf %483, %488 : vector<8x128xf32>
    %490 = vector.extract_strided_slice %448 {offsets = [0, 7], sizes = [8, 1], strides = [1, 1]} : vector<8x8xf32> to vector<8x1xf32>
    %491 = vector.extract_strided_slice %446 {offsets = [7, 0], sizes = [1, 128], strides = [1, 1]} : vector<8x128xf32> to vector<1x128xf32>
    %492 = vector.broadcast %490 : vector<8x1xf32> to vector<8x128xf32>
    %493 = vector.broadcast %491 : vector<1x128xf32> to vector<8x128xf32>
    %494 = arith.mulf %492, %493 : vector<8x128xf32>
    %495 = arith.addf %489, %494 : vector<8x128xf32>
    %c4_135 = arith.constant 4 : index
    %c0_136 = arith.constant 0 : index
    %c0_137 = arith.constant 0 : index
    %496 = vector.load %arg3[%c4_135, %c0_136, %c0_137] : memref<13x8x1xf32, #tpu.memory_space<vmem>>, vector<1x8x1xf32>
    %497 = vector.shape_cast %496 : vector<1x8x1xf32> to vector<8x1xf32>
    %498 = vector.broadcast %497 : vector<8x1xf32> to vector<8x128xf32>
    %499 = arith.mulf %495, %498 : vector<8x128xf32>
    %c4_138 = arith.constant 4 : index
    %c0_139 = arith.constant 0 : index
    %c0_140 = arith.constant 0 : index
    %500 = vector.load %arg4[%c4_138, %c0_139, %c0_140] : memref<13x8x1xf32, #tpu.memory_space<vmem>>, vector<1x8x1xf32>
    %501 = vector.shape_cast %500 : vector<1x8x1xf32> to vector<8x1xf32>
    %502 = vector.broadcast %501 : vector<8x1xf32> to vector<8x128xf32>
    %503 = arith.addf %499, %502 : vector<8x128xf32>
    %cst_141 = arith.constant 0.000000e+00 : f32
    %504 = vector.broadcast %cst_141 : f32 to vector<8x128xf32>
    %505 = arith.maximumf %503, %504 : vector<8x128xf32>
    %c3_142 = arith.constant 3 : index
    %c0_143 = arith.constant 0 : index
    %c0_144 = arith.constant 0 : index
    %506 = vector.load %arg5[%c3_142, %c0_143, %c0_144] : memref<11x8x9xf32, #tpu.memory_space<vmem>>, vector<1x8x9xf32>
    %507 = vector.shape_cast %506 : vector<1x8x9xf32> to vector<8x9xf32>
    %c9_i32_145 = arith.constant 9 : i32
    %508 = tpu.dynamic_rotate %505 by %c9_i32_145 dim 1 : vector<8x128xf32>, i32 -> vector<8x128xf32>
    %c0_146 = arith.constant 0 : index
    %c0_147 = arith.constant 0 : index
    %c0_148 = arith.constant 0 : index
    %509 = vector.load %arg6[%c0_146, %c0_147, %c0_148] : memref<18x8x128xf32, #tpu.memory_space<vmem>>, vector<1x8x128xf32>
    %510 = vector.shape_cast %509 : vector<1x8x128xf32> to vector<8x128xf32>
    %511 = arith.mulf %508, %510 : vector<8x128xf32>
    %512 = vector.extract_strided_slice %507 {offsets = [0, 0], sizes = [8, 1], strides = [1, 1]} : vector<8x9xf32> to vector<8x1xf32>
    %513 = vector.broadcast %512 : vector<8x1xf32> to vector<8x128xf32>
    %514 = arith.mulf %511, %513 : vector<8x128xf32>
    %c8_i32_149 = arith.constant 8 : i32
    %515 = tpu.dynamic_rotate %505 by %c8_i32_149 dim 1 : vector<8x128xf32>, i32 -> vector<8x128xf32>
    %c1_150 = arith.constant 1 : index
    %c0_151 = arith.constant 0 : index
    %c0_152 = arith.constant 0 : index
    %516 = vector.load %arg6[%c1_150, %c0_151, %c0_152] : memref<18x8x128xf32, #tpu.memory_space<vmem>>, vector<1x8x128xf32>
    %517 = vector.shape_cast %516 : vector<1x8x128xf32> to vector<8x128xf32>
    %518 = arith.mulf %515, %517 : vector<8x128xf32>
    %519 = vector.extract_strided_slice %507 {offsets = [0, 1], sizes = [8, 1], strides = [1, 1]} : vector<8x9xf32> to vector<8x1xf32>
    %520 = vector.broadcast %519 : vector<8x1xf32> to vector<8x128xf32>
    %521 = arith.mulf %518, %520 : vector<8x128xf32>
    %522 = arith.addf %514, %521 : vector<8x128xf32>
    %c7_i32_153 = arith.constant 7 : i32
    %523 = tpu.dynamic_rotate %505 by %c7_i32_153 dim 1 : vector<8x128xf32>, i32 -> vector<8x128xf32>
    %c2_154 = arith.constant 2 : index
    %c0_155 = arith.constant 0 : index
    %c0_156 = arith.constant 0 : index
    %524 = vector.load %arg6[%c2_154, %c0_155, %c0_156] : memref<18x8x128xf32, #tpu.memory_space<vmem>>, vector<1x8x128xf32>
    %525 = vector.shape_cast %524 : vector<1x8x128xf32> to vector<8x128xf32>
    %526 = arith.mulf %523, %525 : vector<8x128xf32>
    %527 = vector.extract_strided_slice %507 {offsets = [0, 2], sizes = [8, 1], strides = [1, 1]} : vector<8x9xf32> to vector<8x1xf32>
    %528 = vector.broadcast %527 : vector<8x1xf32> to vector<8x128xf32>
    %529 = arith.mulf %526, %528 : vector<8x128xf32>
    %530 = arith.addf %522, %529 : vector<8x128xf32>
    %c1_i32_157 = arith.constant 1 : i32
    %531 = tpu.dynamic_rotate %505 by %c1_i32_157 dim 1 : vector<8x128xf32>, i32 -> vector<8x128xf32>
    %c3_158 = arith.constant 3 : index
    %c0_159 = arith.constant 0 : index
    %c0_160 = arith.constant 0 : index
    %532 = vector.load %arg6[%c3_158, %c0_159, %c0_160] : memref<18x8x128xf32, #tpu.memory_space<vmem>>, vector<1x8x128xf32>
    %533 = vector.shape_cast %532 : vector<1x8x128xf32> to vector<8x128xf32>
    %534 = arith.mulf %531, %533 : vector<8x128xf32>
    %535 = vector.extract_strided_slice %507 {offsets = [0, 3], sizes = [8, 1], strides = [1, 1]} : vector<8x9xf32> to vector<8x1xf32>
    %536 = vector.broadcast %535 : vector<8x1xf32> to vector<8x128xf32>
    %537 = arith.mulf %534, %536 : vector<8x128xf32>
    %538 = arith.addf %530, %537 : vector<8x128xf32>
    %539 = vector.extract_strided_slice %507 {offsets = [0, 4], sizes = [8, 1], strides = [1, 1]} : vector<8x9xf32> to vector<8x1xf32>
    %540 = vector.broadcast %539 : vector<8x1xf32> to vector<8x128xf32>
    %541 = arith.mulf %505, %540 : vector<8x128xf32>
    %542 = arith.addf %538, %541 : vector<8x128xf32>
    %c127_i32_161 = arith.constant 127 : i32
    %543 = tpu.dynamic_rotate %505 by %c127_i32_161 dim 1 : vector<8x128xf32>, i32 -> vector<8x128xf32>
    %c5_162 = arith.constant 5 : index
    %c0_163 = arith.constant 0 : index
    %c0_164 = arith.constant 0 : index
    %544 = vector.load %arg6[%c5_162, %c0_163, %c0_164] : memref<18x8x128xf32, #tpu.memory_space<vmem>>, vector<1x8x128xf32>
    %545 = vector.shape_cast %544 : vector<1x8x128xf32> to vector<8x128xf32>
    %546 = arith.mulf %543, %545 : vector<8x128xf32>
    %547 = vector.extract_strided_slice %507 {offsets = [0, 5], sizes = [8, 1], strides = [1, 1]} : vector<8x9xf32> to vector<8x1xf32>
    %548 = vector.broadcast %547 : vector<8x1xf32> to vector<8x128xf32>
    %549 = arith.mulf %546, %548 : vector<8x128xf32>
    %550 = arith.addf %542, %549 : vector<8x128xf32>
    %c121_i32_165 = arith.constant 121 : i32
    %551 = tpu.dynamic_rotate %505 by %c121_i32_165 dim 1 : vector<8x128xf32>, i32 -> vector<8x128xf32>
    %c6_166 = arith.constant 6 : index
    %c0_167 = arith.constant 0 : index
    %c0_168 = arith.constant 0 : index
    %552 = vector.load %arg6[%c6_166, %c0_167, %c0_168] : memref<18x8x128xf32, #tpu.memory_space<vmem>>, vector<1x8x128xf32>
    %553 = vector.shape_cast %552 : vector<1x8x128xf32> to vector<8x128xf32>
    %554 = arith.mulf %551, %553 : vector<8x128xf32>
    %555 = vector.extract_strided_slice %507 {offsets = [0, 6], sizes = [8, 1], strides = [1, 1]} : vector<8x9xf32> to vector<8x1xf32>
    %556 = vector.broadcast %555 : vector<8x1xf32> to vector<8x128xf32>
    %557 = arith.mulf %554, %556 : vector<8x128xf32>
    %558 = arith.addf %550, %557 : vector<8x128xf32>
    %c120_i32_169 = arith.constant 120 : i32
    %559 = tpu.dynamic_rotate %505 by %c120_i32_169 dim 1 : vector<8x128xf32>, i32 -> vector<8x128xf32>
    %c7_170 = arith.constant 7 : index
    %c0_171 = arith.constant 0 : index
    %c0_172 = arith.constant 0 : index
    %560 = vector.load %arg6[%c7_170, %c0_171, %c0_172] : memref<18x8x128xf32, #tpu.memory_space<vmem>>, vector<1x8x128xf32>
    %561 = vector.shape_cast %560 : vector<1x8x128xf32> to vector<8x128xf32>
    %562 = arith.mulf %559, %561 : vector<8x128xf32>
    %563 = vector.extract_strided_slice %507 {offsets = [0, 7], sizes = [8, 1], strides = [1, 1]} : vector<8x9xf32> to vector<8x1xf32>
    %564 = vector.broadcast %563 : vector<8x1xf32> to vector<8x128xf32>
    %565 = arith.mulf %562, %564 : vector<8x128xf32>
    %566 = arith.addf %558, %565 : vector<8x128xf32>
    %c119_i32_173 = arith.constant 119 : i32
    %567 = tpu.dynamic_rotate %505 by %c119_i32_173 dim 1 : vector<8x128xf32>, i32 -> vector<8x128xf32>
    %c8_174 = arith.constant 8 : index
    %c0_175 = arith.constant 0 : index
    %c0_176 = arith.constant 0 : index
    %568 = vector.load %arg6[%c8_174, %c0_175, %c0_176] : memref<18x8x128xf32, #tpu.memory_space<vmem>>, vector<1x8x128xf32>
    %569 = vector.shape_cast %568 : vector<1x8x128xf32> to vector<8x128xf32>
    %570 = arith.mulf %567, %569 : vector<8x128xf32>
    %571 = vector.extract_strided_slice %507 {offsets = [0, 8], sizes = [8, 1], strides = [1, 1]} : vector<8x9xf32> to vector<8x1xf32>
    %572 = vector.broadcast %571 : vector<8x1xf32> to vector<8x128xf32>
    %573 = arith.mulf %570, %572 : vector<8x128xf32>
    %574 = arith.addf %566, %573 : vector<8x128xf32>
    %c5_177 = arith.constant 5 : index
    %c0_178 = arith.constant 0 : index
    %c0_179 = arith.constant 0 : index
    %575 = vector.load %arg2[%c5_177, %c0_178, %c0_179] : memref<13x8x8xf32, #tpu.memory_space<vmem>>, vector<1x8x8xf32>
    %576 = vector.shape_cast %575 : vector<1x8x8xf32> to vector<8x8xf32>
    %577 = vector.extract_strided_slice %576 {offsets = [0, 0], sizes = [8, 1], strides = [1, 1]} : vector<8x8xf32> to vector<8x1xf32>
    %578 = vector.extract_strided_slice %574 {offsets = [0, 0], sizes = [1, 128], strides = [1, 1]} : vector<8x128xf32> to vector<1x128xf32>
    %579 = vector.broadcast %577 : vector<8x1xf32> to vector<8x128xf32>
    %580 = vector.broadcast %578 : vector<1x128xf32> to vector<8x128xf32>
    %581 = arith.mulf %579, %580 : vector<8x128xf32>
    %582 = vector.extract_strided_slice %576 {offsets = [0, 1], sizes = [8, 1], strides = [1, 1]} : vector<8x8xf32> to vector<8x1xf32>
    %583 = vector.extract_strided_slice %574 {offsets = [1, 0], sizes = [1, 128], strides = [1, 1]} : vector<8x128xf32> to vector<1x128xf32>
    %584 = vector.broadcast %582 : vector<8x1xf32> to vector<8x128xf32>
    %585 = vector.broadcast %583 : vector<1x128xf32> to vector<8x128xf32>
    %586 = arith.mulf %584, %585 : vector<8x128xf32>
    %587 = arith.addf %581, %586 : vector<8x128xf32>
    %588 = vector.extract_strided_slice %576 {offsets = [0, 2], sizes = [8, 1], strides = [1, 1]} : vector<8x8xf32> to vector<8x1xf32>
    %589 = vector.extract_strided_slice %574 {offsets = [2, 0], sizes = [1, 128], strides = [1, 1]} : vector<8x128xf32> to vector<1x128xf32>
    %590 = vector.broadcast %588 : vector<8x1xf32> to vector<8x128xf32>
    %591 = vector.broadcast %589 : vector<1x128xf32> to vector<8x128xf32>
    %592 = arith.mulf %590, %591 : vector<8x128xf32>
    %593 = arith.addf %587, %592 : vector<8x128xf32>
    %594 = vector.extract_strided_slice %576 {offsets = [0, 3], sizes = [8, 1], strides = [1, 1]} : vector<8x8xf32> to vector<8x1xf32>
    %595 = vector.extract_strided_slice %574 {offsets = [3, 0], sizes = [1, 128], strides = [1, 1]} : vector<8x128xf32> to vector<1x128xf32>
    %596 = vector.broadcast %594 : vector<8x1xf32> to vector<8x128xf32>
    %597 = vector.broadcast %595 : vector<1x128xf32> to vector<8x128xf32>
    %598 = arith.mulf %596, %597 : vector<8x128xf32>
    %599 = arith.addf %593, %598 : vector<8x128xf32>
    %600 = vector.extract_strided_slice %576 {offsets = [0, 4], sizes = [8, 1], strides = [1, 1]} : vector<8x8xf32> to vector<8x1xf32>
    %601 = vector.extract_strided_slice %574 {offsets = [4, 0], sizes = [1, 128], strides = [1, 1]} : vector<8x128xf32> to vector<1x128xf32>
    %602 = vector.broadcast %600 : vector<8x1xf32> to vector<8x128xf32>
    %603 = vector.broadcast %601 : vector<1x128xf32> to vector<8x128xf32>
    %604 = arith.mulf %602, %603 : vector<8x128xf32>
    %605 = arith.addf %599, %604 : vector<8x128xf32>
    %606 = vector.extract_strided_slice %576 {offsets = [0, 5], sizes = [8, 1], strides = [1, 1]} : vector<8x8xf32> to vector<8x1xf32>
    %607 = vector.extract_strided_slice %574 {offsets = [5, 0], sizes = [1, 128], strides = [1, 1]} : vector<8x128xf32> to vector<1x128xf32>
    %608 = vector.broadcast %606 : vector<8x1xf32> to vector<8x128xf32>
    %609 = vector.broadcast %607 : vector<1x128xf32> to vector<8x128xf32>
    %610 = arith.mulf %608, %609 : vector<8x128xf32>
    %611 = arith.addf %605, %610 : vector<8x128xf32>
    %612 = vector.extract_strided_slice %576 {offsets = [0, 6], sizes = [8, 1], strides = [1, 1]} : vector<8x8xf32> to vector<8x1xf32>
    %613 = vector.extract_strided_slice %574 {offsets = [6, 0], sizes = [1, 128], strides = [1, 1]} : vector<8x128xf32> to vector<1x128xf32>
    %614 = vector.broadcast %612 : vector<8x1xf32> to vector<8x128xf32>
    %615 = vector.broadcast %613 : vector<1x128xf32> to vector<8x128xf32>
    %616 = arith.mulf %614, %615 : vector<8x128xf32>
    %617 = arith.addf %611, %616 : vector<8x128xf32>
    %618 = vector.extract_strided_slice %576 {offsets = [0, 7], sizes = [8, 1], strides = [1, 1]} : vector<8x8xf32> to vector<8x1xf32>
    %619 = vector.extract_strided_slice %574 {offsets = [7, 0], sizes = [1, 128], strides = [1, 1]} : vector<8x128xf32> to vector<1x128xf32>
    %620 = vector.broadcast %618 : vector<8x1xf32> to vector<8x128xf32>
    %621 = vector.broadcast %619 : vector<1x128xf32> to vector<8x128xf32>
    %622 = arith.mulf %620, %621 : vector<8x128xf32>
    %623 = arith.addf %617, %622 : vector<8x128xf32>
    %c5_180 = arith.constant 5 : index
    %c0_181 = arith.constant 0 : index
    %c0_182 = arith.constant 0 : index
    %624 = vector.load %arg3[%c5_180, %c0_181, %c0_182] : memref<13x8x1xf32, #tpu.memory_space<vmem>>, vector<1x8x1xf32>
    %625 = vector.shape_cast %624 : vector<1x8x1xf32> to vector<8x1xf32>
    %626 = vector.broadcast %625 : vector<8x1xf32> to vector<8x128xf32>
    %627 = arith.mulf %623, %626 : vector<8x128xf32>
    %c5_183 = arith.constant 5 : index
    %c0_184 = arith.constant 0 : index
    %c0_185 = arith.constant 0 : index
    %628 = vector.load %arg4[%c5_183, %c0_184, %c0_185] : memref<13x8x1xf32, #tpu.memory_space<vmem>>, vector<1x8x1xf32>
    %629 = vector.shape_cast %628 : vector<1x8x1xf32> to vector<8x1xf32>
    %630 = vector.broadcast %629 : vector<8x1xf32> to vector<8x128xf32>
    %631 = arith.addf %627, %630 : vector<8x128xf32>
    %632 = arith.addf %375, %631 : vector<8x128xf32>
    %cst_186 = arith.constant 0.000000e+00 : f32
    %633 = vector.broadcast %cst_186 : f32 to vector<8x128xf32>
    %634 = arith.maximumf %59, %633 : vector<8x128xf32>
    %c4_187 = arith.constant 4 : index
    %c0_188 = arith.constant 0 : index
    %c0_189 = arith.constant 0 : index
    %635 = vector.load %arg5[%c4_187, %c0_188, %c0_189] : memref<11x8x9xf32, #tpu.memory_space<vmem>>, vector<1x8x9xf32>
    %636 = vector.shape_cast %635 : vector<1x8x9xf32> to vector<8x9xf32>
    %c9_i32_190 = arith.constant 9 : i32
    %637 = tpu.dynamic_rotate %634 by %c9_i32_190 dim 1 : vector<8x128xf32>, i32 -> vector<8x128xf32>
    %c0_191 = arith.constant 0 : index
    %c0_192 = arith.constant 0 : index
    %c0_193 = arith.constant 0 : index
    %638 = vector.load %arg6[%c0_191, %c0_192, %c0_193] : memref<18x8x128xf32, #tpu.memory_space<vmem>>, vector<1x8x128xf32>
    %639 = vector.shape_cast %638 : vector<1x8x128xf32> to vector<8x128xf32>
    %640 = arith.mulf %637, %639 : vector<8x128xf32>
    %641 = vector.extract_strided_slice %636 {offsets = [0, 0], sizes = [8, 1], strides = [1, 1]} : vector<8x9xf32> to vector<8x1xf32>
    %642 = vector.broadcast %641 : vector<8x1xf32> to vector<8x128xf32>
    %643 = arith.mulf %640, %642 : vector<8x128xf32>
    %c8_i32_194 = arith.constant 8 : i32
    %644 = tpu.dynamic_rotate %634 by %c8_i32_194 dim 1 : vector<8x128xf32>, i32 -> vector<8x128xf32>
    %c1_195 = arith.constant 1 : index
    %c0_196 = arith.constant 0 : index
    %c0_197 = arith.constant 0 : index
    %645 = vector.load %arg6[%c1_195, %c0_196, %c0_197] : memref<18x8x128xf32, #tpu.memory_space<vmem>>, vector<1x8x128xf32>
    %646 = vector.shape_cast %645 : vector<1x8x128xf32> to vector<8x128xf32>
    %647 = arith.mulf %644, %646 : vector<8x128xf32>
    %648 = vector.extract_strided_slice %636 {offsets = [0, 1], sizes = [8, 1], strides = [1, 1]} : vector<8x9xf32> to vector<8x1xf32>
    %649 = vector.broadcast %648 : vector<8x1xf32> to vector<8x128xf32>
    %650 = arith.mulf %647, %649 : vector<8x128xf32>
    %651 = arith.addf %643, %650 : vector<8x128xf32>
    %c7_i32_198 = arith.constant 7 : i32
    %652 = tpu.dynamic_rotate %634 by %c7_i32_198 dim 1 : vector<8x128xf32>, i32 -> vector<8x128xf32>
    %c2_199 = arith.constant 2 : index
    %c0_200 = arith.constant 0 : index
    %c0_201 = arith.constant 0 : index
    %653 = vector.load %arg6[%c2_199, %c0_200, %c0_201] : memref<18x8x128xf32, #tpu.memory_space<vmem>>, vector<1x8x128xf32>
    %654 = vector.shape_cast %653 : vector<1x8x128xf32> to vector<8x128xf32>
    %655 = arith.mulf %652, %654 : vector<8x128xf32>
    %656 = vector.extract_strided_slice %636 {offsets = [0, 2], sizes = [8, 1], strides = [1, 1]} : vector<8x9xf32> to vector<8x1xf32>
    %657 = vector.broadcast %656 : vector<8x1xf32> to vector<8x128xf32>
    %658 = arith.mulf %655, %657 : vector<8x128xf32>
    %659 = arith.addf %651, %658 : vector<8x128xf32>
    %c1_i32_202 = arith.constant 1 : i32
    %660 = tpu.dynamic_rotate %634 by %c1_i32_202 dim 1 : vector<8x128xf32>, i32 -> vector<8x128xf32>
    %c3_203 = arith.constant 3 : index
    %c0_204 = arith.constant 0 : index
    %c0_205 = arith.constant 0 : index
    %661 = vector.load %arg6[%c3_203, %c0_204, %c0_205] : memref<18x8x128xf32, #tpu.memory_space<vmem>>, vector<1x8x128xf32>
    %662 = vector.shape_cast %661 : vector<1x8x128xf32> to vector<8x128xf32>
    %663 = arith.mulf %660, %662 : vector<8x128xf32>
    %664 = vector.extract_strided_slice %636 {offsets = [0, 3], sizes = [8, 1], strides = [1, 1]} : vector<8x9xf32> to vector<8x1xf32>
    %665 = vector.broadcast %664 : vector<8x1xf32> to vector<8x128xf32>
    %666 = arith.mulf %663, %665 : vector<8x128xf32>
    %667 = arith.addf %659, %666 : vector<8x128xf32>
    %668 = vector.extract_strided_slice %636 {offsets = [0, 4], sizes = [8, 1], strides = [1, 1]} : vector<8x9xf32> to vector<8x1xf32>
    %669 = vector.broadcast %668 : vector<8x1xf32> to vector<8x128xf32>
    %670 = arith.mulf %634, %669 : vector<8x128xf32>
    %671 = arith.addf %667, %670 : vector<8x128xf32>
    %c127_i32_206 = arith.constant 127 : i32
    %672 = tpu.dynamic_rotate %634 by %c127_i32_206 dim 1 : vector<8x128xf32>, i32 -> vector<8x128xf32>
    %c5_207 = arith.constant 5 : index
    %c0_208 = arith.constant 0 : index
    %c0_209 = arith.constant 0 : index
    %673 = vector.load %arg6[%c5_207, %c0_208, %c0_209] : memref<18x8x128xf32, #tpu.memory_space<vmem>>, vector<1x8x128xf32>
    %674 = vector.shape_cast %673 : vector<1x8x128xf32> to vector<8x128xf32>
    %675 = arith.mulf %672, %674 : vector<8x128xf32>
    %676 = vector.extract_strided_slice %636 {offsets = [0, 5], sizes = [8, 1], strides = [1, 1]} : vector<8x9xf32> to vector<8x1xf32>
    %677 = vector.broadcast %676 : vector<8x1xf32> to vector<8x128xf32>
    %678 = arith.mulf %675, %677 : vector<8x128xf32>
    %679 = arith.addf %671, %678 : vector<8x128xf32>
    %c121_i32_210 = arith.constant 121 : i32
    %680 = tpu.dynamic_rotate %634 by %c121_i32_210 dim 1 : vector<8x128xf32>, i32 -> vector<8x128xf32>
    %c6_211 = arith.constant 6 : index
    %c0_212 = arith.constant 0 : index
    %c0_213 = arith.constant 0 : index
    %681 = vector.load %arg6[%c6_211, %c0_212, %c0_213] : memref<18x8x128xf32, #tpu.memory_space<vmem>>, vector<1x8x128xf32>
    %682 = vector.shape_cast %681 : vector<1x8x128xf32> to vector<8x128xf32>
    %683 = arith.mulf %680, %682 : vector<8x128xf32>
    %684 = vector.extract_strided_slice %636 {offsets = [0, 6], sizes = [8, 1], strides = [1, 1]} : vector<8x9xf32> to vector<8x1xf32>
    %685 = vector.broadcast %684 : vector<8x1xf32> to vector<8x128xf32>
    %686 = arith.mulf %683, %685 : vector<8x128xf32>
    %687 = arith.addf %679, %686 : vector<8x128xf32>
    %c120_i32_214 = arith.constant 120 : i32
    %688 = tpu.dynamic_rotate %634 by %c120_i32_214 dim 1 : vector<8x128xf32>, i32 -> vector<8x128xf32>
    %c7_215 = arith.constant 7 : index
    %c0_216 = arith.constant 0 : index
    %c0_217 = arith.constant 0 : index
    %689 = vector.load %arg6[%c7_215, %c0_216, %c0_217] : memref<18x8x128xf32, #tpu.memory_space<vmem>>, vector<1x8x128xf32>
    %690 = vector.shape_cast %689 : vector<1x8x128xf32> to vector<8x128xf32>
    %691 = arith.mulf %688, %690 : vector<8x128xf32>
    %692 = vector.extract_strided_slice %636 {offsets = [0, 7], sizes = [8, 1], strides = [1, 1]} : vector<8x9xf32> to vector<8x1xf32>
    %693 = vector.broadcast %692 : vector<8x1xf32> to vector<8x128xf32>
    %694 = arith.mulf %691, %693 : vector<8x128xf32>
    %695 = arith.addf %687, %694 : vector<8x128xf32>
    %c119_i32_218 = arith.constant 119 : i32
    %696 = tpu.dynamic_rotate %634 by %c119_i32_218 dim 1 : vector<8x128xf32>, i32 -> vector<8x128xf32>
    %c8_219 = arith.constant 8 : index
    %c0_220 = arith.constant 0 : index
    %c0_221 = arith.constant 0 : index
    %697 = vector.load %arg6[%c8_219, %c0_220, %c0_221] : memref<18x8x128xf32, #tpu.memory_space<vmem>>, vector<1x8x128xf32>
    %698 = vector.shape_cast %697 : vector<1x8x128xf32> to vector<8x128xf32>
    %699 = arith.mulf %696, %698 : vector<8x128xf32>
    %700 = vector.extract_strided_slice %636 {offsets = [0, 8], sizes = [8, 1], strides = [1, 1]} : vector<8x9xf32> to vector<8x1xf32>
    %701 = vector.broadcast %700 : vector<8x1xf32> to vector<8x128xf32>
    %702 = arith.mulf %699, %701 : vector<8x128xf32>
    %703 = arith.addf %695, %702 : vector<8x128xf32>
    %c6_222 = arith.constant 6 : index
    %c0_223 = arith.constant 0 : index
    %c0_224 = arith.constant 0 : index
    %704 = vector.load %arg2[%c6_222, %c0_223, %c0_224] : memref<13x8x8xf32, #tpu.memory_space<vmem>>, vector<1x8x8xf32>
    %705 = vector.shape_cast %704 : vector<1x8x8xf32> to vector<8x8xf32>
    %706 = vector.extract_strided_slice %705 {offsets = [0, 0], sizes = [8, 1], strides = [1, 1]} : vector<8x8xf32> to vector<8x1xf32>
    %707 = vector.extract_strided_slice %703 {offsets = [0, 0], sizes = [1, 128], strides = [1, 1]} : vector<8x128xf32> to vector<1x128xf32>
    %708 = vector.broadcast %706 : vector<8x1xf32> to vector<8x128xf32>
    %709 = vector.broadcast %707 : vector<1x128xf32> to vector<8x128xf32>
    %710 = arith.mulf %708, %709 : vector<8x128xf32>
    %711 = vector.extract_strided_slice %705 {offsets = [0, 1], sizes = [8, 1], strides = [1, 1]} : vector<8x8xf32> to vector<8x1xf32>
    %712 = vector.extract_strided_slice %703 {offsets = [1, 0], sizes = [1, 128], strides = [1, 1]} : vector<8x128xf32> to vector<1x128xf32>
    %713 = vector.broadcast %711 : vector<8x1xf32> to vector<8x128xf32>
    %714 = vector.broadcast %712 : vector<1x128xf32> to vector<8x128xf32>
    %715 = arith.mulf %713, %714 : vector<8x128xf32>
    %716 = arith.addf %710, %715 : vector<8x128xf32>
    %717 = vector.extract_strided_slice %705 {offsets = [0, 2], sizes = [8, 1], strides = [1, 1]} : vector<8x8xf32> to vector<8x1xf32>
    %718 = vector.extract_strided_slice %703 {offsets = [2, 0], sizes = [1, 128], strides = [1, 1]} : vector<8x128xf32> to vector<1x128xf32>
    %719 = vector.broadcast %717 : vector<8x1xf32> to vector<8x128xf32>
    %720 = vector.broadcast %718 : vector<1x128xf32> to vector<8x128xf32>
    %721 = arith.mulf %719, %720 : vector<8x128xf32>
    %722 = arith.addf %716, %721 : vector<8x128xf32>
    %723 = vector.extract_strided_slice %705 {offsets = [0, 3], sizes = [8, 1], strides = [1, 1]} : vector<8x8xf32> to vector<8x1xf32>
    %724 = vector.extract_strided_slice %703 {offsets = [3, 0], sizes = [1, 128], strides = [1, 1]} : vector<8x128xf32> to vector<1x128xf32>
    %725 = vector.broadcast %723 : vector<8x1xf32> to vector<8x128xf32>
    %726 = vector.broadcast %724 : vector<1x128xf32> to vector<8x128xf32>
    %727 = arith.mulf %725, %726 : vector<8x128xf32>
    %728 = arith.addf %722, %727 : vector<8x128xf32>
    %729 = vector.extract_strided_slice %705 {offsets = [0, 4], sizes = [8, 1], strides = [1, 1]} : vector<8x8xf32> to vector<8x1xf32>
    %730 = vector.extract_strided_slice %703 {offsets = [4, 0], sizes = [1, 128], strides = [1, 1]} : vector<8x128xf32> to vector<1x128xf32>
    %731 = vector.broadcast %729 : vector<8x1xf32> to vector<8x128xf32>
    %732 = vector.broadcast %730 : vector<1x128xf32> to vector<8x128xf32>
    %733 = arith.mulf %731, %732 : vector<8x128xf32>
    %734 = arith.addf %728, %733 : vector<8x128xf32>
    %735 = vector.extract_strided_slice %705 {offsets = [0, 5], sizes = [8, 1], strides = [1, 1]} : vector<8x8xf32> to vector<8x1xf32>
    %736 = vector.extract_strided_slice %703 {offsets = [5, 0], sizes = [1, 128], strides = [1, 1]} : vector<8x128xf32> to vector<1x128xf32>
    %737 = vector.broadcast %735 : vector<8x1xf32> to vector<8x128xf32>
    %738 = vector.broadcast %736 : vector<1x128xf32> to vector<8x128xf32>
    %739 = arith.mulf %737, %738 : vector<8x128xf32>
    %740 = arith.addf %734, %739 : vector<8x128xf32>
    %741 = vector.extract_strided_slice %705 {offsets = [0, 6], sizes = [8, 1], strides = [1, 1]} : vector<8x8xf32> to vector<8x1xf32>
    %742 = vector.extract_strided_slice %703 {offsets = [6, 0], sizes = [1, 128], strides = [1, 1]} : vector<8x128xf32> to vector<1x128xf32>
    %743 = vector.broadcast %741 : vector<8x1xf32> to vector<8x128xf32>
    %744 = vector.broadcast %742 : vector<1x128xf32> to vector<8x128xf32>
    %745 = arith.mulf %743, %744 : vector<8x128xf32>
    %746 = arith.addf %740, %745 : vector<8x128xf32>
    %747 = vector.extract_strided_slice %705 {offsets = [0, 7], sizes = [8, 1], strides = [1, 1]} : vector<8x8xf32> to vector<8x1xf32>
    %748 = vector.extract_strided_slice %703 {offsets = [7, 0], sizes = [1, 128], strides = [1, 1]} : vector<8x128xf32> to vector<1x128xf32>
    %749 = vector.broadcast %747 : vector<8x1xf32> to vector<8x128xf32>
    %750 = vector.broadcast %748 : vector<1x128xf32> to vector<8x128xf32>
    %751 = arith.mulf %749, %750 : vector<8x128xf32>
    %752 = arith.addf %746, %751 : vector<8x128xf32>
    %c6_225 = arith.constant 6 : index
    %c0_226 = arith.constant 0 : index
    %c0_227 = arith.constant 0 : index
    %753 = vector.load %arg3[%c6_225, %c0_226, %c0_227] : memref<13x8x1xf32, #tpu.memory_space<vmem>>, vector<1x8x1xf32>
    %754 = vector.shape_cast %753 : vector<1x8x1xf32> to vector<8x1xf32>
    %755 = vector.broadcast %754 : vector<8x1xf32> to vector<8x128xf32>
    %756 = arith.mulf %752, %755 : vector<8x128xf32>
    %c6_228 = arith.constant 6 : index
    %c0_229 = arith.constant 0 : index
    %c0_230 = arith.constant 0 : index
    %757 = vector.load %arg4[%c6_228, %c0_229, %c0_230] : memref<13x8x1xf32, #tpu.memory_space<vmem>>, vector<1x8x1xf32>
    %758 = vector.shape_cast %757 : vector<1x8x1xf32> to vector<8x1xf32>
    %759 = vector.broadcast %758 : vector<8x1xf32> to vector<8x128xf32>
    %760 = arith.addf %756, %759 : vector<8x128xf32>
    %cst_231 = arith.constant 0.000000e+00 : f32
    %761 = vector.broadcast %cst_231 : f32 to vector<8x128xf32>
    %762 = arith.maximumf %760, %761 : vector<8x128xf32>
    %c5_232 = arith.constant 5 : index
    %c0_233 = arith.constant 0 : index
    %c0_234 = arith.constant 0 : index
    %763 = vector.load %arg5[%c5_232, %c0_233, %c0_234] : memref<11x8x9xf32, #tpu.memory_space<vmem>>, vector<1x8x9xf32>
    %764 = vector.shape_cast %763 : vector<1x8x9xf32> to vector<8x9xf32>
    %c9_i32_235 = arith.constant 9 : i32
    %765 = tpu.dynamic_rotate %762 by %c9_i32_235 dim 1 : vector<8x128xf32>, i32 -> vector<8x128xf32>
    %c0_236 = arith.constant 0 : index
    %c0_237 = arith.constant 0 : index
    %c0_238 = arith.constant 0 : index
    %766 = vector.load %arg6[%c0_236, %c0_237, %c0_238] : memref<18x8x128xf32, #tpu.memory_space<vmem>>, vector<1x8x128xf32>
    %767 = vector.shape_cast %766 : vector<1x8x128xf32> to vector<8x128xf32>
    %768 = arith.mulf %765, %767 : vector<8x128xf32>
    %769 = vector.extract_strided_slice %764 {offsets = [0, 0], sizes = [8, 1], strides = [1, 1]} : vector<8x9xf32> to vector<8x1xf32>
    %770 = vector.broadcast %769 : vector<8x1xf32> to vector<8x128xf32>
    %771 = arith.mulf %768, %770 : vector<8x128xf32>
    %c8_i32_239 = arith.constant 8 : i32
    %772 = tpu.dynamic_rotate %762 by %c8_i32_239 dim 1 : vector<8x128xf32>, i32 -> vector<8x128xf32>
    %c1_240 = arith.constant 1 : index
    %c0_241 = arith.constant 0 : index
    %c0_242 = arith.constant 0 : index
    %773 = vector.load %arg6[%c1_240, %c0_241, %c0_242] : memref<18x8x128xf32, #tpu.memory_space<vmem>>, vector<1x8x128xf32>
    %774 = vector.shape_cast %773 : vector<1x8x128xf32> to vector<8x128xf32>
    %775 = arith.mulf %772, %774 : vector<8x128xf32>
    %776 = vector.extract_strided_slice %764 {offsets = [0, 1], sizes = [8, 1], strides = [1, 1]} : vector<8x9xf32> to vector<8x1xf32>
    %777 = vector.broadcast %776 : vector<8x1xf32> to vector<8x128xf32>
    %778 = arith.mulf %775, %777 : vector<8x128xf32>
    %779 = arith.addf %771, %778 : vector<8x128xf32>
    %c7_i32_243 = arith.constant 7 : i32
    %780 = tpu.dynamic_rotate %762 by %c7_i32_243 dim 1 : vector<8x128xf32>, i32 -> vector<8x128xf32>
    %c2_244 = arith.constant 2 : index
    %c0_245 = arith.constant 0 : index
    %c0_246 = arith.constant 0 : index
    %781 = vector.load %arg6[%c2_244, %c0_245, %c0_246] : memref<18x8x128xf32, #tpu.memory_space<vmem>>, vector<1x8x128xf32>
    %782 = vector.shape_cast %781 : vector<1x8x128xf32> to vector<8x128xf32>
    %783 = arith.mulf %780, %782 : vector<8x128xf32>
    %784 = vector.extract_strided_slice %764 {offsets = [0, 2], sizes = [8, 1], strides = [1, 1]} : vector<8x9xf32> to vector<8x1xf32>
    %785 = vector.broadcast %784 : vector<8x1xf32> to vector<8x128xf32>
    %786 = arith.mulf %783, %785 : vector<8x128xf32>
    %787 = arith.addf %779, %786 : vector<8x128xf32>
    %c1_i32_247 = arith.constant 1 : i32
    %788 = tpu.dynamic_rotate %762 by %c1_i32_247 dim 1 : vector<8x128xf32>, i32 -> vector<8x128xf32>
    %c3_248 = arith.constant 3 : index
    %c0_249 = arith.constant 0 : index
    %c0_250 = arith.constant 0 : index
    %789 = vector.load %arg6[%c3_248, %c0_249, %c0_250] : memref<18x8x128xf32, #tpu.memory_space<vmem>>, vector<1x8x128xf32>
    %790 = vector.shape_cast %789 : vector<1x8x128xf32> to vector<8x128xf32>
    %791 = arith.mulf %788, %790 : vector<8x128xf32>
    %792 = vector.extract_strided_slice %764 {offsets = [0, 3], sizes = [8, 1], strides = [1, 1]} : vector<8x9xf32> to vector<8x1xf32>
    %793 = vector.broadcast %792 : vector<8x1xf32> to vector<8x128xf32>
    %794 = arith.mulf %791, %793 : vector<8x128xf32>
    %795 = arith.addf %787, %794 : vector<8x128xf32>
    %796 = vector.extract_strided_slice %764 {offsets = [0, 4], sizes = [8, 1], strides = [1, 1]} : vector<8x9xf32> to vector<8x1xf32>
    %797 = vector.broadcast %796 : vector<8x1xf32> to vector<8x128xf32>
    %798 = arith.mulf %762, %797 : vector<8x128xf32>
    %799 = arith.addf %795, %798 : vector<8x128xf32>
    %c127_i32_251 = arith.constant 127 : i32
    %800 = tpu.dynamic_rotate %762 by %c127_i32_251 dim 1 : vector<8x128xf32>, i32 -> vector<8x128xf32>
    %c5_252 = arith.constant 5 : index
    %c0_253 = arith.constant 0 : index
    %c0_254 = arith.constant 0 : index
    %801 = vector.load %arg6[%c5_252, %c0_253, %c0_254] : memref<18x8x128xf32, #tpu.memory_space<vmem>>, vector<1x8x128xf32>
    %802 = vector.shape_cast %801 : vector<1x8x128xf32> to vector<8x128xf32>
    %803 = arith.mulf %800, %802 : vector<8x128xf32>
    %804 = vector.extract_strided_slice %764 {offsets = [0, 5], sizes = [8, 1], strides = [1, 1]} : vector<8x9xf32> to vector<8x1xf32>
    %805 = vector.broadcast %804 : vector<8x1xf32> to vector<8x128xf32>
    %806 = arith.mulf %803, %805 : vector<8x128xf32>
    %807 = arith.addf %799, %806 : vector<8x128xf32>
    %c121_i32_255 = arith.constant 121 : i32
    %808 = tpu.dynamic_rotate %762 by %c121_i32_255 dim 1 : vector<8x128xf32>, i32 -> vector<8x128xf32>
    %c6_256 = arith.constant 6 : index
    %c0_257 = arith.constant 0 : index
    %c0_258 = arith.constant 0 : index
    %809 = vector.load %arg6[%c6_256, %c0_257, %c0_258] : memref<18x8x128xf32, #tpu.memory_space<vmem>>, vector<1x8x128xf32>
    %810 = vector.shape_cast %809 : vector<1x8x128xf32> to vector<8x128xf32>
    %811 = arith.mulf %808, %810 : vector<8x128xf32>
    %812 = vector.extract_strided_slice %764 {offsets = [0, 6], sizes = [8, 1], strides = [1, 1]} : vector<8x9xf32> to vector<8x1xf32>
    %813 = vector.broadcast %812 : vector<8x1xf32> to vector<8x128xf32>
    %814 = arith.mulf %811, %813 : vector<8x128xf32>
    %815 = arith.addf %807, %814 : vector<8x128xf32>
    %c120_i32_259 = arith.constant 120 : i32
    %816 = tpu.dynamic_rotate %762 by %c120_i32_259 dim 1 : vector<8x128xf32>, i32 -> vector<8x128xf32>
    %c7_260 = arith.constant 7 : index
    %c0_261 = arith.constant 0 : index
    %c0_262 = arith.constant 0 : index
    %817 = vector.load %arg6[%c7_260, %c0_261, %c0_262] : memref<18x8x128xf32, #tpu.memory_space<vmem>>, vector<1x8x128xf32>
    %818 = vector.shape_cast %817 : vector<1x8x128xf32> to vector<8x128xf32>
    %819 = arith.mulf %816, %818 : vector<8x128xf32>
    %820 = vector.extract_strided_slice %764 {offsets = [0, 7], sizes = [8, 1], strides = [1, 1]} : vector<8x9xf32> to vector<8x1xf32>
    %821 = vector.broadcast %820 : vector<8x1xf32> to vector<8x128xf32>
    %822 = arith.mulf %819, %821 : vector<8x128xf32>
    %823 = arith.addf %815, %822 : vector<8x128xf32>
    %c119_i32_263 = arith.constant 119 : i32
    %824 = tpu.dynamic_rotate %762 by %c119_i32_263 dim 1 : vector<8x128xf32>, i32 -> vector<8x128xf32>
    %c8_264 = arith.constant 8 : index
    %c0_265 = arith.constant 0 : index
    %c0_266 = arith.constant 0 : index
    %825 = vector.load %arg6[%c8_264, %c0_265, %c0_266] : memref<18x8x128xf32, #tpu.memory_space<vmem>>, vector<1x8x128xf32>
    %826 = vector.shape_cast %825 : vector<1x8x128xf32> to vector<8x128xf32>
    %827 = arith.mulf %824, %826 : vector<8x128xf32>
    %828 = vector.extract_strided_slice %764 {offsets = [0, 8], sizes = [8, 1], strides = [1, 1]} : vector<8x9xf32> to vector<8x1xf32>
    %829 = vector.broadcast %828 : vector<8x1xf32> to vector<8x128xf32>
    %830 = arith.mulf %827, %829 : vector<8x128xf32>
    %831 = arith.addf %823, %830 : vector<8x128xf32>
    %c7_267 = arith.constant 7 : index
    %c0_268 = arith.constant 0 : index
    %c0_269 = arith.constant 0 : index
    %832 = vector.load %arg2[%c7_267, %c0_268, %c0_269] : memref<13x8x8xf32, #tpu.memory_space<vmem>>, vector<1x8x8xf32>
    %833 = vector.shape_cast %832 : vector<1x8x8xf32> to vector<8x8xf32>
    %834 = vector.extract_strided_slice %833 {offsets = [0, 0], sizes = [8, 1], strides = [1, 1]} : vector<8x8xf32> to vector<8x1xf32>
    %835 = vector.extract_strided_slice %831 {offsets = [0, 0], sizes = [1, 128], strides = [1, 1]} : vector<8x128xf32> to vector<1x128xf32>
    %836 = vector.broadcast %834 : vector<8x1xf32> to vector<8x128xf32>
    %837 = vector.broadcast %835 : vector<1x128xf32> to vector<8x128xf32>
    %838 = arith.mulf %836, %837 : vector<8x128xf32>
    %839 = vector.extract_strided_slice %833 {offsets = [0, 1], sizes = [8, 1], strides = [1, 1]} : vector<8x8xf32> to vector<8x1xf32>
    %840 = vector.extract_strided_slice %831 {offsets = [1, 0], sizes = [1, 128], strides = [1, 1]} : vector<8x128xf32> to vector<1x128xf32>
    %841 = vector.broadcast %839 : vector<8x1xf32> to vector<8x128xf32>
    %842 = vector.broadcast %840 : vector<1x128xf32> to vector<8x128xf32>
    %843 = arith.mulf %841, %842 : vector<8x128xf32>
    %844 = arith.addf %838, %843 : vector<8x128xf32>
    %845 = vector.extract_strided_slice %833 {offsets = [0, 2], sizes = [8, 1], strides = [1, 1]} : vector<8x8xf32> to vector<8x1xf32>
    %846 = vector.extract_strided_slice %831 {offsets = [2, 0], sizes = [1, 128], strides = [1, 1]} : vector<8x128xf32> to vector<1x128xf32>
    %847 = vector.broadcast %845 : vector<8x1xf32> to vector<8x128xf32>
    %848 = vector.broadcast %846 : vector<1x128xf32> to vector<8x128xf32>
    %849 = arith.mulf %847, %848 : vector<8x128xf32>
    %850 = arith.addf %844, %849 : vector<8x128xf32>
    %851 = vector.extract_strided_slice %833 {offsets = [0, 3], sizes = [8, 1], strides = [1, 1]} : vector<8x8xf32> to vector<8x1xf32>
    %852 = vector.extract_strided_slice %831 {offsets = [3, 0], sizes = [1, 128], strides = [1, 1]} : vector<8x128xf32> to vector<1x128xf32>
    %853 = vector.broadcast %851 : vector<8x1xf32> to vector<8x128xf32>
    %854 = vector.broadcast %852 : vector<1x128xf32> to vector<8x128xf32>
    %855 = arith.mulf %853, %854 : vector<8x128xf32>
    %856 = arith.addf %850, %855 : vector<8x128xf32>
    %857 = vector.extract_strided_slice %833 {offsets = [0, 4], sizes = [8, 1], strides = [1, 1]} : vector<8x8xf32> to vector<8x1xf32>
    %858 = vector.extract_strided_slice %831 {offsets = [4, 0], sizes = [1, 128], strides = [1, 1]} : vector<8x128xf32> to vector<1x128xf32>
    %859 = vector.broadcast %857 : vector<8x1xf32> to vector<8x128xf32>
    %860 = vector.broadcast %858 : vector<1x128xf32> to vector<8x128xf32>
    %861 = arith.mulf %859, %860 : vector<8x128xf32>
    %862 = arith.addf %856, %861 : vector<8x128xf32>
    %863 = vector.extract_strided_slice %833 {offsets = [0, 5], sizes = [8, 1], strides = [1, 1]} : vector<8x8xf32> to vector<8x1xf32>
    %864 = vector.extract_strided_slice %831 {offsets = [5, 0], sizes = [1, 128], strides = [1, 1]} : vector<8x128xf32> to vector<1x128xf32>
    %865 = vector.broadcast %863 : vector<8x1xf32> to vector<8x128xf32>
    %866 = vector.broadcast %864 : vector<1x128xf32> to vector<8x128xf32>
    %867 = arith.mulf %865, %866 : vector<8x128xf32>
    %868 = arith.addf %862, %867 : vector<8x128xf32>
    %869 = vector.extract_strided_slice %833 {offsets = [0, 6], sizes = [8, 1], strides = [1, 1]} : vector<8x8xf32> to vector<8x1xf32>
    %870 = vector.extract_strided_slice %831 {offsets = [6, 0], sizes = [1, 128], strides = [1, 1]} : vector<8x128xf32> to vector<1x128xf32>
    %871 = vector.broadcast %869 : vector<8x1xf32> to vector<8x128xf32>
    %872 = vector.broadcast %870 : vector<1x128xf32> to vector<8x128xf32>
    %873 = arith.mulf %871, %872 : vector<8x128xf32>
    %874 = arith.addf %868, %873 : vector<8x128xf32>
    %875 = vector.extract_strided_slice %833 {offsets = [0, 7], sizes = [8, 1], strides = [1, 1]} : vector<8x8xf32> to vector<8x1xf32>
    %876 = vector.extract_strided_slice %831 {offsets = [7, 0], sizes = [1, 128], strides = [1, 1]} : vector<8x128xf32> to vector<1x128xf32>
    %877 = vector.broadcast %875 : vector<8x1xf32> to vector<8x128xf32>
    %878 = vector.broadcast %876 : vector<1x128xf32> to vector<8x128xf32>
    %879 = arith.mulf %877, %878 : vector<8x128xf32>
    %880 = arith.addf %874, %879 : vector<8x128xf32>
    %c7_270 = arith.constant 7 : index
    %c0_271 = arith.constant 0 : index
    %c0_272 = arith.constant 0 : index
    %881 = vector.load %arg3[%c7_270, %c0_271, %c0_272] : memref<13x8x1xf32, #tpu.memory_space<vmem>>, vector<1x8x1xf32>
    %882 = vector.shape_cast %881 : vector<1x8x1xf32> to vector<8x1xf32>
    %883 = vector.broadcast %882 : vector<8x1xf32> to vector<8x128xf32>
    %884 = arith.mulf %880, %883 : vector<8x128xf32>
    %c7_273 = arith.constant 7 : index
    %c0_274 = arith.constant 0 : index
    %c0_275 = arith.constant 0 : index
    %885 = vector.load %arg4[%c7_273, %c0_274, %c0_275] : memref<13x8x1xf32, #tpu.memory_space<vmem>>, vector<1x8x1xf32>
    %886 = vector.shape_cast %885 : vector<1x8x1xf32> to vector<8x1xf32>
    %887 = vector.broadcast %886 : vector<8x1xf32> to vector<8x128xf32>
    %888 = arith.addf %884, %887 : vector<8x128xf32>
    %cst_276 = arith.constant 0.000000e+00 : f32
    %889 = vector.broadcast %cst_276 : f32 to vector<8x128xf32>
    %890 = arith.maximumf %119, %889 : vector<8x128xf32>
    %c6_277 = arith.constant 6 : index
    %c0_278 = arith.constant 0 : index
    %c0_279 = arith.constant 0 : index
    %891 = vector.load %arg5[%c6_277, %c0_278, %c0_279] : memref<11x8x9xf32, #tpu.memory_space<vmem>>, vector<1x8x9xf32>
    %892 = vector.shape_cast %891 : vector<1x8x9xf32> to vector<8x9xf32>
    %c9_i32_280 = arith.constant 9 : i32
    %893 = tpu.dynamic_rotate %890 by %c9_i32_280 dim 1 : vector<8x128xf32>, i32 -> vector<8x128xf32>
    %c0_281 = arith.constant 0 : index
    %c0_282 = arith.constant 0 : index
    %c0_283 = arith.constant 0 : index
    %894 = vector.load %arg6[%c0_281, %c0_282, %c0_283] : memref<18x8x128xf32, #tpu.memory_space<vmem>>, vector<1x8x128xf32>
    %895 = vector.shape_cast %894 : vector<1x8x128xf32> to vector<8x128xf32>
    %896 = arith.mulf %893, %895 : vector<8x128xf32>
    %897 = vector.extract_strided_slice %892 {offsets = [0, 0], sizes = [8, 1], strides = [1, 1]} : vector<8x9xf32> to vector<8x1xf32>
    %898 = vector.broadcast %897 : vector<8x1xf32> to vector<8x128xf32>
    %899 = arith.mulf %896, %898 : vector<8x128xf32>
    %c8_i32_284 = arith.constant 8 : i32
    %900 = tpu.dynamic_rotate %890 by %c8_i32_284 dim 1 : vector<8x128xf32>, i32 -> vector<8x128xf32>
    %c1_285 = arith.constant 1 : index
    %c0_286 = arith.constant 0 : index
    %c0_287 = arith.constant 0 : index
    %901 = vector.load %arg6[%c1_285, %c0_286, %c0_287] : memref<18x8x128xf32, #tpu.memory_space<vmem>>, vector<1x8x128xf32>
    %902 = vector.shape_cast %901 : vector<1x8x128xf32> to vector<8x128xf32>
    %903 = arith.mulf %900, %902 : vector<8x128xf32>
    %904 = vector.extract_strided_slice %892 {offsets = [0, 1], sizes = [8, 1], strides = [1, 1]} : vector<8x9xf32> to vector<8x1xf32>
    %905 = vector.broadcast %904 : vector<8x1xf32> to vector<8x128xf32>
    %906 = arith.mulf %903, %905 : vector<8x128xf32>
    %907 = arith.addf %899, %906 : vector<8x128xf32>
    %c7_i32_288 = arith.constant 7 : i32
    %908 = tpu.dynamic_rotate %890 by %c7_i32_288 dim 1 : vector<8x128xf32>, i32 -> vector<8x128xf32>
    %c2_289 = arith.constant 2 : index
    %c0_290 = arith.constant 0 : index
    %c0_291 = arith.constant 0 : index
    %909 = vector.load %arg6[%c2_289, %c0_290, %c0_291] : memref<18x8x128xf32, #tpu.memory_space<vmem>>, vector<1x8x128xf32>
    %910 = vector.shape_cast %909 : vector<1x8x128xf32> to vector<8x128xf32>
    %911 = arith.mulf %908, %910 : vector<8x128xf32>
    %912 = vector.extract_strided_slice %892 {offsets = [0, 2], sizes = [8, 1], strides = [1, 1]} : vector<8x9xf32> to vector<8x1xf32>
    %913 = vector.broadcast %912 : vector<8x1xf32> to vector<8x128xf32>
    %914 = arith.mulf %911, %913 : vector<8x128xf32>
    %915 = arith.addf %907, %914 : vector<8x128xf32>
    %c1_i32_292 = arith.constant 1 : i32
    %916 = tpu.dynamic_rotate %890 by %c1_i32_292 dim 1 : vector<8x128xf32>, i32 -> vector<8x128xf32>
    %c3_293 = arith.constant 3 : index
    %c0_294 = arith.constant 0 : index
    %c0_295 = arith.constant 0 : index
    %917 = vector.load %arg6[%c3_293, %c0_294, %c0_295] : memref<18x8x128xf32, #tpu.memory_space<vmem>>, vector<1x8x128xf32>
    %918 = vector.shape_cast %917 : vector<1x8x128xf32> to vector<8x128xf32>
    %919 = arith.mulf %916, %918 : vector<8x128xf32>
    %920 = vector.extract_strided_slice %892 {offsets = [0, 3], sizes = [8, 1], strides = [1, 1]} : vector<8x9xf32> to vector<8x1xf32>
    %921 = vector.broadcast %920 : vector<8x1xf32> to vector<8x128xf32>
    %922 = arith.mulf %919, %921 : vector<8x128xf32>
    %923 = arith.addf %915, %922 : vector<8x128xf32>
    %924 = vector.extract_strided_slice %892 {offsets = [0, 4], sizes = [8, 1], strides = [1, 1]} : vector<8x9xf32> to vector<8x1xf32>
    %925 = vector.broadcast %924 : vector<8x1xf32> to vector<8x128xf32>
    %926 = arith.mulf %890, %925 : vector<8x128xf32>
    %927 = arith.addf %923, %926 : vector<8x128xf32>
    %c127_i32_296 = arith.constant 127 : i32
    %928 = tpu.dynamic_rotate %890 by %c127_i32_296 dim 1 : vector<8x128xf32>, i32 -> vector<8x128xf32>
    %c5_297 = arith.constant 5 : index
    %c0_298 = arith.constant 0 : index
    %c0_299 = arith.constant 0 : index
    %929 = vector.load %arg6[%c5_297, %c0_298, %c0_299] : memref<18x8x128xf32, #tpu.memory_space<vmem>>, vector<1x8x128xf32>
    %930 = vector.shape_cast %929 : vector<1x8x128xf32> to vector<8x128xf32>
    %931 = arith.mulf %928, %930 : vector<8x128xf32>
    %932 = vector.extract_strided_slice %892 {offsets = [0, 5], sizes = [8, 1], strides = [1, 1]} : vector<8x9xf32> to vector<8x1xf32>
    %933 = vector.broadcast %932 : vector<8x1xf32> to vector<8x128xf32>
    %934 = arith.mulf %931, %933 : vector<8x128xf32>
    %935 = arith.addf %927, %934 : vector<8x128xf32>
    %c121_i32_300 = arith.constant 121 : i32
    %936 = tpu.dynamic_rotate %890 by %c121_i32_300 dim 1 : vector<8x128xf32>, i32 -> vector<8x128xf32>
    %c6_301 = arith.constant 6 : index
    %c0_302 = arith.constant 0 : index
    %c0_303 = arith.constant 0 : index
    %937 = vector.load %arg6[%c6_301, %c0_302, %c0_303] : memref<18x8x128xf32, #tpu.memory_space<vmem>>, vector<1x8x128xf32>
    %938 = vector.shape_cast %937 : vector<1x8x128xf32> to vector<8x128xf32>
    %939 = arith.mulf %936, %938 : vector<8x128xf32>
    %940 = vector.extract_strided_slice %892 {offsets = [0, 6], sizes = [8, 1], strides = [1, 1]} : vector<8x9xf32> to vector<8x1xf32>
    %941 = vector.broadcast %940 : vector<8x1xf32> to vector<8x128xf32>
    %942 = arith.mulf %939, %941 : vector<8x128xf32>
    %943 = arith.addf %935, %942 : vector<8x128xf32>
    %c120_i32_304 = arith.constant 120 : i32
    %944 = tpu.dynamic_rotate %890 by %c120_i32_304 dim 1 : vector<8x128xf32>, i32 -> vector<8x128xf32>
    %c7_305 = arith.constant 7 : index
    %c0_306 = arith.constant 0 : index
    %c0_307 = arith.constant 0 : index
    %945 = vector.load %arg6[%c7_305, %c0_306, %c0_307] : memref<18x8x128xf32, #tpu.memory_space<vmem>>, vector<1x8x128xf32>
    %946 = vector.shape_cast %945 : vector<1x8x128xf32> to vector<8x128xf32>
    %947 = arith.mulf %944, %946 : vector<8x128xf32>
    %948 = vector.extract_strided_slice %892 {offsets = [0, 7], sizes = [8, 1], strides = [1, 1]} : vector<8x9xf32> to vector<8x1xf32>
    %949 = vector.broadcast %948 : vector<8x1xf32> to vector<8x128xf32>
    %950 = arith.mulf %947, %949 : vector<8x128xf32>
    %951 = arith.addf %943, %950 : vector<8x128xf32>
    %c119_i32_308 = arith.constant 119 : i32
    %952 = tpu.dynamic_rotate %890 by %c119_i32_308 dim 1 : vector<8x128xf32>, i32 -> vector<8x128xf32>
    %c8_309 = arith.constant 8 : index
    %c0_310 = arith.constant 0 : index
    %c0_311 = arith.constant 0 : index
    %953 = vector.load %arg6[%c8_309, %c0_310, %c0_311] : memref<18x8x128xf32, #tpu.memory_space<vmem>>, vector<1x8x128xf32>
    %954 = vector.shape_cast %953 : vector<1x8x128xf32> to vector<8x128xf32>
    %955 = arith.mulf %952, %954 : vector<8x128xf32>
    %956 = vector.extract_strided_slice %892 {offsets = [0, 8], sizes = [8, 1], strides = [1, 1]} : vector<8x9xf32> to vector<8x1xf32>
    %957 = vector.broadcast %956 : vector<8x1xf32> to vector<8x128xf32>
    %958 = arith.mulf %955, %957 : vector<8x128xf32>
    %959 = arith.addf %951, %958 : vector<8x128xf32>
    %c8_312 = arith.constant 8 : index
    %c0_313 = arith.constant 0 : index
    %c0_314 = arith.constant 0 : index
    %960 = vector.load %arg2[%c8_312, %c0_313, %c0_314] : memref<13x8x8xf32, #tpu.memory_space<vmem>>, vector<1x8x8xf32>
    %961 = vector.shape_cast %960 : vector<1x8x8xf32> to vector<8x8xf32>
    %962 = vector.extract_strided_slice %961 {offsets = [0, 0], sizes = [8, 1], strides = [1, 1]} : vector<8x8xf32> to vector<8x1xf32>
    %963 = vector.extract_strided_slice %959 {offsets = [0, 0], sizes = [1, 128], strides = [1, 1]} : vector<8x128xf32> to vector<1x128xf32>
    %964 = vector.broadcast %962 : vector<8x1xf32> to vector<8x128xf32>
    %965 = vector.broadcast %963 : vector<1x128xf32> to vector<8x128xf32>
    %966 = arith.mulf %964, %965 : vector<8x128xf32>
    %967 = vector.extract_strided_slice %961 {offsets = [0, 1], sizes = [8, 1], strides = [1, 1]} : vector<8x8xf32> to vector<8x1xf32>
    %968 = vector.extract_strided_slice %959 {offsets = [1, 0], sizes = [1, 128], strides = [1, 1]} : vector<8x128xf32> to vector<1x128xf32>
    %969 = vector.broadcast %967 : vector<8x1xf32> to vector<8x128xf32>
    %970 = vector.broadcast %968 : vector<1x128xf32> to vector<8x128xf32>
    %971 = arith.mulf %969, %970 : vector<8x128xf32>
    %972 = arith.addf %966, %971 : vector<8x128xf32>
    %973 = vector.extract_strided_slice %961 {offsets = [0, 2], sizes = [8, 1], strides = [1, 1]} : vector<8x8xf32> to vector<8x1xf32>
    %974 = vector.extract_strided_slice %959 {offsets = [2, 0], sizes = [1, 128], strides = [1, 1]} : vector<8x128xf32> to vector<1x128xf32>
    %975 = vector.broadcast %973 : vector<8x1xf32> to vector<8x128xf32>
    %976 = vector.broadcast %974 : vector<1x128xf32> to vector<8x128xf32>
    %977 = arith.mulf %975, %976 : vector<8x128xf32>
    %978 = arith.addf %972, %977 : vector<8x128xf32>
    %979 = vector.extract_strided_slice %961 {offsets = [0, 3], sizes = [8, 1], strides = [1, 1]} : vector<8x8xf32> to vector<8x1xf32>
    %980 = vector.extract_strided_slice %959 {offsets = [3, 0], sizes = [1, 128], strides = [1, 1]} : vector<8x128xf32> to vector<1x128xf32>
    %981 = vector.broadcast %979 : vector<8x1xf32> to vector<8x128xf32>
    %982 = vector.broadcast %980 : vector<1x128xf32> to vector<8x128xf32>
    %983 = arith.mulf %981, %982 : vector<8x128xf32>
    %984 = arith.addf %978, %983 : vector<8x128xf32>
    %985 = vector.extract_strided_slice %961 {offsets = [0, 4], sizes = [8, 1], strides = [1, 1]} : vector<8x8xf32> to vector<8x1xf32>
    %986 = vector.extract_strided_slice %959 {offsets = [4, 0], sizes = [1, 128], strides = [1, 1]} : vector<8x128xf32> to vector<1x128xf32>
    %987 = vector.broadcast %985 : vector<8x1xf32> to vector<8x128xf32>
    %988 = vector.broadcast %986 : vector<1x128xf32> to vector<8x128xf32>
    %989 = arith.mulf %987, %988 : vector<8x128xf32>
    %990 = arith.addf %984, %989 : vector<8x128xf32>
    %991 = vector.extract_strided_slice %961 {offsets = [0, 5], sizes = [8, 1], strides = [1, 1]} : vector<8x8xf32> to vector<8x1xf32>
    %992 = vector.extract_strided_slice %959 {offsets = [5, 0], sizes = [1, 128], strides = [1, 1]} : vector<8x128xf32> to vector<1x128xf32>
    %993 = vector.broadcast %991 : vector<8x1xf32> to vector<8x128xf32>
    %994 = vector.broadcast %992 : vector<1x128xf32> to vector<8x128xf32>
    %995 = arith.mulf %993, %994 : vector<8x128xf32>
    %996 = arith.addf %990, %995 : vector<8x128xf32>
    %997 = vector.extract_strided_slice %961 {offsets = [0, 6], sizes = [8, 1], strides = [1, 1]} : vector<8x8xf32> to vector<8x1xf32>
    %998 = vector.extract_strided_slice %959 {offsets = [6, 0], sizes = [1, 128], strides = [1, 1]} : vector<8x128xf32> to vector<1x128xf32>
    %999 = vector.broadcast %997 : vector<8x1xf32> to vector<8x128xf32>
    %1000 = vector.broadcast %998 : vector<1x128xf32> to vector<8x128xf32>
    %1001 = arith.mulf %999, %1000 : vector<8x128xf32>
    %1002 = arith.addf %996, %1001 : vector<8x128xf32>
    %1003 = vector.extract_strided_slice %961 {offsets = [0, 7], sizes = [8, 1], strides = [1, 1]} : vector<8x8xf32> to vector<8x1xf32>
    %1004 = vector.extract_strided_slice %959 {offsets = [7, 0], sizes = [1, 128], strides = [1, 1]} : vector<8x128xf32> to vector<1x128xf32>
    %1005 = vector.broadcast %1003 : vector<8x1xf32> to vector<8x128xf32>
    %1006 = vector.broadcast %1004 : vector<1x128xf32> to vector<8x128xf32>
    %1007 = arith.mulf %1005, %1006 : vector<8x128xf32>
    %1008 = arith.addf %1002, %1007 : vector<8x128xf32>
    %c8_315 = arith.constant 8 : index
    %c0_316 = arith.constant 0 : index
    %c0_317 = arith.constant 0 : index
    %1009 = vector.load %arg3[%c8_315, %c0_316, %c0_317] : memref<13x8x1xf32, #tpu.memory_space<vmem>>, vector<1x8x1xf32>
    %1010 = vector.shape_cast %1009 : vector<1x8x1xf32> to vector<8x1xf32>
    %1011 = vector.broadcast %1010 : vector<8x1xf32> to vector<8x128xf32>
    %1012 = arith.mulf %1008, %1011 : vector<8x128xf32>
    %c8_318 = arith.constant 8 : index
    %c0_319 = arith.constant 0 : index
    %c0_320 = arith.constant 0 : index
    %1013 = vector.load %arg4[%c8_318, %c0_319, %c0_320] : memref<13x8x1xf32, #tpu.memory_space<vmem>>, vector<1x8x1xf32>
    %1014 = vector.shape_cast %1013 : vector<1x8x1xf32> to vector<8x1xf32>
    %1015 = vector.broadcast %1014 : vector<8x1xf32> to vector<8x128xf32>
    %1016 = arith.addf %1012, %1015 : vector<8x128xf32>
    %cst_321 = arith.constant 0.000000e+00 : f32
    %1017 = vector.broadcast %cst_321 : f32 to vector<8x128xf32>
    %1018 = arith.maximumf %1016, %1017 : vector<8x128xf32>
    %c7_322 = arith.constant 7 : index
    %c0_323 = arith.constant 0 : index
    %c0_324 = arith.constant 0 : index
    %1019 = vector.load %arg5[%c7_322, %c0_323, %c0_324] : memref<11x8x9xf32, #tpu.memory_space<vmem>>, vector<1x8x9xf32>
    %1020 = vector.shape_cast %1019 : vector<1x8x9xf32> to vector<8x9xf32>
    %c9_i32_325 = arith.constant 9 : i32
    %1021 = tpu.dynamic_rotate %1018 by %c9_i32_325 dim 1 : vector<8x128xf32>, i32 -> vector<8x128xf32>
    %c0_326 = arith.constant 0 : index
    %c0_327 = arith.constant 0 : index
    %c0_328 = arith.constant 0 : index
    %1022 = vector.load %arg6[%c0_326, %c0_327, %c0_328] : memref<18x8x128xf32, #tpu.memory_space<vmem>>, vector<1x8x128xf32>
    %1023 = vector.shape_cast %1022 : vector<1x8x128xf32> to vector<8x128xf32>
    %1024 = arith.mulf %1021, %1023 : vector<8x128xf32>
    %1025 = vector.extract_strided_slice %1020 {offsets = [0, 0], sizes = [8, 1], strides = [1, 1]} : vector<8x9xf32> to vector<8x1xf32>
    %1026 = vector.broadcast %1025 : vector<8x1xf32> to vector<8x128xf32>
    %1027 = arith.mulf %1024, %1026 : vector<8x128xf32>
    %c8_i32_329 = arith.constant 8 : i32
    %1028 = tpu.dynamic_rotate %1018 by %c8_i32_329 dim 1 : vector<8x128xf32>, i32 -> vector<8x128xf32>
    %c1_330 = arith.constant 1 : index
    %c0_331 = arith.constant 0 : index
    %c0_332 = arith.constant 0 : index
    %1029 = vector.load %arg6[%c1_330, %c0_331, %c0_332] : memref<18x8x128xf32, #tpu.memory_space<vmem>>, vector<1x8x128xf32>
    %1030 = vector.shape_cast %1029 : vector<1x8x128xf32> to vector<8x128xf32>
    %1031 = arith.mulf %1028, %1030 : vector<8x128xf32>
    %1032 = vector.extract_strided_slice %1020 {offsets = [0, 1], sizes = [8, 1], strides = [1, 1]} : vector<8x9xf32> to vector<8x1xf32>
    %1033 = vector.broadcast %1032 : vector<8x1xf32> to vector<8x128xf32>
    %1034 = arith.mulf %1031, %1033 : vector<8x128xf32>
    %1035 = arith.addf %1027, %1034 : vector<8x128xf32>
    %c7_i32_333 = arith.constant 7 : i32
    %1036 = tpu.dynamic_rotate %1018 by %c7_i32_333 dim 1 : vector<8x128xf32>, i32 -> vector<8x128xf32>
    %c2_334 = arith.constant 2 : index
    %c0_335 = arith.constant 0 : index
    %c0_336 = arith.constant 0 : index
    %1037 = vector.load %arg6[%c2_334, %c0_335, %c0_336] : memref<18x8x128xf32, #tpu.memory_space<vmem>>, vector<1x8x128xf32>
    %1038 = vector.shape_cast %1037 : vector<1x8x128xf32> to vector<8x128xf32>
    %1039 = arith.mulf %1036, %1038 : vector<8x128xf32>
    %1040 = vector.extract_strided_slice %1020 {offsets = [0, 2], sizes = [8, 1], strides = [1, 1]} : vector<8x9xf32> to vector<8x1xf32>
    %1041 = vector.broadcast %1040 : vector<8x1xf32> to vector<8x128xf32>
    %1042 = arith.mulf %1039, %1041 : vector<8x128xf32>
    %1043 = arith.addf %1035, %1042 : vector<8x128xf32>
    %c1_i32_337 = arith.constant 1 : i32
    %1044 = tpu.dynamic_rotate %1018 by %c1_i32_337 dim 1 : vector<8x128xf32>, i32 -> vector<8x128xf32>
    %c3_338 = arith.constant 3 : index
    %c0_339 = arith.constant 0 : index
    %c0_340 = arith.constant 0 : index
    %1045 = vector.load %arg6[%c3_338, %c0_339, %c0_340] : memref<18x8x128xf32, #tpu.memory_space<vmem>>, vector<1x8x128xf32>
    %1046 = vector.shape_cast %1045 : vector<1x8x128xf32> to vector<8x128xf32>
    %1047 = arith.mulf %1044, %1046 : vector<8x128xf32>
    %1048 = vector.extract_strided_slice %1020 {offsets = [0, 3], sizes = [8, 1], strides = [1, 1]} : vector<8x9xf32> to vector<8x1xf32>
    %1049 = vector.broadcast %1048 : vector<8x1xf32> to vector<8x128xf32>
    %1050 = arith.mulf %1047, %1049 : vector<8x128xf32>
    %1051 = arith.addf %1043, %1050 : vector<8x128xf32>
    %1052 = vector.extract_strided_slice %1020 {offsets = [0, 4], sizes = [8, 1], strides = [1, 1]} : vector<8x9xf32> to vector<8x1xf32>
    %1053 = vector.broadcast %1052 : vector<8x1xf32> to vector<8x128xf32>
    %1054 = arith.mulf %1018, %1053 : vector<8x128xf32>
    %1055 = arith.addf %1051, %1054 : vector<8x128xf32>
    %c127_i32_341 = arith.constant 127 : i32
    %1056 = tpu.dynamic_rotate %1018 by %c127_i32_341 dim 1 : vector<8x128xf32>, i32 -> vector<8x128xf32>
    %c5_342 = arith.constant 5 : index
    %c0_343 = arith.constant 0 : index
    %c0_344 = arith.constant 0 : index
    %1057 = vector.load %arg6[%c5_342, %c0_343, %c0_344] : memref<18x8x128xf32, #tpu.memory_space<vmem>>, vector<1x8x128xf32>
    %1058 = vector.shape_cast %1057 : vector<1x8x128xf32> to vector<8x128xf32>
    %1059 = arith.mulf %1056, %1058 : vector<8x128xf32>
    %1060 = vector.extract_strided_slice %1020 {offsets = [0, 5], sizes = [8, 1], strides = [1, 1]} : vector<8x9xf32> to vector<8x1xf32>
    %1061 = vector.broadcast %1060 : vector<8x1xf32> to vector<8x128xf32>
    %1062 = arith.mulf %1059, %1061 : vector<8x128xf32>
    %1063 = arith.addf %1055, %1062 : vector<8x128xf32>
    %c121_i32_345 = arith.constant 121 : i32
    %1064 = tpu.dynamic_rotate %1018 by %c121_i32_345 dim 1 : vector<8x128xf32>, i32 -> vector<8x128xf32>
    %c6_346 = arith.constant 6 : index
    %c0_347 = arith.constant 0 : index
    %c0_348 = arith.constant 0 : index
    %1065 = vector.load %arg6[%c6_346, %c0_347, %c0_348] : memref<18x8x128xf32, #tpu.memory_space<vmem>>, vector<1x8x128xf32>
    %1066 = vector.shape_cast %1065 : vector<1x8x128xf32> to vector<8x128xf32>
    %1067 = arith.mulf %1064, %1066 : vector<8x128xf32>
    %1068 = vector.extract_strided_slice %1020 {offsets = [0, 6], sizes = [8, 1], strides = [1, 1]} : vector<8x9xf32> to vector<8x1xf32>
    %1069 = vector.broadcast %1068 : vector<8x1xf32> to vector<8x128xf32>
    %1070 = arith.mulf %1067, %1069 : vector<8x128xf32>
    %1071 = arith.addf %1063, %1070 : vector<8x128xf32>
    %c120_i32_349 = arith.constant 120 : i32
    %1072 = tpu.dynamic_rotate %1018 by %c120_i32_349 dim 1 : vector<8x128xf32>, i32 -> vector<8x128xf32>
    %c7_350 = arith.constant 7 : index
    %c0_351 = arith.constant 0 : index
    %c0_352 = arith.constant 0 : index
    %1073 = vector.load %arg6[%c7_350, %c0_351, %c0_352] : memref<18x8x128xf32, #tpu.memory_space<vmem>>, vector<1x8x128xf32>
    %1074 = vector.shape_cast %1073 : vector<1x8x128xf32> to vector<8x128xf32>
    %1075 = arith.mulf %1072, %1074 : vector<8x128xf32>
    %1076 = vector.extract_strided_slice %1020 {offsets = [0, 7], sizes = [8, 1], strides = [1, 1]} : vector<8x9xf32> to vector<8x1xf32>
    %1077 = vector.broadcast %1076 : vector<8x1xf32> to vector<8x128xf32>
    %1078 = arith.mulf %1075, %1077 : vector<8x128xf32>
    %1079 = arith.addf %1071, %1078 : vector<8x128xf32>
    %c119_i32_353 = arith.constant 119 : i32
    %1080 = tpu.dynamic_rotate %1018 by %c119_i32_353 dim 1 : vector<8x128xf32>, i32 -> vector<8x128xf32>
    %c8_354 = arith.constant 8 : index
    %c0_355 = arith.constant 0 : index
    %c0_356 = arith.constant 0 : index
    %1081 = vector.load %arg6[%c8_354, %c0_355, %c0_356] : memref<18x8x128xf32, #tpu.memory_space<vmem>>, vector<1x8x128xf32>
    %1082 = vector.shape_cast %1081 : vector<1x8x128xf32> to vector<8x128xf32>
    %1083 = arith.mulf %1080, %1082 : vector<8x128xf32>
    %1084 = vector.extract_strided_slice %1020 {offsets = [0, 8], sizes = [8, 1], strides = [1, 1]} : vector<8x9xf32> to vector<8x1xf32>
    %1085 = vector.broadcast %1084 : vector<8x1xf32> to vector<8x128xf32>
    %1086 = arith.mulf %1083, %1085 : vector<8x128xf32>
    %1087 = arith.addf %1079, %1086 : vector<8x128xf32>
    %c9 = arith.constant 9 : index
    %c0_357 = arith.constant 0 : index
    %c0_358 = arith.constant 0 : index
    %1088 = vector.load %arg2[%c9, %c0_357, %c0_358] : memref<13x8x8xf32, #tpu.memory_space<vmem>>, vector<1x8x8xf32>
    %1089 = vector.shape_cast %1088 : vector<1x8x8xf32> to vector<8x8xf32>
    %1090 = vector.extract_strided_slice %1089 {offsets = [0, 0], sizes = [8, 1], strides = [1, 1]} : vector<8x8xf32> to vector<8x1xf32>
    %1091 = vector.extract_strided_slice %1087 {offsets = [0, 0], sizes = [1, 128], strides = [1, 1]} : vector<8x128xf32> to vector<1x128xf32>
    %1092 = vector.broadcast %1090 : vector<8x1xf32> to vector<8x128xf32>
    %1093 = vector.broadcast %1091 : vector<1x128xf32> to vector<8x128xf32>
    %1094 = arith.mulf %1092, %1093 : vector<8x128xf32>
    %1095 = vector.extract_strided_slice %1089 {offsets = [0, 1], sizes = [8, 1], strides = [1, 1]} : vector<8x8xf32> to vector<8x1xf32>
    %1096 = vector.extract_strided_slice %1087 {offsets = [1, 0], sizes = [1, 128], strides = [1, 1]} : vector<8x128xf32> to vector<1x128xf32>
    %1097 = vector.broadcast %1095 : vector<8x1xf32> to vector<8x128xf32>
    %1098 = vector.broadcast %1096 : vector<1x128xf32> to vector<8x128xf32>
    %1099 = arith.mulf %1097, %1098 : vector<8x128xf32>
    %1100 = arith.addf %1094, %1099 : vector<8x128xf32>
    %1101 = vector.extract_strided_slice %1089 {offsets = [0, 2], sizes = [8, 1], strides = [1, 1]} : vector<8x8xf32> to vector<8x1xf32>
    %1102 = vector.extract_strided_slice %1087 {offsets = [2, 0], sizes = [1, 128], strides = [1, 1]} : vector<8x128xf32> to vector<1x128xf32>
    %1103 = vector.broadcast %1101 : vector<8x1xf32> to vector<8x128xf32>
    %1104 = vector.broadcast %1102 : vector<1x128xf32> to vector<8x128xf32>
    %1105 = arith.mulf %1103, %1104 : vector<8x128xf32>
    %1106 = arith.addf %1100, %1105 : vector<8x128xf32>
    %1107 = vector.extract_strided_slice %1089 {offsets = [0, 3], sizes = [8, 1], strides = [1, 1]} : vector<8x8xf32> to vector<8x1xf32>
    %1108 = vector.extract_strided_slice %1087 {offsets = [3, 0], sizes = [1, 128], strides = [1, 1]} : vector<8x128xf32> to vector<1x128xf32>
    %1109 = vector.broadcast %1107 : vector<8x1xf32> to vector<8x128xf32>
    %1110 = vector.broadcast %1108 : vector<1x128xf32> to vector<8x128xf32>
    %1111 = arith.mulf %1109, %1110 : vector<8x128xf32>
    %1112 = arith.addf %1106, %1111 : vector<8x128xf32>
    %1113 = vector.extract_strided_slice %1089 {offsets = [0, 4], sizes = [8, 1], strides = [1, 1]} : vector<8x8xf32> to vector<8x1xf32>
    %1114 = vector.extract_strided_slice %1087 {offsets = [4, 0], sizes = [1, 128], strides = [1, 1]} : vector<8x128xf32> to vector<1x128xf32>
    %1115 = vector.broadcast %1113 : vector<8x1xf32> to vector<8x128xf32>
    %1116 = vector.broadcast %1114 : vector<1x128xf32> to vector<8x128xf32>
    %1117 = arith.mulf %1115, %1116 : vector<8x128xf32>
    %1118 = arith.addf %1112, %1117 : vector<8x128xf32>
    %1119 = vector.extract_strided_slice %1089 {offsets = [0, 5], sizes = [8, 1], strides = [1, 1]} : vector<8x8xf32> to vector<8x1xf32>
    %1120 = vector.extract_strided_slice %1087 {offsets = [5, 0], sizes = [1, 128], strides = [1, 1]} : vector<8x128xf32> to vector<1x128xf32>
    %1121 = vector.broadcast %1119 : vector<8x1xf32> to vector<8x128xf32>
    %1122 = vector.broadcast %1120 : vector<1x128xf32> to vector<8x128xf32>
    %1123 = arith.mulf %1121, %1122 : vector<8x128xf32>
    %1124 = arith.addf %1118, %1123 : vector<8x128xf32>
    %1125 = vector.extract_strided_slice %1089 {offsets = [0, 6], sizes = [8, 1], strides = [1, 1]} : vector<8x8xf32> to vector<8x1xf32>
    %1126 = vector.extract_strided_slice %1087 {offsets = [6, 0], sizes = [1, 128], strides = [1, 1]} : vector<8x128xf32> to vector<1x128xf32>
    %1127 = vector.broadcast %1125 : vector<8x1xf32> to vector<8x128xf32>
    %1128 = vector.broadcast %1126 : vector<1x128xf32> to vector<8x128xf32>
    %1129 = arith.mulf %1127, %1128 : vector<8x128xf32>
    %1130 = arith.addf %1124, %1129 : vector<8x128xf32>
    %1131 = vector.extract_strided_slice %1089 {offsets = [0, 7], sizes = [8, 1], strides = [1, 1]} : vector<8x8xf32> to vector<8x1xf32>
    %1132 = vector.extract_strided_slice %1087 {offsets = [7, 0], sizes = [1, 128], strides = [1, 1]} : vector<8x128xf32> to vector<1x128xf32>
    %1133 = vector.broadcast %1131 : vector<8x1xf32> to vector<8x128xf32>
    %1134 = vector.broadcast %1132 : vector<1x128xf32> to vector<8x128xf32>
    %1135 = arith.mulf %1133, %1134 : vector<8x128xf32>
    %1136 = arith.addf %1130, %1135 : vector<8x128xf32>
    %c9_359 = arith.constant 9 : index
    %c0_360 = arith.constant 0 : index
    %c0_361 = arith.constant 0 : index
    %1137 = vector.load %arg3[%c9_359, %c0_360, %c0_361] : memref<13x8x1xf32, #tpu.memory_space<vmem>>, vector<1x8x1xf32>
    %1138 = vector.shape_cast %1137 : vector<1x8x1xf32> to vector<8x1xf32>
    %1139 = vector.broadcast %1138 : vector<8x1xf32> to vector<8x128xf32>
    %1140 = arith.mulf %1136, %1139 : vector<8x128xf32>
    %c9_362 = arith.constant 9 : index
    %c0_363 = arith.constant 0 : index
    %c0_364 = arith.constant 0 : index
    %1141 = vector.load %arg4[%c9_362, %c0_363, %c0_364] : memref<13x8x1xf32, #tpu.memory_space<vmem>>, vector<1x8x1xf32>
    %1142 = vector.shape_cast %1141 : vector<1x8x1xf32> to vector<8x1xf32>
    %1143 = vector.broadcast %1142 : vector<8x1xf32> to vector<8x128xf32>
    %1144 = arith.addf %1140, %1143 : vector<8x128xf32>
    %1145 = arith.addf %888, %1144 : vector<8x128xf32>
    %cst_365 = arith.constant 0.000000e+00 : f32
    %1146 = vector.broadcast %cst_365 : f32 to vector<8x128xf32>
    %1147 = arith.maximumf %119, %1146 : vector<8x128xf32>
    %c8_366 = arith.constant 8 : index
    %c0_367 = arith.constant 0 : index
    %c0_368 = arith.constant 0 : index
    %1148 = vector.load %arg5[%c8_366, %c0_367, %c0_368] : memref<11x8x9xf32, #tpu.memory_space<vmem>>, vector<1x8x9xf32>
    %1149 = vector.shape_cast %1148 : vector<1x8x9xf32> to vector<8x9xf32>
    %c9_i32_369 = arith.constant 9 : i32
    %1150 = tpu.dynamic_rotate %1147 by %c9_i32_369 dim 1 : vector<8x128xf32>, i32 -> vector<8x128xf32>
    %c0_370 = arith.constant 0 : index
    %c0_371 = arith.constant 0 : index
    %c0_372 = arith.constant 0 : index
    %1151 = vector.load %arg6[%c0_370, %c0_371, %c0_372] : memref<18x8x128xf32, #tpu.memory_space<vmem>>, vector<1x8x128xf32>
    %1152 = vector.shape_cast %1151 : vector<1x8x128xf32> to vector<8x128xf32>
    %1153 = arith.mulf %1150, %1152 : vector<8x128xf32>
    %1154 = vector.extract_strided_slice %1149 {offsets = [0, 0], sizes = [8, 1], strides = [1, 1]} : vector<8x9xf32> to vector<8x1xf32>
    %1155 = vector.broadcast %1154 : vector<8x1xf32> to vector<8x128xf32>
    %1156 = arith.mulf %1153, %1155 : vector<8x128xf32>
    %c8_i32_373 = arith.constant 8 : i32
    %1157 = tpu.dynamic_rotate %1147 by %c8_i32_373 dim 1 : vector<8x128xf32>, i32 -> vector<8x128xf32>
    %c1_374 = arith.constant 1 : index
    %c0_375 = arith.constant 0 : index
    %c0_376 = arith.constant 0 : index
    %1158 = vector.load %arg6[%c1_374, %c0_375, %c0_376] : memref<18x8x128xf32, #tpu.memory_space<vmem>>, vector<1x8x128xf32>
    %1159 = vector.shape_cast %1158 : vector<1x8x128xf32> to vector<8x128xf32>
    %1160 = arith.mulf %1157, %1159 : vector<8x128xf32>
    %1161 = vector.extract_strided_slice %1149 {offsets = [0, 1], sizes = [8, 1], strides = [1, 1]} : vector<8x9xf32> to vector<8x1xf32>
    %1162 = vector.broadcast %1161 : vector<8x1xf32> to vector<8x128xf32>
    %1163 = arith.mulf %1160, %1162 : vector<8x128xf32>
    %1164 = arith.addf %1156, %1163 : vector<8x128xf32>
    %c7_i32_377 = arith.constant 7 : i32
    %1165 = tpu.dynamic_rotate %1147 by %c7_i32_377 dim 1 : vector<8x128xf32>, i32 -> vector<8x128xf32>
    %c2_378 = arith.constant 2 : index
    %c0_379 = arith.constant 0 : index
    %c0_380 = arith.constant 0 : index
    %1166 = vector.load %arg6[%c2_378, %c0_379, %c0_380] : memref<18x8x128xf32, #tpu.memory_space<vmem>>, vector<1x8x128xf32>
    %1167 = vector.shape_cast %1166 : vector<1x8x128xf32> to vector<8x128xf32>
    %1168 = arith.mulf %1165, %1167 : vector<8x128xf32>
    %1169 = vector.extract_strided_slice %1149 {offsets = [0, 2], sizes = [8, 1], strides = [1, 1]} : vector<8x9xf32> to vector<8x1xf32>
    %1170 = vector.broadcast %1169 : vector<8x1xf32> to vector<8x128xf32>
    %1171 = arith.mulf %1168, %1170 : vector<8x128xf32>
    %1172 = arith.addf %1164, %1171 : vector<8x128xf32>
    %c1_i32_381 = arith.constant 1 : i32
    %1173 = tpu.dynamic_rotate %1147 by %c1_i32_381 dim 1 : vector<8x128xf32>, i32 -> vector<8x128xf32>
    %c3_382 = arith.constant 3 : index
    %c0_383 = arith.constant 0 : index
    %c0_384 = arith.constant 0 : index
    %1174 = vector.load %arg6[%c3_382, %c0_383, %c0_384] : memref<18x8x128xf32, #tpu.memory_space<vmem>>, vector<1x8x128xf32>
    %1175 = vector.shape_cast %1174 : vector<1x8x128xf32> to vector<8x128xf32>
    %1176 = arith.mulf %1173, %1175 : vector<8x128xf32>
    %1177 = vector.extract_strided_slice %1149 {offsets = [0, 3], sizes = [8, 1], strides = [1, 1]} : vector<8x9xf32> to vector<8x1xf32>
    %1178 = vector.broadcast %1177 : vector<8x1xf32> to vector<8x128xf32>
    %1179 = arith.mulf %1176, %1178 : vector<8x128xf32>
    %1180 = arith.addf %1172, %1179 : vector<8x128xf32>
    %1181 = vector.extract_strided_slice %1149 {offsets = [0, 4], sizes = [8, 1], strides = [1, 1]} : vector<8x9xf32> to vector<8x1xf32>
    %1182 = vector.broadcast %1181 : vector<8x1xf32> to vector<8x128xf32>
    %1183 = arith.mulf %1147, %1182 : vector<8x128xf32>
    %1184 = arith.addf %1180, %1183 : vector<8x128xf32>
    %c127_i32_385 = arith.constant 127 : i32
    %1185 = tpu.dynamic_rotate %1147 by %c127_i32_385 dim 1 : vector<8x128xf32>, i32 -> vector<8x128xf32>
    %c5_386 = arith.constant 5 : index
    %c0_387 = arith.constant 0 : index
    %c0_388 = arith.constant 0 : index
    %1186 = vector.load %arg6[%c5_386, %c0_387, %c0_388] : memref<18x8x128xf32, #tpu.memory_space<vmem>>, vector<1x8x128xf32>
    %1187 = vector.shape_cast %1186 : vector<1x8x128xf32> to vector<8x128xf32>
    %1188 = arith.mulf %1185, %1187 : vector<8x128xf32>
    %1189 = vector.extract_strided_slice %1149 {offsets = [0, 5], sizes = [8, 1], strides = [1, 1]} : vector<8x9xf32> to vector<8x1xf32>
    %1190 = vector.broadcast %1189 : vector<8x1xf32> to vector<8x128xf32>
    %1191 = arith.mulf %1188, %1190 : vector<8x128xf32>
    %1192 = arith.addf %1184, %1191 : vector<8x128xf32>
    %c121_i32_389 = arith.constant 121 : i32
    %1193 = tpu.dynamic_rotate %1147 by %c121_i32_389 dim 1 : vector<8x128xf32>, i32 -> vector<8x128xf32>
    %c6_390 = arith.constant 6 : index
    %c0_391 = arith.constant 0 : index
    %c0_392 = arith.constant 0 : index
    %1194 = vector.load %arg6[%c6_390, %c0_391, %c0_392] : memref<18x8x128xf32, #tpu.memory_space<vmem>>, vector<1x8x128xf32>
    %1195 = vector.shape_cast %1194 : vector<1x8x128xf32> to vector<8x128xf32>
    %1196 = arith.mulf %1193, %1195 : vector<8x128xf32>
    %1197 = vector.extract_strided_slice %1149 {offsets = [0, 6], sizes = [8, 1], strides = [1, 1]} : vector<8x9xf32> to vector<8x1xf32>
    %1198 = vector.broadcast %1197 : vector<8x1xf32> to vector<8x128xf32>
    %1199 = arith.mulf %1196, %1198 : vector<8x128xf32>
    %1200 = arith.addf %1192, %1199 : vector<8x128xf32>
    %c120_i32_393 = arith.constant 120 : i32
    %1201 = tpu.dynamic_rotate %1147 by %c120_i32_393 dim 1 : vector<8x128xf32>, i32 -> vector<8x128xf32>
    %c7_394 = arith.constant 7 : index
    %c0_395 = arith.constant 0 : index
    %c0_396 = arith.constant 0 : index
    %1202 = vector.load %arg6[%c7_394, %c0_395, %c0_396] : memref<18x8x128xf32, #tpu.memory_space<vmem>>, vector<1x8x128xf32>
    %1203 = vector.shape_cast %1202 : vector<1x8x128xf32> to vector<8x128xf32>
    %1204 = arith.mulf %1201, %1203 : vector<8x128xf32>
    %1205 = vector.extract_strided_slice %1149 {offsets = [0, 7], sizes = [8, 1], strides = [1, 1]} : vector<8x9xf32> to vector<8x1xf32>
    %1206 = vector.broadcast %1205 : vector<8x1xf32> to vector<8x128xf32>
    %1207 = arith.mulf %1204, %1206 : vector<8x128xf32>
    %1208 = arith.addf %1200, %1207 : vector<8x128xf32>
    %c119_i32_397 = arith.constant 119 : i32
    %1209 = tpu.dynamic_rotate %1147 by %c119_i32_397 dim 1 : vector<8x128xf32>, i32 -> vector<8x128xf32>
    %c8_398 = arith.constant 8 : index
    %c0_399 = arith.constant 0 : index
    %c0_400 = arith.constant 0 : index
    %1210 = vector.load %arg6[%c8_398, %c0_399, %c0_400] : memref<18x8x128xf32, #tpu.memory_space<vmem>>, vector<1x8x128xf32>
    %1211 = vector.shape_cast %1210 : vector<1x8x128xf32> to vector<8x128xf32>
    %1212 = arith.mulf %1209, %1211 : vector<8x128xf32>
    %1213 = vector.extract_strided_slice %1149 {offsets = [0, 8], sizes = [8, 1], strides = [1, 1]} : vector<8x9xf32> to vector<8x1xf32>
    %1214 = vector.broadcast %1213 : vector<8x1xf32> to vector<8x128xf32>
    %1215 = arith.mulf %1212, %1214 : vector<8x128xf32>
    %1216 = arith.addf %1208, %1215 : vector<8x128xf32>
    %c10 = arith.constant 10 : index
    %c0_401 = arith.constant 0 : index
    %c0_402 = arith.constant 0 : index
    %1217 = vector.load %arg2[%c10, %c0_401, %c0_402] : memref<13x8x8xf32, #tpu.memory_space<vmem>>, vector<1x8x8xf32>
    %1218 = vector.shape_cast %1217 : vector<1x8x8xf32> to vector<8x8xf32>
    %1219 = vector.extract_strided_slice %1218 {offsets = [0, 0], sizes = [8, 1], strides = [1, 1]} : vector<8x8xf32> to vector<8x1xf32>
    %1220 = vector.extract_strided_slice %1216 {offsets = [0, 0], sizes = [1, 128], strides = [1, 1]} : vector<8x128xf32> to vector<1x128xf32>
    %1221 = vector.broadcast %1219 : vector<8x1xf32> to vector<8x128xf32>
    %1222 = vector.broadcast %1220 : vector<1x128xf32> to vector<8x128xf32>
    %1223 = arith.mulf %1221, %1222 : vector<8x128xf32>
    %1224 = vector.extract_strided_slice %1218 {offsets = [0, 1], sizes = [8, 1], strides = [1, 1]} : vector<8x8xf32> to vector<8x1xf32>
    %1225 = vector.extract_strided_slice %1216 {offsets = [1, 0], sizes = [1, 128], strides = [1, 1]} : vector<8x128xf32> to vector<1x128xf32>
    %1226 = vector.broadcast %1224 : vector<8x1xf32> to vector<8x128xf32>
    %1227 = vector.broadcast %1225 : vector<1x128xf32> to vector<8x128xf32>
    %1228 = arith.mulf %1226, %1227 : vector<8x128xf32>
    %1229 = arith.addf %1223, %1228 : vector<8x128xf32>
    %1230 = vector.extract_strided_slice %1218 {offsets = [0, 2], sizes = [8, 1], strides = [1, 1]} : vector<8x8xf32> to vector<8x1xf32>
    %1231 = vector.extract_strided_slice %1216 {offsets = [2, 0], sizes = [1, 128], strides = [1, 1]} : vector<8x128xf32> to vector<1x128xf32>
    %1232 = vector.broadcast %1230 : vector<8x1xf32> to vector<8x128xf32>
    %1233 = vector.broadcast %1231 : vector<1x128xf32> to vector<8x128xf32>
    %1234 = arith.mulf %1232, %1233 : vector<8x128xf32>
    %1235 = arith.addf %1229, %1234 : vector<8x128xf32>
    %1236 = vector.extract_strided_slice %1218 {offsets = [0, 3], sizes = [8, 1], strides = [1, 1]} : vector<8x8xf32> to vector<8x1xf32>
    %1237 = vector.extract_strided_slice %1216 {offsets = [3, 0], sizes = [1, 128], strides = [1, 1]} : vector<8x128xf32> to vector<1x128xf32>
    %1238 = vector.broadcast %1236 : vector<8x1xf32> to vector<8x128xf32>
    %1239 = vector.broadcast %1237 : vector<1x128xf32> to vector<8x128xf32>
    %1240 = arith.mulf %1238, %1239 : vector<8x128xf32>
    %1241 = arith.addf %1235, %1240 : vector<8x128xf32>
    %1242 = vector.extract_strided_slice %1218 {offsets = [0, 4], sizes = [8, 1], strides = [1, 1]} : vector<8x8xf32> to vector<8x1xf32>
    %1243 = vector.extract_strided_slice %1216 {offsets = [4, 0], sizes = [1, 128], strides = [1, 1]} : vector<8x128xf32> to vector<1x128xf32>
    %1244 = vector.broadcast %1242 : vector<8x1xf32> to vector<8x128xf32>
    %1245 = vector.broadcast %1243 : vector<1x128xf32> to vector<8x128xf32>
    %1246 = arith.mulf %1244, %1245 : vector<8x128xf32>
    %1247 = arith.addf %1241, %1246 : vector<8x128xf32>
    %1248 = vector.extract_strided_slice %1218 {offsets = [0, 5], sizes = [8, 1], strides = [1, 1]} : vector<8x8xf32> to vector<8x1xf32>
    %1249 = vector.extract_strided_slice %1216 {offsets = [5, 0], sizes = [1, 128], strides = [1, 1]} : vector<8x128xf32> to vector<1x128xf32>
    %1250 = vector.broadcast %1248 : vector<8x1xf32> to vector<8x128xf32>
    %1251 = vector.broadcast %1249 : vector<1x128xf32> to vector<8x128xf32>
    %1252 = arith.mulf %1250, %1251 : vector<8x128xf32>
    %1253 = arith.addf %1247, %1252 : vector<8x128xf32>
    %1254 = vector.extract_strided_slice %1218 {offsets = [0, 6], sizes = [8, 1], strides = [1, 1]} : vector<8x8xf32> to vector<8x1xf32>
    %1255 = vector.extract_strided_slice %1216 {offsets = [6, 0], sizes = [1, 128], strides = [1, 1]} : vector<8x128xf32> to vector<1x128xf32>
    %1256 = vector.broadcast %1254 : vector<8x1xf32> to vector<8x128xf32>
    %1257 = vector.broadcast %1255 : vector<1x128xf32> to vector<8x128xf32>
    %1258 = arith.mulf %1256, %1257 : vector<8x128xf32>
    %1259 = arith.addf %1253, %1258 : vector<8x128xf32>
    %1260 = vector.extract_strided_slice %1218 {offsets = [0, 7], sizes = [8, 1], strides = [1, 1]} : vector<8x8xf32> to vector<8x1xf32>
    %1261 = vector.extract_strided_slice %1216 {offsets = [7, 0], sizes = [1, 128], strides = [1, 1]} : vector<8x128xf32> to vector<1x128xf32>
    %1262 = vector.broadcast %1260 : vector<8x1xf32> to vector<8x128xf32>
    %1263 = vector.broadcast %1261 : vector<1x128xf32> to vector<8x128xf32>
    %1264 = arith.mulf %1262, %1263 : vector<8x128xf32>
    %1265 = arith.addf %1259, %1264 : vector<8x128xf32>
    %c10_403 = arith.constant 10 : index
    %c0_404 = arith.constant 0 : index
    %c0_405 = arith.constant 0 : index
    %1266 = vector.load %arg3[%c10_403, %c0_404, %c0_405] : memref<13x8x1xf32, #tpu.memory_space<vmem>>, vector<1x8x1xf32>
    %1267 = vector.shape_cast %1266 : vector<1x8x1xf32> to vector<8x1xf32>
    %1268 = vector.broadcast %1267 : vector<8x1xf32> to vector<8x128xf32>
    %1269 = arith.mulf %1265, %1268 : vector<8x128xf32>
    %c10_406 = arith.constant 10 : index
    %c0_407 = arith.constant 0 : index
    %c0_408 = arith.constant 0 : index
    %1270 = vector.load %arg4[%c10_406, %c0_407, %c0_408] : memref<13x8x1xf32, #tpu.memory_space<vmem>>, vector<1x8x1xf32>
    %1271 = vector.shape_cast %1270 : vector<1x8x1xf32> to vector<8x1xf32>
    %1272 = vector.broadcast %1271 : vector<8x1xf32> to vector<8x128xf32>
    %1273 = arith.addf %1269, %1272 : vector<8x128xf32>
    %cst_409 = arith.constant 0.000000e+00 : f32
    %1274 = vector.broadcast %cst_409 : f32 to vector<8x128xf32>
    %1275 = arith.maximumf %1273, %1274 : vector<8x128xf32>
    %c9_410 = arith.constant 9 : index
    %c0_411 = arith.constant 0 : index
    %c0_412 = arith.constant 0 : index
    %1276 = vector.load %arg5[%c9_410, %c0_411, %c0_412] : memref<11x8x9xf32, #tpu.memory_space<vmem>>, vector<1x8x9xf32>
    %1277 = vector.shape_cast %1276 : vector<1x8x9xf32> to vector<8x9xf32>
    %c9_i32_413 = arith.constant 9 : i32
    %1278 = tpu.dynamic_rotate %1275 by %c9_i32_413 dim 1 : vector<8x128xf32>, i32 -> vector<8x128xf32>
    %c0_414 = arith.constant 0 : index
    %c0_415 = arith.constant 0 : index
    %c0_416 = arith.constant 0 : index
    %1279 = vector.load %arg6[%c0_414, %c0_415, %c0_416] : memref<18x8x128xf32, #tpu.memory_space<vmem>>, vector<1x8x128xf32>
    %1280 = vector.shape_cast %1279 : vector<1x8x128xf32> to vector<8x128xf32>
    %1281 = arith.mulf %1278, %1280 : vector<8x128xf32>
    %1282 = vector.extract_strided_slice %1277 {offsets = [0, 0], sizes = [8, 1], strides = [1, 1]} : vector<8x9xf32> to vector<8x1xf32>
    %1283 = vector.broadcast %1282 : vector<8x1xf32> to vector<8x128xf32>
    %1284 = arith.mulf %1281, %1283 : vector<8x128xf32>
    %c8_i32_417 = arith.constant 8 : i32
    %1285 = tpu.dynamic_rotate %1275 by %c8_i32_417 dim 1 : vector<8x128xf32>, i32 -> vector<8x128xf32>
    %c1_418 = arith.constant 1 : index
    %c0_419 = arith.constant 0 : index
    %c0_420 = arith.constant 0 : index
    %1286 = vector.load %arg6[%c1_418, %c0_419, %c0_420] : memref<18x8x128xf32, #tpu.memory_space<vmem>>, vector<1x8x128xf32>
    %1287 = vector.shape_cast %1286 : vector<1x8x128xf32> to vector<8x128xf32>
    %1288 = arith.mulf %1285, %1287 : vector<8x128xf32>
    %1289 = vector.extract_strided_slice %1277 {offsets = [0, 1], sizes = [8, 1], strides = [1, 1]} : vector<8x9xf32> to vector<8x1xf32>
    %1290 = vector.broadcast %1289 : vector<8x1xf32> to vector<8x128xf32>
    %1291 = arith.mulf %1288, %1290 : vector<8x128xf32>
    %1292 = arith.addf %1284, %1291 : vector<8x128xf32>
    %c7_i32_421 = arith.constant 7 : i32
    %1293 = tpu.dynamic_rotate %1275 by %c7_i32_421 dim 1 : vector<8x128xf32>, i32 -> vector<8x128xf32>
    %c2_422 = arith.constant 2 : index
    %c0_423 = arith.constant 0 : index
    %c0_424 = arith.constant 0 : index
    %1294 = vector.load %arg6[%c2_422, %c0_423, %c0_424] : memref<18x8x128xf32, #tpu.memory_space<vmem>>, vector<1x8x128xf32>
    %1295 = vector.shape_cast %1294 : vector<1x8x128xf32> to vector<8x128xf32>
    %1296 = arith.mulf %1293, %1295 : vector<8x128xf32>
    %1297 = vector.extract_strided_slice %1277 {offsets = [0, 2], sizes = [8, 1], strides = [1, 1]} : vector<8x9xf32> to vector<8x1xf32>
    %1298 = vector.broadcast %1297 : vector<8x1xf32> to vector<8x128xf32>
    %1299 = arith.mulf %1296, %1298 : vector<8x128xf32>
    %1300 = arith.addf %1292, %1299 : vector<8x128xf32>
    %c1_i32_425 = arith.constant 1 : i32
    %1301 = tpu.dynamic_rotate %1275 by %c1_i32_425 dim 1 : vector<8x128xf32>, i32 -> vector<8x128xf32>
    %c3_426 = arith.constant 3 : index
    %c0_427 = arith.constant 0 : index
    %c0_428 = arith.constant 0 : index
    %1302 = vector.load %arg6[%c3_426, %c0_427, %c0_428] : memref<18x8x128xf32, #tpu.memory_space<vmem>>, vector<1x8x128xf32>
    %1303 = vector.shape_cast %1302 : vector<1x8x128xf32> to vector<8x128xf32>
    %1304 = arith.mulf %1301, %1303 : vector<8x128xf32>
    %1305 = vector.extract_strided_slice %1277 {offsets = [0, 3], sizes = [8, 1], strides = [1, 1]} : vector<8x9xf32> to vector<8x1xf32>
    %1306 = vector.broadcast %1305 : vector<8x1xf32> to vector<8x128xf32>
    %1307 = arith.mulf %1304, %1306 : vector<8x128xf32>
    %1308 = arith.addf %1300, %1307 : vector<8x128xf32>
    %1309 = vector.extract_strided_slice %1277 {offsets = [0, 4], sizes = [8, 1], strides = [1, 1]} : vector<8x9xf32> to vector<8x1xf32>
    %1310 = vector.broadcast %1309 : vector<8x1xf32> to vector<8x128xf32>
    %1311 = arith.mulf %1275, %1310 : vector<8x128xf32>
    %1312 = arith.addf %1308, %1311 : vector<8x128xf32>
    %c127_i32_429 = arith.constant 127 : i32
    %1313 = tpu.dynamic_rotate %1275 by %c127_i32_429 dim 1 : vector<8x128xf32>, i32 -> vector<8x128xf32>
    %c5_430 = arith.constant 5 : index
    %c0_431 = arith.constant 0 : index
    %c0_432 = arith.constant 0 : index
    %1314 = vector.load %arg6[%c5_430, %c0_431, %c0_432] : memref<18x8x128xf32, #tpu.memory_space<vmem>>, vector<1x8x128xf32>
    %1315 = vector.shape_cast %1314 : vector<1x8x128xf32> to vector<8x128xf32>
    %1316 = arith.mulf %1313, %1315 : vector<8x128xf32>
    %1317 = vector.extract_strided_slice %1277 {offsets = [0, 5], sizes = [8, 1], strides = [1, 1]} : vector<8x9xf32> to vector<8x1xf32>
    %1318 = vector.broadcast %1317 : vector<8x1xf32> to vector<8x128xf32>
    %1319 = arith.mulf %1316, %1318 : vector<8x128xf32>
    %1320 = arith.addf %1312, %1319 : vector<8x128xf32>
    %c121_i32_433 = arith.constant 121 : i32
    %1321 = tpu.dynamic_rotate %1275 by %c121_i32_433 dim 1 : vector<8x128xf32>, i32 -> vector<8x128xf32>
    %c6_434 = arith.constant 6 : index
    %c0_435 = arith.constant 0 : index
    %c0_436 = arith.constant 0 : index
    %1322 = vector.load %arg6[%c6_434, %c0_435, %c0_436] : memref<18x8x128xf32, #tpu.memory_space<vmem>>, vector<1x8x128xf32>
    %1323 = vector.shape_cast %1322 : vector<1x8x128xf32> to vector<8x128xf32>
    %1324 = arith.mulf %1321, %1323 : vector<8x128xf32>
    %1325 = vector.extract_strided_slice %1277 {offsets = [0, 6], sizes = [8, 1], strides = [1, 1]} : vector<8x9xf32> to vector<8x1xf32>
    %1326 = vector.broadcast %1325 : vector<8x1xf32> to vector<8x128xf32>
    %1327 = arith.mulf %1324, %1326 : vector<8x128xf32>
    %1328 = arith.addf %1320, %1327 : vector<8x128xf32>
    %c120_i32_437 = arith.constant 120 : i32
    %1329 = tpu.dynamic_rotate %1275 by %c120_i32_437 dim 1 : vector<8x128xf32>, i32 -> vector<8x128xf32>
    %c7_438 = arith.constant 7 : index
    %c0_439 = arith.constant 0 : index
    %c0_440 = arith.constant 0 : index
    %1330 = vector.load %arg6[%c7_438, %c0_439, %c0_440] : memref<18x8x128xf32, #tpu.memory_space<vmem>>, vector<1x8x128xf32>
    %1331 = vector.shape_cast %1330 : vector<1x8x128xf32> to vector<8x128xf32>
    %1332 = arith.mulf %1329, %1331 : vector<8x128xf32>
    %1333 = vector.extract_strided_slice %1277 {offsets = [0, 7], sizes = [8, 1], strides = [1, 1]} : vector<8x9xf32> to vector<8x1xf32>
    %1334 = vector.broadcast %1333 : vector<8x1xf32> to vector<8x128xf32>
    %1335 = arith.mulf %1332, %1334 : vector<8x128xf32>
    %1336 = arith.addf %1328, %1335 : vector<8x128xf32>
    %c119_i32_441 = arith.constant 119 : i32
    %1337 = tpu.dynamic_rotate %1275 by %c119_i32_441 dim 1 : vector<8x128xf32>, i32 -> vector<8x128xf32>
    %c8_442 = arith.constant 8 : index
    %c0_443 = arith.constant 0 : index
    %c0_444 = arith.constant 0 : index
    %1338 = vector.load %arg6[%c8_442, %c0_443, %c0_444] : memref<18x8x128xf32, #tpu.memory_space<vmem>>, vector<1x8x128xf32>
    %1339 = vector.shape_cast %1338 : vector<1x8x128xf32> to vector<8x128xf32>
    %1340 = arith.mulf %1337, %1339 : vector<8x128xf32>
    %1341 = vector.extract_strided_slice %1277 {offsets = [0, 8], sizes = [8, 1], strides = [1, 1]} : vector<8x9xf32> to vector<8x1xf32>
    %1342 = vector.broadcast %1341 : vector<8x1xf32> to vector<8x128xf32>
    %1343 = arith.mulf %1340, %1342 : vector<8x128xf32>
    %1344 = arith.addf %1336, %1343 : vector<8x128xf32>
    %c11 = arith.constant 11 : index
    %c0_445 = arith.constant 0 : index
    %c0_446 = arith.constant 0 : index
    %1345 = vector.load %arg2[%c11, %c0_445, %c0_446] : memref<13x8x8xf32, #tpu.memory_space<vmem>>, vector<1x8x8xf32>
    %1346 = vector.shape_cast %1345 : vector<1x8x8xf32> to vector<8x8xf32>
    %1347 = vector.extract_strided_slice %1346 {offsets = [0, 0], sizes = [8, 1], strides = [1, 1]} : vector<8x8xf32> to vector<8x1xf32>
    %1348 = vector.extract_strided_slice %1344 {offsets = [0, 0], sizes = [1, 128], strides = [1, 1]} : vector<8x128xf32> to vector<1x128xf32>
    %1349 = vector.broadcast %1347 : vector<8x1xf32> to vector<8x128xf32>
    %1350 = vector.broadcast %1348 : vector<1x128xf32> to vector<8x128xf32>
    %1351 = arith.mulf %1349, %1350 : vector<8x128xf32>
    %1352 = vector.extract_strided_slice %1346 {offsets = [0, 1], sizes = [8, 1], strides = [1, 1]} : vector<8x8xf32> to vector<8x1xf32>
    %1353 = vector.extract_strided_slice %1344 {offsets = [1, 0], sizes = [1, 128], strides = [1, 1]} : vector<8x128xf32> to vector<1x128xf32>
    %1354 = vector.broadcast %1352 : vector<8x1xf32> to vector<8x128xf32>
    %1355 = vector.broadcast %1353 : vector<1x128xf32> to vector<8x128xf32>
    %1356 = arith.mulf %1354, %1355 : vector<8x128xf32>
    %1357 = arith.addf %1351, %1356 : vector<8x128xf32>
    %1358 = vector.extract_strided_slice %1346 {offsets = [0, 2], sizes = [8, 1], strides = [1, 1]} : vector<8x8xf32> to vector<8x1xf32>
    %1359 = vector.extract_strided_slice %1344 {offsets = [2, 0], sizes = [1, 128], strides = [1, 1]} : vector<8x128xf32> to vector<1x128xf32>
    %1360 = vector.broadcast %1358 : vector<8x1xf32> to vector<8x128xf32>
    %1361 = vector.broadcast %1359 : vector<1x128xf32> to vector<8x128xf32>
    %1362 = arith.mulf %1360, %1361 : vector<8x128xf32>
    %1363 = arith.addf %1357, %1362 : vector<8x128xf32>
    %1364 = vector.extract_strided_slice %1346 {offsets = [0, 3], sizes = [8, 1], strides = [1, 1]} : vector<8x8xf32> to vector<8x1xf32>
    %1365 = vector.extract_strided_slice %1344 {offsets = [3, 0], sizes = [1, 128], strides = [1, 1]} : vector<8x128xf32> to vector<1x128xf32>
    %1366 = vector.broadcast %1364 : vector<8x1xf32> to vector<8x128xf32>
    %1367 = vector.broadcast %1365 : vector<1x128xf32> to vector<8x128xf32>
    %1368 = arith.mulf %1366, %1367 : vector<8x128xf32>
    %1369 = arith.addf %1363, %1368 : vector<8x128xf32>
    %1370 = vector.extract_strided_slice %1346 {offsets = [0, 4], sizes = [8, 1], strides = [1, 1]} : vector<8x8xf32> to vector<8x1xf32>
    %1371 = vector.extract_strided_slice %1344 {offsets = [4, 0], sizes = [1, 128], strides = [1, 1]} : vector<8x128xf32> to vector<1x128xf32>
    %1372 = vector.broadcast %1370 : vector<8x1xf32> to vector<8x128xf32>
    %1373 = vector.broadcast %1371 : vector<1x128xf32> to vector<8x128xf32>
    %1374 = arith.mulf %1372, %1373 : vector<8x128xf32>
    %1375 = arith.addf %1369, %1374 : vector<8x128xf32>
    %1376 = vector.extract_strided_slice %1346 {offsets = [0, 5], sizes = [8, 1], strides = [1, 1]} : vector<8x8xf32> to vector<8x1xf32>
    %1377 = vector.extract_strided_slice %1344 {offsets = [5, 0], sizes = [1, 128], strides = [1, 1]} : vector<8x128xf32> to vector<1x128xf32>
    %1378 = vector.broadcast %1376 : vector<8x1xf32> to vector<8x128xf32>
    %1379 = vector.broadcast %1377 : vector<1x128xf32> to vector<8x128xf32>
    %1380 = arith.mulf %1378, %1379 : vector<8x128xf32>
    %1381 = arith.addf %1375, %1380 : vector<8x128xf32>
    %1382 = vector.extract_strided_slice %1346 {offsets = [0, 6], sizes = [8, 1], strides = [1, 1]} : vector<8x8xf32> to vector<8x1xf32>
    %1383 = vector.extract_strided_slice %1344 {offsets = [6, 0], sizes = [1, 128], strides = [1, 1]} : vector<8x128xf32> to vector<1x128xf32>
    %1384 = vector.broadcast %1382 : vector<8x1xf32> to vector<8x128xf32>
    %1385 = vector.broadcast %1383 : vector<1x128xf32> to vector<8x128xf32>
    %1386 = arith.mulf %1384, %1385 : vector<8x128xf32>
    %1387 = arith.addf %1381, %1386 : vector<8x128xf32>
    %1388 = vector.extract_strided_slice %1346 {offsets = [0, 7], sizes = [8, 1], strides = [1, 1]} : vector<8x8xf32> to vector<8x1xf32>
    %1389 = vector.extract_strided_slice %1344 {offsets = [7, 0], sizes = [1, 128], strides = [1, 1]} : vector<8x128xf32> to vector<1x128xf32>
    %1390 = vector.broadcast %1388 : vector<8x1xf32> to vector<8x128xf32>
    %1391 = vector.broadcast %1389 : vector<1x128xf32> to vector<8x128xf32>
    %1392 = arith.mulf %1390, %1391 : vector<8x128xf32>
    %1393 = arith.addf %1387, %1392 : vector<8x128xf32>
    %c11_447 = arith.constant 11 : index
    %c0_448 = arith.constant 0 : index
    %c0_449 = arith.constant 0 : index
    %1394 = vector.load %arg3[%c11_447, %c0_448, %c0_449] : memref<13x8x1xf32, #tpu.memory_space<vmem>>, vector<1x8x1xf32>
    %1395 = vector.shape_cast %1394 : vector<1x8x1xf32> to vector<8x1xf32>
    %1396 = vector.broadcast %1395 : vector<8x1xf32> to vector<8x128xf32>
    %1397 = arith.mulf %1393, %1396 : vector<8x128xf32>
    %c11_450 = arith.constant 11 : index
    %c0_451 = arith.constant 0 : index
    %c0_452 = arith.constant 0 : index
    %1398 = vector.load %arg4[%c11_450, %c0_451, %c0_452] : memref<13x8x1xf32, #tpu.memory_space<vmem>>, vector<1x8x1xf32>
    %1399 = vector.shape_cast %1398 : vector<1x8x1xf32> to vector<8x1xf32>
    %1400 = vector.broadcast %1399 : vector<8x1xf32> to vector<8x128xf32>
    %1401 = arith.addf %1397, %1400 : vector<8x128xf32>
    %1402 = arith.addf %1401, %59 : vector<8x128xf32>
    %cst_453 = arith.constant 0.000000e+00 : f32
    %1403 = vector.broadcast %cst_453 : f32 to vector<8x128xf32>
    %1404 = arith.maximumf %632, %1403 : vector<8x128xf32>
    %c10_454 = arith.constant 10 : index
    %c0_455 = arith.constant 0 : index
    %c0_456 = arith.constant 0 : index
    %1405 = vector.load %arg5[%c10_454, %c0_455, %c0_456] : memref<11x8x9xf32, #tpu.memory_space<vmem>>, vector<1x8x9xf32>
    %1406 = vector.shape_cast %1405 : vector<1x8x9xf32> to vector<8x9xf32>
    %c18_i32 = arith.constant 18 : i32
    %1407 = tpu.dynamic_rotate %1404 by %c18_i32 dim 1 : vector<8x128xf32>, i32 -> vector<8x128xf32>
    %c9_457 = arith.constant 9 : index
    %c0_458 = arith.constant 0 : index
    %c0_459 = arith.constant 0 : index
    %1408 = vector.load %arg6[%c9_457, %c0_458, %c0_459] : memref<18x8x128xf32, #tpu.memory_space<vmem>>, vector<1x8x128xf32>
    %1409 = vector.shape_cast %1408 : vector<1x8x128xf32> to vector<8x128xf32>
    %1410 = arith.mulf %1407, %1409 : vector<8x128xf32>
    %1411 = vector.extract_strided_slice %1406 {offsets = [0, 0], sizes = [8, 1], strides = [1, 1]} : vector<8x9xf32> to vector<8x1xf32>
    %1412 = vector.broadcast %1411 : vector<8x1xf32> to vector<8x128xf32>
    %1413 = arith.mulf %1410, %1412 : vector<8x128xf32>
    %c16_i32 = arith.constant 16 : i32
    %1414 = tpu.dynamic_rotate %1404 by %c16_i32 dim 1 : vector<8x128xf32>, i32 -> vector<8x128xf32>
    %c10_460 = arith.constant 10 : index
    %c0_461 = arith.constant 0 : index
    %c0_462 = arith.constant 0 : index
    %1415 = vector.load %arg6[%c10_460, %c0_461, %c0_462] : memref<18x8x128xf32, #tpu.memory_space<vmem>>, vector<1x8x128xf32>
    %1416 = vector.shape_cast %1415 : vector<1x8x128xf32> to vector<8x128xf32>
    %1417 = arith.mulf %1414, %1416 : vector<8x128xf32>
    %1418 = vector.extract_strided_slice %1406 {offsets = [0, 1], sizes = [8, 1], strides = [1, 1]} : vector<8x9xf32> to vector<8x1xf32>
    %1419 = vector.broadcast %1418 : vector<8x1xf32> to vector<8x128xf32>
    %1420 = arith.mulf %1417, %1419 : vector<8x128xf32>
    %1421 = arith.addf %1413, %1420 : vector<8x128xf32>
    %c14_i32 = arith.constant 14 : i32
    %1422 = tpu.dynamic_rotate %1404 by %c14_i32 dim 1 : vector<8x128xf32>, i32 -> vector<8x128xf32>
    %c11_463 = arith.constant 11 : index
    %c0_464 = arith.constant 0 : index
    %c0_465 = arith.constant 0 : index
    %1423 = vector.load %arg6[%c11_463, %c0_464, %c0_465] : memref<18x8x128xf32, #tpu.memory_space<vmem>>, vector<1x8x128xf32>
    %1424 = vector.shape_cast %1423 : vector<1x8x128xf32> to vector<8x128xf32>
    %1425 = arith.mulf %1422, %1424 : vector<8x128xf32>
    %1426 = vector.extract_strided_slice %1406 {offsets = [0, 2], sizes = [8, 1], strides = [1, 1]} : vector<8x9xf32> to vector<8x1xf32>
    %1427 = vector.broadcast %1426 : vector<8x1xf32> to vector<8x128xf32>
    %1428 = arith.mulf %1425, %1427 : vector<8x128xf32>
    %1429 = arith.addf %1421, %1428 : vector<8x128xf32>
    %c2_i32 = arith.constant 2 : i32
    %1430 = tpu.dynamic_rotate %1404 by %c2_i32 dim 1 : vector<8x128xf32>, i32 -> vector<8x128xf32>
    %c12 = arith.constant 12 : index
    %c0_466 = arith.constant 0 : index
    %c0_467 = arith.constant 0 : index
    %1431 = vector.load %arg6[%c12, %c0_466, %c0_467] : memref<18x8x128xf32, #tpu.memory_space<vmem>>, vector<1x8x128xf32>
    %1432 = vector.shape_cast %1431 : vector<1x8x128xf32> to vector<8x128xf32>
    %1433 = arith.mulf %1430, %1432 : vector<8x128xf32>
    %1434 = vector.extract_strided_slice %1406 {offsets = [0, 3], sizes = [8, 1], strides = [1, 1]} : vector<8x9xf32> to vector<8x1xf32>
    %1435 = vector.broadcast %1434 : vector<8x1xf32> to vector<8x128xf32>
    %1436 = arith.mulf %1433, %1435 : vector<8x128xf32>
    %1437 = arith.addf %1429, %1436 : vector<8x128xf32>
    %1438 = vector.extract_strided_slice %1406 {offsets = [0, 4], sizes = [8, 1], strides = [1, 1]} : vector<8x9xf32> to vector<8x1xf32>
    %1439 = vector.broadcast %1438 : vector<8x1xf32> to vector<8x128xf32>
    %1440 = arith.mulf %1404, %1439 : vector<8x128xf32>
    %1441 = arith.addf %1437, %1440 : vector<8x128xf32>
    %c126_i32 = arith.constant 126 : i32
    %1442 = tpu.dynamic_rotate %1404 by %c126_i32 dim 1 : vector<8x128xf32>, i32 -> vector<8x128xf32>
    %c14 = arith.constant 14 : index
    %c0_468 = arith.constant 0 : index
    %c0_469 = arith.constant 0 : index
    %1443 = vector.load %arg6[%c14, %c0_468, %c0_469] : memref<18x8x128xf32, #tpu.memory_space<vmem>>, vector<1x8x128xf32>
    %1444 = vector.shape_cast %1443 : vector<1x8x128xf32> to vector<8x128xf32>
    %1445 = arith.mulf %1442, %1444 : vector<8x128xf32>
    %1446 = vector.extract_strided_slice %1406 {offsets = [0, 5], sizes = [8, 1], strides = [1, 1]} : vector<8x9xf32> to vector<8x1xf32>
    %1447 = vector.broadcast %1446 : vector<8x1xf32> to vector<8x128xf32>
    %1448 = arith.mulf %1445, %1447 : vector<8x128xf32>
    %1449 = arith.addf %1441, %1448 : vector<8x128xf32>
    %c114_i32 = arith.constant 114 : i32
    %1450 = tpu.dynamic_rotate %1404 by %c114_i32 dim 1 : vector<8x128xf32>, i32 -> vector<8x128xf32>
    %c15 = arith.constant 15 : index
    %c0_470 = arith.constant 0 : index
    %c0_471 = arith.constant 0 : index
    %1451 = vector.load %arg6[%c15, %c0_470, %c0_471] : memref<18x8x128xf32, #tpu.memory_space<vmem>>, vector<1x8x128xf32>
    %1452 = vector.shape_cast %1451 : vector<1x8x128xf32> to vector<8x128xf32>
    %1453 = arith.mulf %1450, %1452 : vector<8x128xf32>
    %1454 = vector.extract_strided_slice %1406 {offsets = [0, 6], sizes = [8, 1], strides = [1, 1]} : vector<8x9xf32> to vector<8x1xf32>
    %1455 = vector.broadcast %1454 : vector<8x1xf32> to vector<8x128xf32>
    %1456 = arith.mulf %1453, %1455 : vector<8x128xf32>
    %1457 = arith.addf %1449, %1456 : vector<8x128xf32>
    %c112_i32 = arith.constant 112 : i32
    %1458 = tpu.dynamic_rotate %1404 by %c112_i32 dim 1 : vector<8x128xf32>, i32 -> vector<8x128xf32>
    %c16 = arith.constant 16 : index
    %c0_472 = arith.constant 0 : index
    %c0_473 = arith.constant 0 : index
    %1459 = vector.load %arg6[%c16, %c0_472, %c0_473] : memref<18x8x128xf32, #tpu.memory_space<vmem>>, vector<1x8x128xf32>
    %1460 = vector.shape_cast %1459 : vector<1x8x128xf32> to vector<8x128xf32>
    %1461 = arith.mulf %1458, %1460 : vector<8x128xf32>
    %1462 = vector.extract_strided_slice %1406 {offsets = [0, 7], sizes = [8, 1], strides = [1, 1]} : vector<8x9xf32> to vector<8x1xf32>
    %1463 = vector.broadcast %1462 : vector<8x1xf32> to vector<8x128xf32>
    %1464 = arith.mulf %1461, %1463 : vector<8x128xf32>
    %1465 = arith.addf %1457, %1464 : vector<8x128xf32>
    %c110_i32 = arith.constant 110 : i32
    %1466 = tpu.dynamic_rotate %1404 by %c110_i32 dim 1 : vector<8x128xf32>, i32 -> vector<8x128xf32>
    %c17 = arith.constant 17 : index
    %c0_474 = arith.constant 0 : index
    %c0_475 = arith.constant 0 : index
    %1467 = vector.load %arg6[%c17, %c0_474, %c0_475] : memref<18x8x128xf32, #tpu.memory_space<vmem>>, vector<1x8x128xf32>
    %1468 = vector.shape_cast %1467 : vector<1x8x128xf32> to vector<8x128xf32>
    %1469 = arith.mulf %1466, %1468 : vector<8x128xf32>
    %1470 = vector.extract_strided_slice %1406 {offsets = [0, 8], sizes = [8, 1], strides = [1, 1]} : vector<8x9xf32> to vector<8x1xf32>
    %1471 = vector.broadcast %1470 : vector<8x1xf32> to vector<8x128xf32>
    %1472 = arith.mulf %1469, %1471 : vector<8x128xf32>
    %1473 = arith.addf %1465, %1472 : vector<8x128xf32>
    %c12_476 = arith.constant 12 : index
    %c0_477 = arith.constant 0 : index
    %c0_478 = arith.constant 0 : index
    %1474 = vector.load %arg2[%c12_476, %c0_477, %c0_478] : memref<13x8x8xf32, #tpu.memory_space<vmem>>, vector<1x8x8xf32>
    %1475 = vector.shape_cast %1474 : vector<1x8x8xf32> to vector<8x8xf32>
    %1476 = vector.extract_strided_slice %1475 {offsets = [0, 0], sizes = [8, 1], strides = [1, 1]} : vector<8x8xf32> to vector<8x1xf32>
    %1477 = vector.extract_strided_slice %1473 {offsets = [0, 0], sizes = [1, 128], strides = [1, 1]} : vector<8x128xf32> to vector<1x128xf32>
    %1478 = vector.broadcast %1476 : vector<8x1xf32> to vector<8x128xf32>
    %1479 = vector.broadcast %1477 : vector<1x128xf32> to vector<8x128xf32>
    %1480 = arith.mulf %1478, %1479 : vector<8x128xf32>
    %1481 = vector.extract_strided_slice %1475 {offsets = [0, 1], sizes = [8, 1], strides = [1, 1]} : vector<8x8xf32> to vector<8x1xf32>
    %1482 = vector.extract_strided_slice %1473 {offsets = [1, 0], sizes = [1, 128], strides = [1, 1]} : vector<8x128xf32> to vector<1x128xf32>
    %1483 = vector.broadcast %1481 : vector<8x1xf32> to vector<8x128xf32>
    %1484 = vector.broadcast %1482 : vector<1x128xf32> to vector<8x128xf32>
    %1485 = arith.mulf %1483, %1484 : vector<8x128xf32>
    %1486 = arith.addf %1480, %1485 : vector<8x128xf32>
    %1487 = vector.extract_strided_slice %1475 {offsets = [0, 2], sizes = [8, 1], strides = [1, 1]} : vector<8x8xf32> to vector<8x1xf32>
    %1488 = vector.extract_strided_slice %1473 {offsets = [2, 0], sizes = [1, 128], strides = [1, 1]} : vector<8x128xf32> to vector<1x128xf32>
    %1489 = vector.broadcast %1487 : vector<8x1xf32> to vector<8x128xf32>
    %1490 = vector.broadcast %1488 : vector<1x128xf32> to vector<8x128xf32>
    %1491 = arith.mulf %1489, %1490 : vector<8x128xf32>
    %1492 = arith.addf %1486, %1491 : vector<8x128xf32>
    %1493 = vector.extract_strided_slice %1475 {offsets = [0, 3], sizes = [8, 1], strides = [1, 1]} : vector<8x8xf32> to vector<8x1xf32>
    %1494 = vector.extract_strided_slice %1473 {offsets = [3, 0], sizes = [1, 128], strides = [1, 1]} : vector<8x128xf32> to vector<1x128xf32>
    %1495 = vector.broadcast %1493 : vector<8x1xf32> to vector<8x128xf32>
    %1496 = vector.broadcast %1494 : vector<1x128xf32> to vector<8x128xf32>
    %1497 = arith.mulf %1495, %1496 : vector<8x128xf32>
    %1498 = arith.addf %1492, %1497 : vector<8x128xf32>
    %1499 = vector.extract_strided_slice %1475 {offsets = [0, 4], sizes = [8, 1], strides = [1, 1]} : vector<8x8xf32> to vector<8x1xf32>
    %1500 = vector.extract_strided_slice %1473 {offsets = [4, 0], sizes = [1, 128], strides = [1, 1]} : vector<8x128xf32> to vector<1x128xf32>
    %1501 = vector.broadcast %1499 : vector<8x1xf32> to vector<8x128xf32>
    %1502 = vector.broadcast %1500 : vector<1x128xf32> to vector<8x128xf32>
    %1503 = arith.mulf %1501, %1502 : vector<8x128xf32>
    %1504 = arith.addf %1498, %1503 : vector<8x128xf32>
    %1505 = vector.extract_strided_slice %1475 {offsets = [0, 5], sizes = [8, 1], strides = [1, 1]} : vector<8x8xf32> to vector<8x1xf32>
    %1506 = vector.extract_strided_slice %1473 {offsets = [5, 0], sizes = [1, 128], strides = [1, 1]} : vector<8x128xf32> to vector<1x128xf32>
    %1507 = vector.broadcast %1505 : vector<8x1xf32> to vector<8x128xf32>
    %1508 = vector.broadcast %1506 : vector<1x128xf32> to vector<8x128xf32>
    %1509 = arith.mulf %1507, %1508 : vector<8x128xf32>
    %1510 = arith.addf %1504, %1509 : vector<8x128xf32>
    %1511 = vector.extract_strided_slice %1475 {offsets = [0, 6], sizes = [8, 1], strides = [1, 1]} : vector<8x8xf32> to vector<8x1xf32>
    %1512 = vector.extract_strided_slice %1473 {offsets = [6, 0], sizes = [1, 128], strides = [1, 1]} : vector<8x128xf32> to vector<1x128xf32>
    %1513 = vector.broadcast %1511 : vector<8x1xf32> to vector<8x128xf32>
    %1514 = vector.broadcast %1512 : vector<1x128xf32> to vector<8x128xf32>
    %1515 = arith.mulf %1513, %1514 : vector<8x128xf32>
    %1516 = arith.addf %1510, %1515 : vector<8x128xf32>
    %1517 = vector.extract_strided_slice %1475 {offsets = [0, 7], sizes = [8, 1], strides = [1, 1]} : vector<8x8xf32> to vector<8x1xf32>
    %1518 = vector.extract_strided_slice %1473 {offsets = [7, 0], sizes = [1, 128], strides = [1, 1]} : vector<8x128xf32> to vector<1x128xf32>
    %1519 = vector.broadcast %1517 : vector<8x1xf32> to vector<8x128xf32>
    %1520 = vector.broadcast %1518 : vector<1x128xf32> to vector<8x128xf32>
    %1521 = arith.mulf %1519, %1520 : vector<8x128xf32>
    %1522 = arith.addf %1516, %1521 : vector<8x128xf32>
    %c12_479 = arith.constant 12 : index
    %c0_480 = arith.constant 0 : index
    %c0_481 = arith.constant 0 : index
    %1523 = vector.load %arg3[%c12_479, %c0_480, %c0_481] : memref<13x8x1xf32, #tpu.memory_space<vmem>>, vector<1x8x1xf32>
    %1524 = vector.shape_cast %1523 : vector<1x8x1xf32> to vector<8x1xf32>
    %1525 = vector.broadcast %1524 : vector<8x1xf32> to vector<8x128xf32>
    %1526 = arith.mulf %1522, %1525 : vector<8x128xf32>
    %c12_482 = arith.constant 12 : index
    %c0_483 = arith.constant 0 : index
    %c0_484 = arith.constant 0 : index
    %1527 = vector.load %arg4[%c12_482, %c0_483, %c0_484] : memref<13x8x1xf32, #tpu.memory_space<vmem>>, vector<1x8x1xf32>
    %1528 = vector.shape_cast %1527 : vector<1x8x1xf32> to vector<8x1xf32>
    %1529 = vector.broadcast %1528 : vector<8x1xf32> to vector<8x128xf32>
    %1530 = arith.addf %1526, %1529 : vector<8x128xf32>
    %1531 = arith.addf %59, %1530 : vector<8x128xf32>
    %c0_485 = arith.constant 0 : index
    %c0_486 = arith.constant 0 : index
    %1532 = vector.load %arg7[%c0_485, %c0_486] : memref<32x128xf32, #tpu.memory_space<vmem>>, vector<8x128xf32>
    tpu.vector_store %arg7[%c0_485, %c0_486], %632 {strides = array<i32>} : memref<32x128xf32, #tpu.memory_space<vmem>>, vector<8x128xf32>,
    %c8_487 = arith.constant 8 : index
    %c0_488 = arith.constant 0 : index
    %1533 = vector.load %arg7[%c8_487, %c0_488] : memref<32x128xf32, #tpu.memory_space<vmem>>, vector<8x128xf32>
    tpu.vector_store %arg7[%c8_487, %c0_488], %1145 {strides = array<i32>} : memref<32x128xf32, #tpu.memory_space<vmem>>, vector<8x128xf32>,
    %c16_489 = arith.constant 16 : index
    %c0_490 = arith.constant 0 : index
    %1534 = vector.load %arg7[%c16_489, %c0_490] : memref<32x128xf32, #tpu.memory_space<vmem>>, vector<8x128xf32>
    tpu.vector_store %arg7[%c16_489, %c0_490], %1402 {strides = array<i32>} : memref<32x128xf32, #tpu.memory_space<vmem>>, vector<8x128xf32>,
    %c24 = arith.constant 24 : index
    %c0_491 = arith.constant 0 : index
    %1535 = vector.load %arg7[%c24, %c0_491] : memref<32x128xf32, #tpu.memory_space<vmem>>, vector<8x128xf32>
    tpu.vector_store %arg7[%c24, %c0_491], %1531 {strides = array<i32>} : memref<32x128xf32, #tpu.memory_space<vmem>>, vector<8x128xf32>,
    return
  }
}

</mosaic_0001>

<llo_original>
// kernel: cell_forward_pallas.1
$region0: #{cell_forward_pallas.1}
  #allocation0 [shape = 'u32[]', space=smem, size = 0x4, offset = 0x4, fixed_abs, tag = 'smem constant byte address 0x4 - core index']
  #allocation1 [shape = 'u32[144,128]{1,0:T(1,128)}', space=vmem, size = 0x12000, scoped, tag = 'internal scratch']
  %s0 = inlined_call_operand.vmem [shape: f32[8,128], index: 0, kind: input, shape index: {}]
  %s1 = inlined_call_operand.vmem [shape: f32[8,128], index: 1, kind: input, shape index: {}]
  %s2 = inlined_call_operand.vmem [shape: f32[13,8,8], index: 2, kind: input, shape index: {}]
  %s3 = inlined_call_operand.vmem [shape: f32[13,8,1], index: 3, kind: input, shape index: {}]
  %s4 = inlined_call_operand.vmem [shape: f32[13,8,1], index: 4, kind: input, shape index: {}]
  %s5 = inlined_call_operand.vmem [shape: f32[11,8,9], index: 5, kind: input, shape index: {}]
  %s6 = inlined_call_operand.vmem [shape: f32[18,8,128], index: 6, kind: input, shape index: {}]
  %s7 = inlined_call_operand.vmem [shape: f32[32,128], index: 7, kind: output, shape index: {}]
  %s8 = sld [smem:[#allocation0]]
  $region38: #{cell_forward_pallas.1} parent=0
    _
  %s10 = ssub.s32 1, %s8
  %s11 = scalar_select 0, %s10, %s8
  // Predicated region
  $region2: #{cell_forward_pallas.1} parent=0 // pred_check
    _
  $region3: #{cell_forward_pallas.1} parent=0 // pred_check_branch
    %13 = sbr.rel (0) target = $region5
  $region4: #{cell_forward_pallas.1} parent=0 // pred_region
    _
  $region5: #{cell_forward_pallas.1} parent=0 // pred_fallthru
    _
  // Predicated region
  $region6: #{cell_forward_pallas.1} parent=0 // pred_check
    _
  $region7: #{cell_forward_pallas.1} parent=0 // pred_check_branch
    %15 = sbr.rel (0) target = $region9
  $region8: #{cell_forward_pallas.1} parent=0 // pred_region
    _
  $region9: #{cell_forward_pallas.1} parent=0 // pred_fallthru
    _
  // Predicated region
  $region10: #{cell_forward_pallas.1} parent=0 // pred_check
    _
  $region11: #{cell_forward_pallas.1} parent=0 // pred_check_branch
    %17 = sbr.rel (0) target = $region13
  $region12: #{cell_forward_pallas.1} parent=0 // pred_region
    _
  $region13: #{cell_forward_pallas.1} parent=0 // pred_fallthru
    _
  // Predicated region
  $region14: #{cell_forward_pallas.1} parent=0 // pred_check
    _
  $region15: #{cell_forward_pallas.1} parent=0 // pred_check_branch
    %19 = sbr.rel (0) target = $region17
  $region16: #{cell_forward_pallas.1} parent=0 // pred_region
    _
  $region17: #{cell_forward_pallas.1} parent=0 // pred_fallthru
    _
  // Predicated region
  $region18: #{cell_forward_pallas.1} parent=0 // pred_check
    _
  $region19: #{cell_forward_pallas.1} parent=0 // pred_check_branch
    %21 = sbr.rel (0) target = $region21
  $region20: #{cell_forward_pallas.1} parent=0 // pred_region
    _
  $region21: #{cell_forward_pallas.1} parent=0 // pred_fallthru
    _
  // Predicated region
  $region22: #{cell_forward_pallas.1} parent=0 // pred_check
    _
  $region23: #{cell_forward_pallas.1} parent=0 // pred_check_branch
    %23 = sbr.rel (0) target = $region25
  $region24: #{cell_forward_pallas.1} parent=0 // pred_region
    _
  $region25: #{cell_forward_pallas.1} parent=0 // pred_fallthru
    _
  // Predicated region
  $region26: #{cell_forward_pallas.1} parent=0 // pred_check
    _
  $region27: #{cell_forward_pallas.1} parent=0 // pred_check_branch
    %25 = sbr.rel (0) target = $region29
  $region28: #{cell_forward_pallas.1} parent=0 // pred_region
    _
  $region29: #{cell_forward_pallas.1} parent=0 // pred_fallthru
    _
  %v26 = vld [vmem:[%s0] sm:$0xff]
  %v27 = vmax.f32 %v26, 0.0
  %v28 = vld [vmem:[%s2] sm:$0xff]
  %30 = vset.pattern.permute.xlu0 0
  %31 = vperm.xlu0 %30, %v28
  %v32 = vpop.permute.xlu0 %31
  %v34 = vlaneseq
  %v35 = vshrl.u32 %v34, 7
  %v36 = vsub.s32 0, %v35
  %v37 = vrot.slane %v27, %v36
  %v38 = vmul.f32 %v32, %v37
  %39 = vset.pattern.permute.xlu0 1
  %40 = vperm.xlu0 %39, %v28
  %v41 = vpop.permute.xlu0 %40
  %v43 = vlaneseq
  %v44 = vshrl.u32 %v43, 7
  %v45 = vsub.s32 1, %v44
  %v46 = vrot.slane %v27, %v45
  %v47 = vmul.f32 %v41, %v46
  %v48 = vadd.f32 %v38, %v47
  %49 = vset.pattern.permute.xlu0 2
  %50 = vperm.xlu0 %49, %v28
  %v51 = vpop.permute.xlu0 %50
  %v53 = vlaneseq
  %v54 = vshrl.u32 %v53, 7
  %v55 = vsub.s32 2, %v54
  %v56 = vrot.slane %v27, %v55
  %v57 = vmul.f32 %v51, %v56
  %v58 = vadd.f32 %v48, %v57
  %59 = vset.pattern.permute.xlu0 3
  %60 = vperm.xlu0 %59, %v28
  %v61 = vpop.permute.xlu0 %60
  %v63 = vlaneseq
  %v64 = vshrl.u32 %v63, 7
  %v65 = vsub.s32 3, %v64
  %v66 = vrot.slane %v27, %v65
  %v67 = vmul.f32 %v61, %v66
  %v68 = vadd.f32 %v58, %v67
  %69 = vset.pattern.permute.xlu0 4
  %70 = vperm.xlu0 %69, %v28
  %v71 = vpop.permute.xlu0 %70
  %v73 = vlaneseq
  %v74 = vshrl.u32 %v73, 7
  %v75 = vsub.s32 4, %v74
  %v76 = vrot.slane %v27, %v75
  %v77 = vmul.f32 %v71, %v76
  %v78 = vadd.f32 %v68, %v77
  %79 = vset.pattern.permute.xlu0 5
  %80 = vperm.xlu0 %79, %v28
  %v81 = vpop.permute.xlu0 %80
  %v83 = vlaneseq
  %v84 = vshrl.u32 %v83, 7
  %v85 = vsub.s32 5, %v84
  %v86 = vrot.slane %v27, %v85
  %v87 = vmul.f32 %v81, %v86
  %v88 = vadd.f32 %v78, %v87
  %89 = vset.pattern.permute.xlu0 6
  %90 = vperm.xlu0 %89, %v28
  %v91 = vpop.permute.xlu0 %90
  %v93 = vlaneseq
  %v94 = vshrl.u32 %v93, 7
  %v95 = vsub.s32 6, %v94
  %v96 = vrot.slane %v27, %v95
  %v97 = vmul.f32 %v91, %v96
  %v98 = vadd.f32 %v88, %v97
  %99 = vset.pattern.permute.xlu0 7
  %100 = vperm.xlu0 %99, %v28
  %v101 = vpop.permute.xlu0 %100
  %v103 = vlaneseq
  %v104 = vshrl.u32 %v103, 7
  %v105 = vsub.s32 7, %v104
  %v106 = vrot.slane %v27, %v105
  %v107 = vmul.f32 %v101, %v106
  %v108 = vadd.f32 %v98, %v107
  %v109 = vld [vmem:[%s3] sm:$0xff]
  %111 = vset.pattern.permute.xlu0 0
  %112 = vperm.xlu0 %111, %v109
  %v113 = vpop.permute.xlu0 %112
  %v115 = vmul.f32 %v108, %v113
  %v116 = vld [vmem:[%s4] sm:$0xff]
  %118 = vset.pattern.permute.xlu0 0
  %119 = vperm.xlu0 %118, %v116
  %v120 = vpop.permute.xlu0 %119
  %v122 = vadd.f32 %v115, %v120
  %v123 = vld [vmem:[%s1] sm:$0xff]
  %v124 = vmax.f32 %v123, 0.0
  %s125 = scalar_lea.vmem %s2, 8
  %v126 = vld [vmem:[%s125] sm:$0xff]
  %128 = vset.pattern.permute.xlu0 0
  %129 = vperm.xlu0 %128, %v126
  %v130 = vpop.permute.xlu0 %129
  %v132 = vlaneseq
  %v133 = vshrl.u32 %v132, 7
  %v134 = vsub.s32 0, %v133
  %v135 = vrot.slane %v124, %v134
  %v136 = vmul.f32 %v130, %v135
  %137 = vset.pattern.permute.xlu0 1
  %138 = vperm.xlu0 %137, %v126
  %v139 = vpop.permute.xlu0 %138
  %v141 = vlaneseq
  %v142 = vshrl.u32 %v141, 7
  %v143 = vsub.s32 1, %v142
  %v144 = vrot.slane %v124, %v143
  %v145 = vmul.f32 %v139, %v144
  %v146 = vadd.f32 %v136, %v145
  %147 = vset.pattern.permute.xlu0 2
  %148 = vperm.xlu0 %147, %v126
  %v149 = vpop.permute.xlu0 %148
  %v151 = vlaneseq
  %v152 = vshrl.u32 %v151, 7
  %v153 = vsub.s32 2, %v152
  %v154 = vrot.slane %v124, %v153
  %v155 = vmul.f32 %v149, %v154
  %v156 = vadd.f32 %v146, %v155
  %157 = vset.pattern.permute.xlu0 3
  %158 = vperm.xlu0 %157, %v126
  %v159 = vpop.permute.xlu0 %158
  %v161 = vlaneseq
  %v162 = vshrl.u32 %v161, 7
  %v163 = vsub.s32 3, %v162
  %v164 = vrot.slane %v124, %v163
  %v165 = vmul.f32 %v159, %v164
  %v166 = vadd.f32 %v156, %v165
  %167 = vset.pattern.permute.xlu0 4
  %168 = vperm.xlu0 %167, %v126
  %v169 = vpop.permute.xlu0 %168
  %v171 = vlaneseq
  %v172 = vshrl.u32 %v171, 7
  %v173 = vsub.s32 4, %v172
  %v174 = vrot.slane %v124, %v173
  %v175 = vmul.f32 %v169, %v174
  %v176 = vadd.f32 %v166, %v175
  %177 = vset.pattern.permute.xlu0 5
  %178 = vperm.xlu0 %177, %v126
  %v179 = vpop.permute.xlu0 %178
  %v181 = vlaneseq
  %v182 = vshrl.u32 %v181, 7
  %v183 = vsub.s32 5, %v182
  %v184 = vrot.slane %v124, %v183
  %v185 = vmul.f32 %v179, %v184
  %v186 = vadd.f32 %v176, %v185
  %187 = vset.pattern.permute.xlu0 6
  %188 = vperm.xlu0 %187, %v126
  %v189 = vpop.permute.xlu0 %188
  %v191 = vlaneseq
  %v192 = vshrl.u32 %v191, 7
  %v193 = vsub.s32 6, %v192
  %v194 = vrot.slane %v124, %v193
  %v195 = vmul.f32 %v189, %v194
  %v196 = vadd.f32 %v186, %v195
  %197 = vset.pattern.permute.xlu0 7
  %198 = vperm.xlu0 %197, %v126
  %v199 = vpop.permute.xlu0 %198
  %v201 = vlaneseq
  %v202 = vshrl.u32 %v201, 7
  %v203 = vsub.s32 7, %v202
  %v204 = vrot.slane %v124, %v203
  %v205 = vmul.f32 %v199, %v204
  %v206 = vadd.f32 %v196, %v205
  %s207 = scalar_lea.vmem %s3, 8
  %v208 = vld [vmem:[%s207] sm:$0xff]
  %210 = vset.pattern.permute.xlu0 0
  %211 = vperm.xlu0 %210, %v208
  %v212 = vpop.permute.xlu0 %211
  %v214 = vmul.f32 %v206, %v212
  %s215 = scalar_lea.vmem %s4, 8
  %v216 = vld [vmem:[%s215] sm:$0xff]
  %218 = vset.pattern.permute.xlu0 0
  %219 = vperm.xlu0 %218, %v216
  %v220 = vpop.permute.xlu0 %219
  %v222 = vadd.f32 %v214, %v220
  %v223 = vmax.f32 %v122, 0.0
  %v224 = vld [vmem:[%s5] sm:$0xff]
  %225 = vrot.lane.b32.xlu0 %v223, 9
  %v226 = vpop.permute.xlu0 %225
  %v227 = vld [vmem:[%s6] sm:$0xff]
  %v228 = vmul.f32 %v226, %v227
  %230 = vset.pattern.permute.xlu0 0
  %231 = vperm.xlu0 %230, %v224
  %v232 = vpop.permute.xlu0 %231
  %v234 = vmul.f32 %v228, %v232
  %235 = vrot.lane.b32.xlu0 %v223, 8
  %v236 = vpop.permute.xlu0 %235
  %s237 = scalar_lea.vmem %s6, 8
  %v238 = vld [vmem:[%s237] sm:$0xff]
  %v239 = vmul.f32 %v236, %v238
  %240 = vset.pattern.permute.xlu0 1
  %241 = vperm.xlu0 %240, %v224
  %v242 = vpop.permute.xlu0 %241
  %v244 = vmul.f32 %v239, %v242
  %v245 = vadd.f32 %v234, %v244
  %246 = vrot.lane.b32.xlu0 %v223, 7
  %v247 = vpop.permute.xlu0 %246
  %s248 = scalar_lea.vmem %s6, 16
  %v249 = vld [vmem:[%s248] sm:$0xff]
  %v250 = vmul.f32 %v247, %v249
  %251 = vset.pattern.permute.xlu0 2
  %252 = vperm.xlu0 %251, %v224
  %v253 = vpop.permute.xlu0 %252
  %v255 = vmul.f32 %v250, %v253
  %v256 = vadd.f32 %v245, %v255
  %257 = vrot.lane.b32.xlu0 %v223, 1
  %v258 = vpop.permute.xlu0 %257
  %s259 = scalar_lea.vmem %s6, 24
  %v260 = vld [vmem:[%s259] sm:$0xff]
  %v261 = vmul.f32 %v258, %v260
  %262 = vset.pattern.permute.xlu0 3
  %263 = vperm.xlu0 %262, %v224
  %v264 = vpop.permute.xlu0 %263
  %v266 = vmul.f32 %v261, %v264
  %v267 = vadd.f32 %v256, %v266
  %268 = vset.pattern.permute.xlu0 4
  %269 = vperm.xlu0 %268, %v224
  %v270 = vpop.permute.xlu0 %269
  %v272 = vmul.f32 %v223, %v270
  %v273 = vadd.f32 %v267, %v272
  %274 = vrot.lane.b32.xlu0 %v223, 127
  %v275 = vpop.permute.xlu0 %274
  %s276 = scalar_lea.vmem %s6, 40
  %v277 = vld [vmem:[%s276] sm:$0xff]
  %v278 = vmul.f32 %v275, %v277
  %279 = vset.pattern.permute.xlu0 5
  %280 = vperm.xlu0 %279, %v224
  %v281 = vpop.permute.xlu0 %280
  %v283 = vmul.f32 %v278, %v281
  %v284 = vadd.f32 %v273, %v283
  %285 = vrot.lane.b32.xlu0 %v223, 121
  %v286 = vpop.permute.xlu0 %285
  %s287 = scalar_lea.vmem %s6, 48
  %v288 = vld [vmem:[%s287] sm:$0xff]
  %v289 = vmul.f32 %v286, %v288
  %290 = vset.pattern.permute.xlu0 6
  %291 = vperm.xlu0 %290, %v224
  %v292 = vpop.permute.xlu0 %291
  %v294 = vmul.f32 %v289, %v292
  %v295 = vadd.f32 %v284, %v294
  %296 = vrot.lane.b32.xlu0 %v223, 120
  %v297 = vpop.permute.xlu0 %296
  %s298 = scalar_lea.vmem %s6, 56
  %v299 = vld [vmem:[%s298] sm:$0xff]
  %v300 = vmul.f32 %v297, %v299
  %301 = vset.pattern.permute.xlu0 7
  %302 = vperm.xlu0 %301, %v224
  %v303 = vpop.permute.xlu0 %302
  %v305 = vmul.f32 %v300, %v303
  %v306 = vadd.f32 %v295, %v305
  %307 = vrot.lane.b32.xlu0 %v223, 119
  %v308 = vpop.permute.xlu0 %307
  %s309 = scalar_lea.vmem %s6, 64
  %v310 = vld [vmem:[%s309] sm:$0xff]
  %v311 = vmul.f32 %v308, %v310
  %312 = vset.pattern.permute.xlu0 8
  %313 = vperm.xlu0 %312, %v224
  %v314 = vpop.permute.xlu0 %313
  %v316 = vmul.f32 %v311, %v314
  %v317 = vadd.f32 %v306, %v316
  %s318 = scalar_lea.vmem %s2, 16
  %v319 = vld [vmem:[%s318] sm:$0xff]
  %321 = vset.pattern.permute.xlu0 0
  %322 = vperm.xlu0 %321, %v319
  %v323 = vpop.permute.xlu0 %322
  %v325 = vlaneseq
  %v326 = vshrl.u32 %v325, 7
  %v327 = vsub.s32 0, %v326
  %v328 = vrot.slane %v317, %v327
  %v329 = vmul.f32 %v323, %v328
  %330 = vset.pattern.permute.xlu0 1
  %331 = vperm.xlu0 %330, %v319
  %v332 = vpop.permute.xlu0 %331
  %v334 = vlaneseq
  %v335 = vshrl.u32 %v334, 7
  %v336 = vsub.s32 1, %v335
  %v337 = vrot.slane %v317, %v336
  %v338 = vmul.f32 %v332, %v337
  %v339 = vadd.f32 %v329, %v338
  %340 = vset.pattern.permute.xlu0 2
  %341 = vperm.xlu0 %340, %v319
  %v342 = vpop.permute.xlu0 %341
  %v344 = vlaneseq
  %v345 = vshrl.u32 %v344, 7
  %v346 = vsub.s32 2, %v345
  %v347 = vrot.slane %v317, %v346
  %v348 = vmul.f32 %v342, %v347
  %v349 = vadd.f32 %v339, %v348
  %350 = vset.pattern.permute.xlu0 3
  %351 = vperm.xlu0 %350, %v319
  %v352 = vpop.permute.xlu0 %351
  %v354 = vlaneseq
  %v355 = vshrl.u32 %v354, 7
  %v356 = vsub.s32 3, %v355
  %v357 = vrot.slane %v317, %v356
  %v358 = vmul.f32 %v352, %v357
  %v359 = vadd.f32 %v349, %v358
  %360 = vset.pattern.permute.xlu0 4
  %361 = vperm.xlu0 %360, %v319
  %v362 = vpop.permute.xlu0 %361
  %v364 = vlaneseq
  %v365 = vshrl.u32 %v364, 7
  %v366 = vsub.s32 4, %v365
  %v367 = vrot.slane %v317, %v366
  %v368 = vmul.f32 %v362, %v367
  %v369 = vadd.f32 %v359, %v368
  %370 = vset.pattern.permute.xlu0 5
  %371 = vperm.xlu0 %370, %v319
  %v372 = vpop.permute.xlu0 %371
  %v374 = vlaneseq
  %v375 = vshrl.u32 %v374, 7
  %v376 = vsub.s32 5, %v375
  %v377 = vrot.slane %v317, %v376
  %v378 = vmul.f32 %v372, %v377
  %v379 = vadd.f32 %v369, %v378
  %380 = vset.pattern.permute.xlu0 6
  %381 = vperm.xlu0 %380, %v319
  %v382 = vpop.permute.xlu0 %381
  %v384 = vlaneseq
  %v385 = vshrl.u32 %v384, 7
  %v386 = vsub.s32 6, %v385
  %v387 = vrot.slane %v317, %v386
  %v388 = vmul.f32 %v382, %v387
  %v389 = vadd.f32 %v379, %v388
  %390 = vset.pattern.permute.xlu0 7
  %391 = vperm.xlu0 %390, %v319
  %v392 = vpop.permute.xlu0 %391
  %v394 = vlaneseq
  %v395 = vshrl.u32 %v394, 7
  %v396 = vsub.s32 7, %v395
  %v397 = vrot.slane %v317, %v396
  %v398 = vmul.f32 %v392, %v397
  %v399 = vadd.f32 %v389, %v398
  %s400 = scalar_lea.vmem %s3, 16
  %v401 = vld [vmem:[%s400] sm:$0xff]
  %403 = vset.pattern.permute.xlu0 0
  %404 = vperm.xlu0 %403, %v401
  %v405 = vpop.permute.xlu0 %404
  %v407 = vmul.f32 %v399, %v405
  %s408 = scalar_lea.vmem %s4, 16
  %v409 = vld [vmem:[%s408] sm:$0xff]
  %411 = vset.pattern.permute.xlu0 0
  %412 = vperm.xlu0 %411, %v409
  %v413 = vpop.permute.xlu0 %412
  %v415 = vadd.f32 %v407, %v413
  %v416 = vmax.f32 %v415, 0.0
  %s417 = scalar_lea.vmem %s5, 8
  %v418 = vld [vmem:[%s417] sm:$0xff]
  %419 = vrot.lane.b32.xlu0 %v416, 9
  %v420 = vpop.permute.xlu0 %419
  %v421 = vmul.f32 %v420, %v227
  %423 = vset.pattern.permute.xlu0 0
  %424 = vperm.xlu0 %423, %v418
  %v425 = vpop.permute.xlu0 %424
  %v427 = vmul.f32 %v421, %v425
  %428 = vrot.lane.b32.xlu0 %v416, 8
  %v429 = vpop.permute.xlu0 %428
  %v430 = vmul.f32 %v429, %v238
  %431 = vset.pattern.permute.xlu0 1
  %432 = vperm.xlu0 %431, %v418
  %v433 = vpop.permute.xlu0 %432
  %v435 = vmul.f32 %v430, %v433
  %v436 = vadd.f32 %v427, %v435
  %437 = vrot.lane.b32.xlu0 %v416, 7
  %v438 = vpop.permute.xlu0 %437
  %v439 = vmul.f32 %v438, %v249
  %440 = vset.pattern.permute.xlu0 2
  %441 = vperm.xlu0 %440, %v418
  %v442 = vpop.permute.xlu0 %441
  %v444 = vmul.f32 %v439, %v442
  %v445 = vadd.f32 %v436, %v444
  %446 = vrot.lane.b32.xlu0 %v416, 1
  %v447 = vpop.permute.xlu0 %446
  %v448 = vmul.f32 %v447, %v260
  %449 = vset.pattern.permute.xlu0 3
  %450 = vperm.xlu0 %449, %v418
  %v451 = vpop.permute.xlu0 %450
  %v453 = vmul.f32 %v448, %v451
  %v454 = vadd.f32 %v445, %v453
  %455 = vset.pattern.permute.xlu0 4
  %456 = vperm.xlu0 %455, %v418
  %v457 = vpop.permute.xlu0 %456
  %v459 = vmul.f32 %v416, %v457
  %v460 = vadd.f32 %v454, %v459
  %461 = vrot.lane.b32.xlu0 %v416, 127
  %v462 = vpop.permute.xlu0 %461
  %v463 = vmul.f32 %v462, %v277
  %464 = vset.pattern.permute.xlu0 5
  %465 = vperm.xlu0 %464, %v418
  %v466 = vpop.permute.xlu0 %465
  %v468 = vmul.f32 %v463, %v466
  %v469 = vadd.f32 %v460, %v468
  %470 = vrot.lane.b32.xlu0 %v416, 121
  %v471 = vpop.permute.xlu0 %470
  %v472 = vmul.f32 %v471, %v288
  %473 = vset.pattern.permute.xlu0 6
  %474 = vperm.xlu0 %473, %v418
  %v475 = vpop.permute.xlu0 %474
  %v477 = vmul.f32 %v472, %v475
  %v478 = vadd.f32 %v469, %v477
  %479 = vrot.lane.b32.xlu0 %v416, 120
  %v480 = vpop.permute.xlu0 %479
  %v481 = vmul.f32 %v480, %v299
  %482 = vset.pattern.permute.xlu0 7
  %483 = vperm.xlu0 %482, %v418
  %v484 = vpop.permute.xlu0 %483
  %v486 = vmul.f32 %v481, %v484
  %v487 = vadd.f32 %v478, %v486
  %488 = vrot.lane.b32.xlu0 %v416, 119
  %v489 = vpop.permute.xlu0 %488
  %v490 = vmul.f32 %v489, %v310
  %491 = vset.pattern.permute.xlu0 8
  %492 = vperm.xlu0 %491, %v418
  %v493 = vpop.permute.xlu0 %492
  %v495 = vmul.f32 %v490, %v493
  %v496 = vadd.f32 %v487, %v495
  %s497 = scalar_lea.vmem %s2, 24
  %v498 = vld [vmem:[%s497] sm:$0xff]
  %500 = vset.pattern.permute.xlu0 0
  %501 = vperm.xlu0 %500, %v498
  %v502 = vpop.permute.xlu0 %501
  %v504 = vlaneseq
  %v505 = vshrl.u32 %v504, 7
  %v506 = vsub.s32 0, %v505
  %v507 = vrot.slane %v496, %v506
  %v508 = vmul.f32 %v502, %v507
  %509 = vset.pattern.permute.xlu0 1
  %510 = vperm.xlu0 %509, %v498
  %v511 = vpop.permute.xlu0 %510
  %v513 = vlaneseq
  %v514 = vshrl.u32 %v513, 7
  %v515 = vsub.s32 1, %v514
  %v516 = vrot.slane %v496, %v515
  %v517 = vmul.f32 %v511, %v516
  %v518 = vadd.f32 %v508, %v517
  %519 = vset.pattern.permute.xlu0 2
  %520 = vperm.xlu0 %519, %v498
  %v521 = vpop.permute.xlu0 %520
  %v523 = vlaneseq
  %v524 = vshrl.u32 %v523, 7
  %v525 = vsub.s32 2, %v524
  %v526 = vrot.slane %v496, %v525
  %v527 = vmul.f32 %v521, %v526
  %v528 = vadd.f32 %v518, %v527
  %529 = vset.pattern.permute.xlu0 3
  %530 = vperm.xlu0 %529, %v498
  %v531 = vpop.permute.xlu0 %530
  %v533 = vlaneseq
  %v534 = vshrl.u32 %v533, 7
  %v535 = vsub.s32 3, %v534
  %v536 = vrot.slane %v496, %v535
  %v537 = vmul.f32 %v531, %v536
  %v538 = vadd.f32 %v528, %v537
  %539 = vset.pattern.permute.xlu0 4
  %540 = vperm.xlu0 %539, %v498
  %v541 = vpop.permute.xlu0 %540
  %v543 = vlaneseq
  %v544 = vshrl.u32 %v543, 7
  %v545 = vsub.s32 4, %v544
  %v546 = vrot.slane %v496, %v545
  %v547 = vmul.f32 %v541, %v546
  %v548 = vadd.f32 %v538, %v547
  %549 = vset.pattern.permute.xlu0 5
  %550 = vperm.xlu0 %549, %v498
  %v551 = vpop.permute.xlu0 %550
  %v553 = vlaneseq
  %v554 = vshrl.u32 %v553, 7
  %v555 = vsub.s32 5, %v554
  %v556 = vrot.slane %v496, %v555
  %v557 = vmul.f32 %v551, %v556
  %v558 = vadd.f32 %v548, %v557
  %559 = vset.pattern.permute.xlu0 6
  %560 = vperm.xlu0 %559, %v498
  %v561 = vpop.permute.xlu0 %560
  %v563 = vlaneseq
  %v564 = vshrl.u32 %v563, 7
  %v565 = vsub.s32 6, %v564
  %v566 = vrot.slane %v496, %v565
  %v567 = vmul.f32 %v561, %v566
  %v568 = vadd.f32 %v558, %v567
  %569 = vset.pattern.permute.xlu0 7
  %570 = vperm.xlu0 %569, %v498
  %v571 = vpop.permute.xlu0 %570
  %v573 = vlaneseq
  %v574 = vshrl.u32 %v573, 7
  %v575 = vsub.s32 7, %v574
  %v576 = vrot.slane %v496, %v575
  %v577 = vmul.f32 %v571, %v576
  %v578 = vadd.f32 %v568, %v577
  %s579 = scalar_lea.vmem %s3, 24
  %v580 = vld [vmem:[%s579] sm:$0xff]
  %582 = vset.pattern.permute.xlu0 0
  %583 = vperm.xlu0 %582, %v580
  %v584 = vpop.permute.xlu0 %583
  %v586 = vmul.f32 %v578, %v584
  %s587 = scalar_lea.vmem %s4, 24
  %v588 = vld [vmem:[%s587] sm:$0xff]
  %590 = vset.pattern.permute.xlu0 0
  %591 = vperm.xlu0 %590, %v588
  %v592 = vpop.permute.xlu0 %591
  %v594 = vadd.f32 %v586, %v592
  %v595 = vmax.f32 %v222, 0.0
  %s596 = scalar_lea.vmem %s5, 16
  %v597 = vld [vmem:[%s596] sm:$0xff]
  %598 = vrot.lane.b32.xlu0 %v595, 9
  %v599 = vpop.permute.xlu0 %598
  %v600 = vmul.f32 %v599, %v227
  %602 = vset.pattern.permute.xlu0 0
  %603 = vperm.xlu0 %602, %v597
  %v604 = vpop.permute.xlu0 %603
  %v606 = vmul.f32 %v600, %v604
  %607 = vrot.lane.b32.xlu0 %v595, 8
  %v608 = vpop.permute.xlu0 %607
  %v609 = vmul.f32 %v608, %v238
  %610 = vset.pattern.permute.xlu0 1
  %611 = vperm.xlu0 %610, %v597
  %v612 = vpop.permute.xlu0 %611
  %v614 = vmul.f32 %v609, %v612
  %v615 = vadd.f32 %v606, %v614
  %616 = vrot.lane.b32.xlu0 %v595, 7
  %v617 = vpop.permute.xlu0 %616
  %v618 = vmul.f32 %v617, %v249
  %619 = vset.pattern.permute.xlu0 2
  %620 = vperm.xlu0 %619, %v597
  %v621 = vpop.permute.xlu0 %620
  %v623 = vmul.f32 %v618, %v621
  %v624 = vadd.f32 %v615, %v623
  %625 = vrot.lane.b32.xlu0 %v595, 1
  %v626 = vpop.permute.xlu0 %625
  %v627 = vmul.f32 %v626, %v260
  %628 = vset.pattern.permute.xlu0 3
  %629 = vperm.xlu0 %628, %v597
  %v630 = vpop.permute.xlu0 %629
  %v632 = vmul.f32 %v627, %v630
  %v633 = vadd.f32 %v624, %v632
  %634 = vset.pattern.permute.xlu0 4
  %635 = vperm.xlu0 %634, %v597
  %v636 = vpop.permute.xlu0 %635
  %v638 = vmul.f32 %v595, %v636
  %v639 = vadd.f32 %v633, %v638
  %640 = vrot.lane.b32.xlu0 %v595, 127
  %v641 = vpop.permute.xlu0 %640
  %v642 = vmul.f32 %v641, %v277
  %643 = vset.pattern.permute.xlu0 5
  %644 = vperm.xlu0 %643, %v597
  %v645 = vpop.permute.xlu0 %644
  %v647 = vmul.f32 %v642, %v645
  %v648 = vadd.f32 %v639, %v647
  %649 = vrot.lane.b32.xlu0 %v595, 121
  %v650 = vpop.permute.xlu0 %649
  %v651 = vmul.f32 %v650, %v288
  %652 = vset.pattern.permute.xlu0 6
  %653 = vperm.xlu0 %652, %v597
  %v654 = vpop.permute.xlu0 %653
  %v656 = vmul.f32 %v651, %v654
  %v657 = vadd.f32 %v648, %v656
  %658 = vrot.lane.b32.xlu0 %v595, 120
  %v659 = vpop.permute.xlu0 %658
  %v660 = vmul.f32 %v659, %v299
  %661 = vset.pattern.permute.xlu0 7
  %662 = vperm.xlu0 %661, %v597
  %v663 = vpop.permute.xlu0 %662
  %v665 = vmul.f32 %v660, %v663
  %v666 = vadd.f32 %v657, %v665
  %667 = vrot.lane.b32.xlu0 %v595, 119
  %v668 = vpop.permute.xlu0 %667
  %v669 = vmul.f32 %v668, %v310
  %670 = vset.pattern.permute.xlu0 8
  %671 = vperm.xlu0 %670, %v597
  %v672 = vpop.permute.xlu0 %671
  %v674 = vmul.f32 %v669, %v672
  %v675 = vadd.f32 %v666, %v674
  %s676 = scalar_lea.vmem %s2, 32
  %v677 = vld [vmem:[%s676] sm:$0xff]
  %679 = vset.pattern.permute.xlu0 0
  %680 = vperm.xlu0 %679, %v677
  %v681 = vpop.permute.xlu0 %680
  %v683 = vlaneseq
  %v684 = vshrl.u32 %v683, 7
  %v685 = vsub.s32 0, %v684
  %v686 = vrot.slane %v675, %v685
  %v687 = vmul.f32 %v681, %v686
  %688 = vset.pattern.permute.xlu0 1
  %689 = vperm.xlu0 %688, %v677
  %v690 = vpop.permute.xlu0 %689
  %v692 = vlaneseq
  %v693 = vshrl.u32 %v692, 7
  %v694 = vsub.s32 1, %v693
  %v695 = vrot.slane %v675, %v694
  %v696 = vmul.f32 %v690, %v695
  %v697 = vadd.f32 %v687, %v696
  %698 = vset.pattern.permute.xlu0 2
  %699 = vperm.xlu0 %698, %v677
  %v700 = vpop.permute.xlu0 %699
  %v702 = vlaneseq
  %v703 = vshrl.u32 %v702, 7
  %v704 = vsub.s32 2, %v703
  %v705 = vrot.slane %v675, %v704
  %v706 = vmul.f32 %v700, %v705
  %v707 = vadd.f32 %v697, %v706
  %708 = vset.pattern.permute.xlu0 3
  %709 = vperm.xlu0 %708, %v677
  %v710 = vpop.permute.xlu0 %709
  %v712 = vlaneseq
  %v713 = vshrl.u32 %v712, 7
  %v714 = vsub.s32 3, %v713
  %v715 = vrot.slane %v675, %v714
  %v716 = vmul.f32 %v710, %v715
  %v717 = vadd.f32 %v707, %v716
  %718 = vset.pattern.permute.xlu0 4
  %719 = vperm.xlu0 %718, %v677
  %v720 = vpop.permute.xlu0 %719
  %v722 = vlaneseq
  %v723 = vshrl.u32 %v722, 7
  %v724 = vsub.s32 4, %v723
  %v725 = vrot.slane %v675, %v724
  %v726 = vmul.f32 %v720, %v725
  %v727 = vadd.f32 %v717, %v726
  %728 = vset.pattern.permute.xlu0 5
  %729 = vperm.xlu0 %728, %v677
  %v730 = vpop.permute.xlu0 %729
  %v732 = vlaneseq
  %v733 = vshrl.u32 %v732, 7
  %v734 = vsub.s32 5, %v733
  %v735 = vrot.slane %v675, %v734
  %v736 = vmul.f32 %v730, %v735
  %v737 = vadd.f32 %v727, %v736
  %738 = vset.pattern.permute.xlu0 6
  %739 = vperm.xlu0 %738, %v677
  %v740 = vpop.permute.xlu0 %739
  %v742 = vlaneseq
  %v743 = vshrl.u32 %v742, 7
  %v744 = vsub.s32 6, %v743
  %v745 = vrot.slane %v675, %v744
  %v746 = vmul.f32 %v740, %v745
  %v747 = vadd.f32 %v737, %v746
  %748 = vset.pattern.permute.xlu0 7
  %749 = vperm.xlu0 %748, %v677
  %v750 = vpop.permute.xlu0 %749
  %v752 = vlaneseq
  %v753 = vshrl.u32 %v752, 7
  %v754 = vsub.s32 7, %v753
  %v755 = vrot.slane %v675, %v754
  %v756 = vmul.f32 %v750, %v755
  %v757 = vadd.f32 %v747, %v756
  %s758 = scalar_lea.vmem %s3, 32
  %v759 = vld [vmem:[%s758] sm:$0xff]
  %761 = vset.pattern.permute.xlu0 0
  %762 = vperm.xlu0 %761, %v759
  %v763 = vpop.permute.xlu0 %762
  %v765 = vmul.f32 %v757, %v763
  %s766 = scalar_lea.vmem %s4, 32
  %v767 = vld [vmem:[%s766] sm:$0xff]
  %769 = vset.pattern.permute.xlu0 0
  %770 = vperm.xlu0 %769, %v767
  %v771 = vpop.permute.xlu0 %770
  %v773 = vadd.f32 %v765, %v771
  %v774 = vmax.f32 %v773, 0.0
  %s775 = scalar_lea.vmem %s5, 24
  %v776 = vld [vmem:[%s775] sm:$0xff]
  %777 = vrot.lane.b32.xlu0 %v774, 9
  %v778 = vpop.permute.xlu0 %777
  %v779 = vmul.f32 %v778, %v227
  %781 = vset.pattern.permute.xlu0 0
  %782 = vperm.xlu0 %781, %v776
  %v783 = vpop.permute.xlu0 %782
  %v785 = vmul.f32 %v779, %v783
  %786 = vrot.lane.b32.xlu0 %v774, 8
  %v787 = vpop.permute.xlu0 %786
  %v788 = vmul.f32 %v787, %v238
  %789 = vset.pattern.permute.xlu0 1
  %790 = vperm.xlu0 %789, %v776
  %v791 = vpop.permute.xlu0 %790
  %v793 = vmul.f32 %v788, %v791
  %v794 = vadd.f32 %v785, %v793
  %795 = vrot.lane.b32.xlu0 %v774, 7
  %v796 = vpop.permute.xlu0 %795
  %v797 = vmul.f32 %v796, %v249
  %798 = vset.pattern.permute.xlu0 2
  %799 = vperm.xlu0 %798, %v776
  %v800 = vpop.permute.xlu0 %799
  %v802 = vmul.f32 %v797, %v800
  %v803 = vadd.f32 %v794, %v802
  %804 = vrot.lane.b32.xlu0 %v774, 1
  %v805 = vpop.permute.xlu0 %804
  %v806 = vmul.f32 %v805, %v260
  %807 = vset.pattern.permute.xlu0 3
  %808 = vperm.xlu0 %807, %v776
  %v809 = vpop.permute.xlu0 %808
  %v811 = vmul.f32 %v806, %v809
  %v812 = vadd.f32 %v803, %v811
  %813 = vset.pattern.permute.xlu0 4
  %814 = vperm.xlu0 %813, %v776
  %v815 = vpop.permute.xlu0 %814
  %v817 = vmul.f32 %v774, %v815
  %v818 = vadd.f32 %v812, %v817
  %819 = vrot.lane.b32.xlu0 %v774, 127
  %v820 = vpop.permute.xlu0 %819
  %v821 = vmul.f32 %v820, %v277
  %822 = vset.pattern.permute.xlu0 5
  %823 = vperm.xlu0 %822, %v776
  %v824 = vpop.permute.xlu0 %823
  %v826 = vmul.f32 %v821, %v824
  %v827 = vadd.f32 %v818, %v826
  %828 = vrot.lane.b32.xlu0 %v774, 121
  %v829 = vpop.permute.xlu0 %828
  %v830 = vmul.f32 %v829, %v288
  %831 = vset.pattern.permute.xlu0 6
  %832 = vperm.xlu0 %831, %v776
  %v833 = vpop.permute.xlu0 %832
  %v835 = vmul.f32 %v830, %v833
  %v836 = vadd.f32 %v827, %v835
  %837 = vrot.lane.b32.xlu0 %v774, 120
  %v838 = vpop.permute.xlu0 %837
  %v839 = vmul.f32 %v838, %v299
  %840 = vset.pattern.permute.xlu0 7
  %841 = vperm.xlu0 %840, %v776
  %v842 = vpop.permute.xlu0 %841
  %v844 = vmul.f32 %v839, %v842
  %v845 = vadd.f32 %v836, %v844
  %846 = vrot.lane.b32.xlu0 %v774, 119
  %v847 = vpop.permute.xlu0 %846
  %v848 = vmul.f32 %v847, %v310
  %849 = vset.pattern.permute.xlu0 8
  %850 = vperm.xlu0 %849, %v776
  %v851 = vpop.permute.xlu0 %850
  %v853 = vmul.f32 %v848, %v851
  %v854 = vadd.f32 %v845, %v853
  %s855 = scalar_lea.vmem %s2, 40
  %v856 = vld [vmem:[%s855] sm:$0xff]
  %858 = vset.pattern.permute.xlu0 0
  %859 = vperm.xlu0 %858, %v856
  %v860 = vpop.permute.xlu0 %859
  %v862 = vlaneseq
  %v863 = vshrl.u32 %v862, 7
  %v864 = vsub.s32 0, %v863
  %v865 = vrot.slane %v854, %v864
  %v866 = vmul.f32 %v860, %v865
  %867 = vset.pattern.permute.xlu0 1
  %868 = vperm.xlu0 %867, %v856
  %v869 = vpop.permute.xlu0 %868
  %v871 = vlaneseq
  %v872 = vshrl.u32 %v871, 7
  %v873 = vsub.s32 1, %v872
  %v874 = vrot.slane %v854, %v873
  %v875 = vmul.f32 %v869, %v874
  %v876 = vadd.f32 %v866, %v875
  %877 = vset.pattern.permute.xlu0 2
  %878 = vperm.xlu0 %877, %v856
  %v879 = vpop.permute.xlu0 %878
  %v881 = vlaneseq
  %v882 = vshrl.u32 %v881, 7
  %v883 = vsub.s32 2, %v882
  %v884 = vrot.slane %v854, %v883
  %v885 = vmul.f32 %v879, %v884
  %v886 = vadd.f32 %v876, %v885
  %887 = vset.pattern.permute.xlu0 3
  %888 = vperm.xlu0 %887, %v856
  %v889 = vpop.permute.xlu0 %888
  %v891 = vlaneseq
  %v892 = vshrl.u32 %v891, 7
  %v893 = vsub.s32 3, %v892
  %v894 = vrot.slane %v854, %v893
  %v895 = vmul.f32 %v889, %v894
  %v896 = vadd.f32 %v886, %v895
  %897 = vset.pattern.permute.xlu0 4
  %898 = vperm.xlu0 %897, %v856
  %v899 = vpop.permute.xlu0 %898
  %v901 = vlaneseq
  %v902 = vshrl.u32 %v901, 7
  %v903 = vsub.s32 4, %v902
  %v904 = vrot.slane %v854, %v903
  %v905 = vmul.f32 %v899, %v904
  %v906 = vadd.f32 %v896, %v905
  %907 = vset.pattern.permute.xlu0 5
  %908 = vperm.xlu0 %907, %v856
  %v909 = vpop.permute.xlu0 %908
  %v911 = vlaneseq
  %v912 = vshrl.u32 %v911, 7
  %v913 = vsub.s32 5, %v912
  %v914 = vrot.slane %v854, %v913
  %v915 = vmul.f32 %v909, %v914
  %v916 = vadd.f32 %v906, %v915
  %917 = vset.pattern.permute.xlu0 6
  %918 = vperm.xlu0 %917, %v856
  %v919 = vpop.permute.xlu0 %918
  %v921 = vlaneseq
  %v922 = vshrl.u32 %v921, 7
  %v923 = vsub.s32 6, %v922
  %v924 = vrot.slane %v854, %v923
  %v925 = vmul.f32 %v919, %v924
  %v926 = vadd.f32 %v916, %v925
  %927 = vset.pattern.permute.xlu0 7
  %928 = vperm.xlu0 %927, %v856
  %v929 = vpop.permute.xlu0 %928
  %v931 = vlaneseq
  %v932 = vshrl.u32 %v931, 7
  %v933 = vsub.s32 7, %v932
  %v934 = vrot.slane %v854, %v933
  %v935 = vmul.f32 %v929, %v934
  %v936 = vadd.f32 %v926, %v935
  %s937 = scalar_lea.vmem %s3, 40
  %v938 = vld [vmem:[%s937] sm:$0xff]
  %940 = vset.pattern.permute.xlu0 0
  %941 = vperm.xlu0 %940, %v938
  %v942 = vpop.permute.xlu0 %941
  %v944 = vmul.f32 %v936, %v942
  %s945 = scalar_lea.vmem %s4, 40
  %v946 = vld [vmem:[%s945] sm:$0xff]
  %948 = vset.pattern.permute.xlu0 0
  %949 = vperm.xlu0 %948, %v946
  %v950 = vpop.permute.xlu0 %949
  %v952 = vadd.f32 %v944, %v950
  %v953 = vadd.f32 %v594, %v952
  %s954 = scalar_lea.vmem %s5, 32
  %v955 = vld [vmem:[%s954] sm:$0xff]
  %957 = vset.pattern.permute.xlu0 0
  %958 = vperm.xlu0 %957, %v955
  %v959 = vpop.permute.xlu0 %958
  %v961 = vmul.f32 %v228, %v959
  %962 = vset.pattern.permute.xlu0 1
  %963 = vperm.xlu0 %962, %v955
  %v964 = vpop.permute.xlu0 %963
  %v966 = vmul.f32 %v239, %v964
  %v967 = vadd.f32 %v961, %v966
  %968 = vset.pattern.permute.xlu0 2
  %969 = vperm.xlu0 %968, %v955
  %v970 = vpop.permute.xlu0 %969
  %v972 = vmul.f32 %v250, %v970
  %v973 = vadd.f32 %v967, %v972
  %974 = vset.pattern.permute.xlu0 3
  %975 = vperm.xlu0 %974, %v955
  %v976 = vpop.permute.xlu0 %975
  %v978 = vmul.f32 %v261, %v976
  %v979 = vadd.f32 %v973, %v978
  %980 = vset.pattern.permute.xlu0 4
  %981 = vperm.xlu0 %980, %v955
  %v982 = vpop.permute.xlu0 %981
  %v984 = vmul.f32 %v223, %v982
  %v985 = vadd.f32 %v979, %v984
  %986 = vset.pattern.permute.xlu0 5
  %987 = vperm.xlu0 %986, %v955
  %v988 = vpop.permute.xlu0 %987
  %v990 = vmul.f32 %v278, %v988
  %v991 = vadd.f32 %v985, %v990
  %992 = vset.pattern.permute.xlu0 6
  %993 = vperm.xlu0 %992, %v955
  %v994 = vpop.permute.xlu0 %993
  %v996 = vmul.f32 %v289, %v994
  %v997 = vadd.f32 %v991, %v996
  %998 = vset.pattern.permute.xlu0 7
  %999 = vperm.xlu0 %998, %v955
  %v1000 = vpop.permute.xlu0 %999
  %v1002 = vmul.f32 %v300, %v1000
  %v1003 = vadd.f32 %v997, %v1002
  %1004 = vset.pattern.permute.xlu0 8
  %1005 = vperm.xlu0 %1004, %v955
  %v1006 = vpop.permute.xlu0 %1005
  %v1008 = vmul.f32 %v311, %v1006
  %v1009 = vadd.f32 %v1003, %v1008
  %s1010 = scalar_lea.vmem %s2, 48
  %v1011 = vld [vmem:[%s1010] sm:$0xff]
  %1013 = vset.pattern.permute.xlu0 0
  %1014 = vperm.xlu0 %1013, %v1011
  %v1015 = vpop.permute.xlu0 %1014
  %v1017 = vlaneseq
  %v1018 = vshrl.u32 %v1017, 7
  %v1019 = vsub.s32 0, %v1018
  %v1020 = vrot.slane %v1009, %v1019
  %v1021 = vmul.f32 %v1015, %v1020
  %1022 = vset.pattern.permute.xlu0 1
  %1023 = vperm.xlu0 %1022, %v1011
  %v1024 = vpop.permute.xlu0 %1023
  %v1026 = vlaneseq
  %v1027 = vshrl.u32 %v1026, 7
  %v1028 = vsub.s32 1, %v1027
  %v1029 = vrot.slane %v1009, %v1028
  %v1030 = vmul.f32 %v1024, %v1029
  %v1031 = vadd.f32 %v1021, %v1030
  %1032 = vset.pattern.permute.xlu0 2
  %1033 = vperm.xlu0 %1032, %v1011
  %v1034 = vpop.permute.xlu0 %1033
  %v1036 = vlaneseq
  %v1037 = vshrl.u32 %v1036, 7
  %v1038 = vsub.s32 2, %v1037
  %v1039 = vrot.slane %v1009, %v1038
  %v1040 = vmul.f32 %v1034, %v1039
  %v1041 = vadd.f32 %v1031, %v1040
  %1042 = vset.pattern.permute.xlu0 3
  %1043 = vperm.xlu0 %1042, %v1011
  %v1044 = vpop.permute.xlu0 %1043
  %v1046 = vlaneseq
  %v1047 = vshrl.u32 %v1046, 7
  %v1048 = vsub.s32 3, %v1047
  %v1049 = vrot.slane %v1009, %v1048
  %v1050 = vmul.f32 %v1044, %v1049
  %v1051 = vadd.f32 %v1041, %v1050
  %1052 = vset.pattern.permute.xlu0 4
  %1053 = vperm.xlu0 %1052, %v1011
  %v1054 = vpop.permute.xlu0 %1053
  %v1056 = vlaneseq
  %v1057 = vshrl.u32 %v1056, 7
  %v1058 = vsub.s32 4, %v1057
  %v1059 = vrot.slane %v1009, %v1058
  %v1060 = vmul.f32 %v1054, %v1059
  %v1061 = vadd.f32 %v1051, %v1060
  %1062 = vset.pattern.permute.xlu0 5
  %1063 = vperm.xlu0 %1062, %v1011
  %v1064 = vpop.permute.xlu0 %1063
  %v1066 = vlaneseq
  %v1067 = vshrl.u32 %v1066, 7
  %v1068 = vsub.s32 5, %v1067
  %v1069 = vrot.slane %v1009, %v1068
  %v1070 = vmul.f32 %v1064, %v1069
  %v1071 = vadd.f32 %v1061, %v1070
  %1072 = vset.pattern.permute.xlu0 6
  %1073 = vperm.xlu0 %1072, %v1011
  %v1074 = vpop.permute.xlu0 %1073
  %v1076 = vlaneseq
  %v1077 = vshrl.u32 %v1076, 7
  %v1078 = vsub.s32 6, %v1077
  %v1079 = vrot.slane %v1009, %v1078
  %v1080 = vmul.f32 %v1074, %v1079
  %v1081 = vadd.f32 %v1071, %v1080
  %1082 = vset.pattern.permute.xlu0 7
  %1083 = vperm.xlu0 %1082, %v1011
  %v1084 = vpop.permute.xlu0 %1083
  %v1086 = vlaneseq
  %v1087 = vshrl.u32 %v1086, 7
  %v1088 = vsub.s32 7, %v1087
  %v1089 = vrot.slane %v1009, %v1088
  %v1090 = vmul.f32 %v1084, %v1089
  %v1091 = vadd.f32 %v1081, %v1090
  %s1092 = scalar_lea.vmem %s3, 48
  %v1093 = vld [vmem:[%s1092] sm:$0xff]
  %1095 = vset.pattern.permute.xlu0 0
  %1096 = vperm.xlu0 %1095, %v1093
  %v1097 = vpop.permute.xlu0 %1096
  %v1099 = vmul.f32 %v1091, %v1097
  %s1100 = scalar_lea.vmem %s4, 48
  %v1101 = vld [vmem:[%s1100] sm:$0xff]
  %1103 = vset.pattern.permute.xlu0 0
  %1104 = vperm.xlu0 %1103, %v1101
  %v1105 = vpop.permute.xlu0 %1104
  %v1107 = vadd.f32 %v1099, %v1105
  %v1108 = vmax.f32 %v1107, 0.0
  %s1109 = scalar_lea.vmem %s5, 40
  %v1110 = vld [vmem:[%s1109] sm:$0xff]
  %1111 = vrot.lane.b32.xlu0 %v1108, 9
  %v1112 = vpop.permute.xlu0 %1111
  %v1113 = vmul.f32 %v1112, %v227
  %1115 = vset.pattern.permute.xlu0 0
  %1116 = vperm.xlu0 %1115, %v1110
  %v1117 = vpop.permute.xlu0 %1116
  %v1119 = vmul.f32 %v1113, %v1117
  %1120 = vrot.lane.b32.xlu0 %v1108, 8
  %v1121 = vpop.permute.xlu0 %1120
  %v1122 = vmul.f32 %v1121, %v238
  %1123 = vset.pattern.permute.xlu0 1
  %1124 = vperm.xlu0 %1123, %v1110
  %v1125 = vpop.permute.xlu0 %1124
  %v1127 = vmul.f32 %v1122, %v1125
  %v1128 = vadd.f32 %v1119, %v1127
  %1129 = vrot.lane.b32.xlu0 %v1108, 7
  %v1130 = vpop.permute.xlu0 %1129
  %v1131 = vmul.f32 %v1130, %v249
  %1132 = vset.pattern.permute.xlu0 2
  %1133 = vperm.xlu0 %1132, %v1110
  %v1134 = vpop.permute.xlu0 %1133
  %v1136 = vmul.f32 %v1131, %v1134
  %v1137 = vadd.f32 %v1128, %v1136
  %1138 = vrot.lane.b32.xlu0 %v1108, 1
  %v1139 = vpop.permute.xlu0 %1138
  %v1140 = vmul.f32 %v1139, %v260
  %1141 = vset.pattern.permute.xlu0 3
  %1142 = vperm.xlu0 %1141, %v1110
  %v1143 = vpop.permute.xlu0 %1142
  %v1145 = vmul.f32 %v1140, %v1143
  %v1146 = vadd.f32 %v1137, %v1145
  %1147 = vset.pattern.permute.xlu0 4
  %1148 = vperm.xlu0 %1147, %v1110
  %v1149 = vpop.permute.xlu0 %1148
  %v1151 = vmul.f32 %v1108, %v1149
  %v1152 = vadd.f32 %v1146, %v1151
  %1153 = vrot.lane.b32.xlu0 %v1108, 127
  %v1154 = vpop.permute.xlu0 %1153
  %v1155 = vmul.f32 %v1154, %v277
  %1156 = vset.pattern.permute.xlu0 5
  %1157 = vperm.xlu0 %1156, %v1110
  %v1158 = vpop.permute.xlu0 %1157
  %v1160 = vmul.f32 %v1155, %v1158
  %v1161 = vadd.f32 %v1152, %v1160
  %1162 = vrot.lane.b32.xlu0 %v1108, 121
  %v1163 = vpop.permute.xlu0 %1162
  %v1164 = vmul.f32 %v1163, %v288
  %1165 = vset.pattern.permute.xlu0 6
  %1166 = vperm.xlu0 %1165, %v1110
  %v1167 = vpop.permute.xlu0 %1166
  %v1169 = vmul.f32 %v1164, %v1167
  %v1170 = vadd.f32 %v1161, %v1169
  %1171 = vrot.lane.b32.xlu0 %v1108, 120
  %v1172 = vpop.permute.xlu0 %1171
  %v1173 = vmul.f32 %v1172, %v299
  %1174 = vset.pattern.permute.xlu0 7
  %1175 = vperm.xlu0 %1174, %v1110
  %v1176 = vpop.permute.xlu0 %1175
  %v1178 = vmul.f32 %v1173, %v1176
  %v1179 = vadd.f32 %v1170, %v1178
  %1180 = vrot.lane.b32.xlu0 %v1108, 119
  %v1181 = vpop.permute.xlu0 %1180
  %v1182 = vmul.f32 %v1181, %v310
  %1183 = vset.pattern.permute.xlu0 8
  %1184 = vperm.xlu0 %1183, %v1110
  %v1185 = vpop.permute.xlu0 %1184
  %v1187 = vmul.f32 %v1182, %v1185
  %v1188 = vadd.f32 %v1179, %v1187
  %s1189 = scalar_lea.vmem %s2, 56
  %v1190 = vld [vmem:[%s1189] sm:$0xff]
  %1192 = vset.pattern.permute.xlu0 0
  %1193 = vperm.xlu0 %1192, %v1190
  %v1194 = vpop.permute.xlu0 %1193
  %v1196 = vlaneseq
  %v1197 = vshrl.u32 %v1196, 7
  %v1198 = vsub.s32 0, %v1197
  %v1199 = vrot.slane %v1188, %v1198
  %v1200 = vmul.f32 %v1194, %v1199
  %1201 = vset.pattern.permute.xlu0 1
  %1202 = vperm.xlu0 %1201, %v1190
  %v1203 = vpop.permute.xlu0 %1202
  %v1205 = vlaneseq
  %v1206 = vshrl.u32 %v1205, 7
  %v1207 = vsub.s32 1, %v1206
  %v1208 = vrot.slane %v1188, %v1207
  %v1209 = vmul.f32 %v1203, %v1208
  %v1210 = vadd.f32 %v1200, %v1209
  %1211 = vset.pattern.permute.xlu0 2
  %1212 = vperm.xlu0 %1211, %v1190
  %v1213 = vpop.permute.xlu0 %1212
  %v1215 = vlaneseq
  %v1216 = vshrl.u32 %v1215, 7
  %v1217 = vsub.s32 2, %v1216
  %v1218 = vrot.slane %v1188, %v1217
  %v1219 = vmul.f32 %v1213, %v1218
  %v1220 = vadd.f32 %v1210, %v1219
  %1221 = vset.pattern.permute.xlu0 3
  %1222 = vperm.xlu0 %1221, %v1190
  %v1223 = vpop.permute.xlu0 %1222
  %v1225 = vlaneseq
  %v1226 = vshrl.u32 %v1225, 7
  %v1227 = vsub.s32 3, %v1226
  %v1228 = vrot.slane %v1188, %v1227
  %v1229 = vmul.f32 %v1223, %v1228
  %v1230 = vadd.f32 %v1220, %v1229
  %1231 = vset.pattern.permute.xlu0 4
  %1232 = vperm.xlu0 %1231, %v1190
  %v1233 = vpop.permute.xlu0 %1232
  %v1235 = vlaneseq
  %v1236 = vshrl.u32 %v1235, 7
  %v1237 = vsub.s32 4, %v1236
  %v1238 = vrot.slane %v1188, %v1237
  %v1239 = vmul.f32 %v1233, %v1238
  %v1240 = vadd.f32 %v1230, %v1239
  %1241 = vset.pattern.permute.xlu0 5
  %1242 = vperm.xlu0 %1241, %v1190
  %v1243 = vpop.permute.xlu0 %1242
  %v1245 = vlaneseq
  %v1246 = vshrl.u32 %v1245, 7
  %v1247 = vsub.s32 5, %v1246
  %v1248 = vrot.slane %v1188, %v1247
  %v1249 = vmul.f32 %v1243, %v1248
  %v1250 = vadd.f32 %v1240, %v1249
  %1251 = vset.pattern.permute.xlu0 6
  %1252 = vperm.xlu0 %1251, %v1190
  %v1253 = vpop.permute.xlu0 %1252
  %v1255 = vlaneseq
  %v1256 = vshrl.u32 %v1255, 7
  %v1257 = vsub.s32 6, %v1256
  %v1258 = vrot.slane %v1188, %v1257
  %v1259 = vmul.f32 %v1253, %v1258
  %v1260 = vadd.f32 %v1250, %v1259
  %1261 = vset.pattern.permute.xlu0 7
  %1262 = vperm.xlu0 %1261, %v1190
  %v1263 = vpop.permute.xlu0 %1262
  %v1265 = vlaneseq
  %v1266 = vshrl.u32 %v1265, 7
  %v1267 = vsub.s32 7, %v1266
  %v1268 = vrot.slane %v1188, %v1267
  %v1269 = vmul.f32 %v1263, %v1268
  %v1270 = vadd.f32 %v1260, %v1269
  %s1271 = scalar_lea.vmem %s3, 56
  %v1272 = vld [vmem:[%s1271] sm:$0xff]
  %1274 = vset.pattern.permute.xlu0 0
  %1275 = vperm.xlu0 %1274, %v1272
  %v1276 = vpop.permute.xlu0 %1275
  %v1278 = vmul.f32 %v1270, %v1276
  %s1279 = scalar_lea.vmem %s4, 56
  %v1280 = vld [vmem:[%s1279] sm:$0xff]
  %1282 = vset.pattern.permute.xlu0 0
  %1283 = vperm.xlu0 %1282, %v1280
  %v1284 = vpop.permute.xlu0 %1283
  %v1286 = vadd.f32 %v1278, %v1284
  %s1287 = scalar_lea.vmem %s5, 48
  %v1288 = vld [vmem:[%s1287] sm:$0xff]
  %1290 = vset.pattern.permute.xlu0 0
  %1291 = vperm.xlu0 %1290, %v1288
  %v1292 = vpop.permute.xlu0 %1291
  %v1294 = vmul.f32 %v600, %v1292
  %1295 = vset.pattern.permute.xlu0 1
  %1296 = vperm.xlu0 %1295, %v1288
  %v1297 = vpop.permute.xlu0 %1296
  %v1299 = vmul.f32 %v609, %v1297
  %v1300 = vadd.f32 %v1294, %v1299
  %1301 = vset.pattern.permute.xlu0 2
  %1302 = vperm.xlu0 %1301, %v1288
  %v1303 = vpop.permute.xlu0 %1302
  %v1305 = vmul.f32 %v618, %v1303
  %v1306 = vadd.f32 %v1300, %v1305
  %1307 = vset.pattern.permute.xlu0 3
  %1308 = vperm.xlu0 %1307, %v1288
  %v1309 = vpop.permute.xlu0 %1308
  %v1311 = vmul.f32 %v627, %v1309
  %v1312 = vadd.f32 %v1306, %v1311
  %1313 = vset.pattern.permute.xlu0 4
  %1314 = vperm.xlu0 %1313, %v1288
  %v1315 = vpop.permute.xlu0 %1314
  %v1317 = vmul.f32 %v595, %v1315
  %v1318 = vadd.f32 %v1312, %v1317
  %1319 = vset.pattern.permute.xlu0 5
  %1320 = vperm.xlu0 %1319, %v1288
  %v1321 = vpop.permute.xlu0 %1320
  %v1323 = vmul.f32 %v642, %v1321
  %v1324 = vadd.f32 %v1318, %v1323
  %1325 = vset.pattern.permute.xlu0 6
  %1326 = vperm.xlu0 %1325, %v1288
  %v1327 = vpop.permute.xlu0 %1326
  %v1329 = vmul.f32 %v651, %v1327
  %v1330 = vadd.f32 %v1324, %v1329
  %1331 = vset.pattern.permute.xlu0 7
  %1332 = vperm.xlu0 %1331, %v1288
  %v1333 = vpop.permute.xlu0 %1332
  %v1335 = vmul.f32 %v660, %v1333
  %v1336 = vadd.f32 %v1330, %v1335
  %1337 = vset.pattern.permute.xlu0 8
  %1338 = vperm.xlu0 %1337, %v1288
  %v1339 = vpop.permute.xlu0 %1338
  %v1341 = vmul.f32 %v669, %v1339
  %v1342 = vadd.f32 %v1336, %v1341
  %s1343 = scalar_lea.vmem %s2, 64
  %v1344 = vld [vmem:[%s1343] sm:$0xff]
  %1346 = vset.pattern.permute.xlu0 0
  %1347 = vperm.xlu0 %1346, %v1344
  %v1348 = vpop.permute.xlu0 %1347
  %v1350 = vlaneseq
  %v1351 = vshrl.u32 %v1350, 7
  %v1352 = vsub.s32 0, %v1351
  %v1353 = vrot.slane %v1342, %v1352
  %v1354 = vmul.f32 %v1348, %v1353
  %1355 = vset.pattern.permute.xlu0 1
  %1356 = vperm.xlu0 %1355, %v1344
  %v1357 = vpop.permute.xlu0 %1356
  %v1359 = vlaneseq
  %v1360 = vshrl.u32 %v1359, 7
  %v1361 = vsub.s32 1, %v1360
  %v1362 = vrot.slane %v1342, %v1361
  %v1363 = vmul.f32 %v1357, %v1362
  %v1364 = vadd.f32 %v1354, %v1363
  %1365 = vset.pattern.permute.xlu0 2
  %1366 = vperm.xlu0 %1365, %v1344
  %v1367 = vpop.permute.xlu0 %1366
  %v1369 = vlaneseq
  %v1370 = vshrl.u32 %v1369, 7
  %v1371 = vsub.s32 2, %v1370
  %v1372 = vrot.slane %v1342, %v1371
  %v1373 = vmul.f32 %v1367, %v1372
  %v1374 = vadd.f32 %v1364, %v1373
  %1375 = vset.pattern.permute.xlu0 3
  %1376 = vperm.xlu0 %1375, %v1344
  %v1377 = vpop.permute.xlu0 %1376
  %v1379 = vlaneseq
  %v1380 = vshrl.u32 %v1379, 7
  %v1381 = vsub.s32 3, %v1380
  %v1382 = vrot.slane %v1342, %v1381
  %v1383 = vmul.f32 %v1377, %v1382
  %v1384 = vadd.f32 %v1374, %v1383
  %1385 = vset.pattern.permute.xlu0 4
  %1386 = vperm.xlu0 %1385, %v1344
  %v1387 = vpop.permute.xlu0 %1386
  %v1389 = vlaneseq
  %v1390 = vshrl.u32 %v1389, 7
  %v1391 = vsub.s32 4, %v1390
  %v1392 = vrot.slane %v1342, %v1391
  %v1393 = vmul.f32 %v1387, %v1392
  %v1394 = vadd.f32 %v1384, %v1393
  %1395 = vset.pattern.permute.xlu0 5
  %1396 = vperm.xlu0 %1395, %v1344
  %v1397 = vpop.permute.xlu0 %1396
  %v1399 = vlaneseq
  %v1400 = vshrl.u32 %v1399, 7
  %v1401 = vsub.s32 5, %v1400
  %v1402 = vrot.slane %v1342, %v1401
  %v1403 = vmul.f32 %v1397, %v1402
  %v1404 = vadd.f32 %v1394, %v1403
  %1405 = vset.pattern.permute.xlu0 6
  %1406 = vperm.xlu0 %1405, %v1344
  %v1407 = vpop.permute.xlu0 %1406
  %v1409 = vlaneseq
  %v1410 = vshrl.u32 %v1409, 7
  %v1411 = vsub.s32 6, %v1410
  %v1412 = vrot.slane %v1342, %v1411
  %v1413 = vmul.f32 %v1407, %v1412
  %v1414 = vadd.f32 %v1404, %v1413
  %1415 = vset.pattern.permute.xlu0 7
  %1416 = vperm.xlu0 %1415, %v1344
  %v1417 = vpop.permute.xlu0 %1416
  %v1419 = vlaneseq
  %v1420 = vshrl.u32 %v1419, 7
  %v1421 = vsub.s32 7, %v1420
  %v1422 = vrot.slane %v1342, %v1421
  %v1423 = vmul.f32 %v1417, %v1422
  %v1424 = vadd.f32 %v1414, %v1423
  %s1425 = scalar_lea.vmem %s3, 64
  %v1426 = vld [vmem:[%s1425] sm:$0xff]
  %1428 = vset.pattern.permute.xlu0 0
  %1429 = vperm.xlu0 %1428, %v1426
  %v1430 = vpop.permute.xlu0 %1429
  %v1432 = vmul.f32 %v1424, %v1430
  %s1433 = scalar_lea.vmem %s4, 64
  %v1434 = vld [vmem:[%s1433] sm:$0xff]
  %1436 = vset.pattern.permute.xlu0 0
  %1437 = vperm.xlu0 %1436, %v1434
  %v1438 = vpop.permute.xlu0 %1437
  %v1440 = vadd.f32 %v1432, %v1438
  %v1441 = vmax.f32 %v1440, 0.0
  %s1442 = scalar_lea.vmem %s5, 56
  %v1443 = vld [vmem:[%s1442] sm:$0xff]
  %1444 = vrot.lane.b32.xlu0 %v1441, 9
  %v1445 = vpop.permute.xlu0 %1444
  %v1446 = vmul.f32 %v1445, %v227
  %1448 = vset.pattern.permute.xlu0 0
  %1449 = vperm.xlu0 %1448, %v1443
  %v1450 = vpop.permute.xlu0 %1449
  %v1452 = vmul.f32 %v1446, %v1450
  %1453 = vrot.lane.b32.xlu0 %v1441, 8
  %v1454 = vpop.permute.xlu0 %1453
  %v1455 = vmul.f32 %v1454, %v238
  %1456 = vset.pattern.permute.xlu0 1
  %1457 = vperm.xlu0 %1456, %v1443
  %v1458 = vpop.permute.xlu0 %1457
  %v1460 = vmul.f32 %v1455, %v1458
  %v1461 = vadd.f32 %v1452, %v1460
  %1462 = vrot.lane.b32.xlu0 %v1441, 7
  %v1463 = vpop.permute.xlu0 %1462
  %v1464 = vmul.f32 %v1463, %v249
  %1465 = vset.pattern.permute.xlu0 2
  %1466 = vperm.xlu0 %1465, %v1443
  %v1467 = vpop.permute.xlu0 %1466
  %v1469 = vmul.f32 %v1464, %v1467
  %v1470 = vadd.f32 %v1461, %v1469
  %1471 = vrot.lane.b32.xlu0 %v1441, 1
  %v1472 = vpop.permute.xlu0 %1471
  %v1473 = vmul.f32 %v1472, %v260
  %1474 = vset.pattern.permute.xlu0 3
  %1475 = vperm.xlu0 %1474, %v1443
  %v1476 = vpop.permute.xlu0 %1475
  %v1478 = vmul.f32 %v1473, %v1476
  %v1479 = vadd.f32 %v1470, %v1478
  %1480 = vset.pattern.permute.xlu0 4
  %1481 = vperm.xlu0 %1480, %v1443
  %v1482 = vpop.permute.xlu0 %1481
  %v1484 = vmul.f32 %v1441, %v1482
  %v1485 = vadd.f32 %v1479, %v1484
  %1486 = vrot.lane.b32.xlu0 %v1441, 127
  %v1487 = vpop.permute.xlu0 %1486
  %v1488 = vmul.f32 %v1487, %v277
  %1489 = vset.pattern.permute.xlu0 5
  %1490 = vperm.xlu0 %1489, %v1443
  %v1491 = vpop.permute.xlu0 %1490
  %v1493 = vmul.f32 %v1488, %v1491
  %v1494 = vadd.f32 %v1485, %v1493
  %1495 = vrot.lane.b32.xlu0 %v1441, 121
  %v1496 = vpop.permute.xlu0 %1495
  %v1497 = vmul.f32 %v1496, %v288
  %1498 = vset.pattern.permute.xlu0 6
  %1499 = vperm.xlu0 %1498, %v1443
  %v1500 = vpop.permute.xlu0 %1499
  %v1502 = vmul.f32 %v1497, %v1500
  %v1503 = vadd.f32 %v1494, %v1502
  %1504 = vrot.lane.b32.xlu0 %v1441, 120
  %v1505 = vpop.permute.xlu0 %1504
  %v1506 = vmul.f32 %v1505, %v299
  %1507 = vset.pattern.permute.xlu0 7
  %1508 = vperm.xlu0 %1507, %v1443
  %v1509 = vpop.permute.xlu0 %1508
  %v1511 = vmul.f32 %v1506, %v1509
  %v1512 = vadd.f32 %v1503, %v1511
  %1513 = vrot.lane.b32.xlu0 %v1441, 119
  %v1514 = vpop.permute.xlu0 %1513
  %v1515 = vmul.f32 %v1514, %v310
  %1516 = vset.pattern.permute.xlu0 8
  %1517 = vperm.xlu0 %1516, %v1443
  %v1518 = vpop.permute.xlu0 %1517
  %v1520 = vmul.f32 %v1515, %v1518
  %v1521 = vadd.f32 %v1512, %v1520
  %s1522 = scalar_lea.vmem %s2, 72
  %v1523 = vld [vmem:[%s1522] sm:$0xff]
  %1525 = vset.pattern.permute.xlu0 0
  %1526 = vperm.xlu0 %1525, %v1523
  %v1527 = vpop.permute.xlu0 %1526
  %v1529 = vlaneseq
  %v1530 = vshrl.u32 %v1529, 7
  %v1531 = vsub.s32 0, %v1530
  %v1532 = vrot.slane %v1521, %v1531
  %v1533 = vmul.f32 %v1527, %v1532
  %1534 = vset.pattern.permute.xlu0 1
  %1535 = vperm.xlu0 %1534, %v1523
  %v1536 = vpop.permute.xlu0 %1535
  %v1538 = vlaneseq
  %v1539 = vshrl.u32 %v1538, 7
  %v1540 = vsub.s32 1, %v1539
  %v1541 = vrot.slane %v1521, %v1540
  %v1542 = vmul.f32 %v1536, %v1541
  %v1543 = vadd.f32 %v1533, %v1542
  %1544 = vset.pattern.permute.xlu0 2
  %1545 = vperm.xlu0 %1544, %v1523
  %v1546 = vpop.permute.xlu0 %1545
  %v1548 = vlaneseq
  %v1549 = vshrl.u32 %v1548, 7
  %v1550 = vsub.s32 2, %v1549
  %v1551 = vrot.slane %v1521, %v1550
  %v1552 = vmul.f32 %v1546, %v1551
  %v1553 = vadd.f32 %v1543, %v1552
  %1554 = vset.pattern.permute.xlu0 3
  %1555 = vperm.xlu0 %1554, %v1523
  %v1556 = vpop.permute.xlu0 %1555
  %v1558 = vlaneseq
  %v1559 = vshrl.u32 %v1558, 7
  %v1560 = vsub.s32 3, %v1559
  %v1561 = vrot.slane %v1521, %v1560
  %v1562 = vmul.f32 %v1556, %v1561
  %v1563 = vadd.f32 %v1553, %v1562
  %1564 = vset.pattern.permute.xlu0 4
  %1565 = vperm.xlu0 %1564, %v1523
  %v1566 = vpop.permute.xlu0 %1565
  %v1568 = vlaneseq
  %v1569 = vshrl.u32 %v1568, 7
  %v1570 = vsub.s32 4, %v1569
  %v1571 = vrot.slane %v1521, %v1570
  %v1572 = vmul.f32 %v1566, %v1571
  %v1573 = vadd.f32 %v1563, %v1572
  %1574 = vset.pattern.permute.xlu0 5
  %1575 = vperm.xlu0 %1574, %v1523
  %v1576 = vpop.permute.xlu0 %1575
  %v1578 = vlaneseq
  %v1579 = vshrl.u32 %v1578, 7
  %v1580 = vsub.s32 5, %v1579
  %v1581 = vrot.slane %v1521, %v1580
  %v1582 = vmul.f32 %v1576, %v1581
  %v1583 = vadd.f32 %v1573, %v1582
  %1584 = vset.pattern.permute.xlu0 6
  %1585 = vperm.xlu0 %1584, %v1523
  %v1586 = vpop.permute.xlu0 %1585
  %v1588 = vlaneseq
  %v1589 = vshrl.u32 %v1588, 7
  %v1590 = vsub.s32 6, %v1589
  %v1591 = vrot.slane %v1521, %v1590
  %v1592 = vmul.f32 %v1586, %v1591
  %v1593 = vadd.f32 %v1583, %v1592
  %1594 = vset.pattern.permute.xlu0 7
  %1595 = vperm.xlu0 %1594, %v1523
  %v1596 = vpop.permute.xlu0 %1595
  %v1598 = vlaneseq
  %v1599 = vshrl.u32 %v1598, 7
  %v1600 = vsub.s32 7, %v1599
  %v1601 = vrot.slane %v1521, %v1600
  %v1602 = vmul.f32 %v1596, %v1601
  %v1603 = vadd.f32 %v1593, %v1602
  %s1604 = scalar_lea.vmem %s3, 72
  %v1605 = vld [vmem:[%s1604] sm:$0xff]
  %1607 = vset.pattern.permute.xlu0 0
  %1608 = vperm.xlu0 %1607, %v1605
  %v1609 = vpop.permute.xlu0 %1608
  %v1611 = vmul.f32 %v1603, %v1609
  %s1612 = scalar_lea.vmem %s4, 72
  %v1613 = vld [vmem:[%s1612] sm:$0xff]
  %1615 = vset.pattern.permute.xlu0 0
  %1616 = vperm.xlu0 %1615, %v1613
  %v1617 = vpop.permute.xlu0 %1616
  %v1619 = vadd.f32 %v1611, %v1617
  %v1620 = vadd.f32 %v1286, %v1619
  %s1621 = scalar_lea.vmem %s5, 64
  %v1622 = vld [vmem:[%s1621] sm:$0xff]
  %1624 = vset.pattern.permute.xlu0 0
  %1625 = vperm.xlu0 %1624, %v1622
  %v1626 = vpop.permute.xlu0 %1625
  %v1628 = vmul.f32 %v600, %v1626
  %1629 = vset.pattern.permute.xlu0 1
  %1630 = vperm.xlu0 %1629, %v1622
  %v1631 = vpop.permute.xlu0 %1630
  %v1633 = vmul.f32 %v609, %v1631
  %v1634 = vadd.f32 %v1628, %v1633
  %1635 = vset.pattern.permute.xlu0 2
  %1636 = vperm.xlu0 %1635, %v1622
  %v1637 = vpop.permute.xlu0 %1636
  %v1639 = vmul.f32 %v618, %v1637
  %v1640 = vadd.f32 %v1634, %v1639
  %1641 = vset.pattern.permute.xlu0 3
  %1642 = vperm.xlu0 %1641, %v1622
  %v1643 = vpop.permute.xlu0 %1642
  %v1645 = vmul.f32 %v627, %v1643
  %v1646 = vadd.f32 %v1640, %v1645
  %1647 = vset.pattern.permute.xlu0 4
  %1648 = vperm.xlu0 %1647, %v1622
  %v1649 = vpop.permute.xlu0 %1648
  %v1651 = vmul.f32 %v595, %v1649
  %v1652 = vadd.f32 %v1646, %v1651
  %1653 = vset.pattern.permute.xlu0 5
  %1654 = vperm.xlu0 %1653, %v1622
  %v1655 = vpop.permute.xlu0 %1654
  %v1657 = vmul.f32 %v642, %v1655
  %v1658 = vadd.f32 %v1652, %v1657
  %1659 = vset.pattern.permute.xlu0 6
  %1660 = vperm.xlu0 %1659, %v1622
  %v1661 = vpop.permute.xlu0 %1660
  %v1663 = vmul.f32 %v651, %v1661
  %v1664 = vadd.f32 %v1658, %v1663
  %1665 = vset.pattern.permute.xlu0 7
  %1666 = vperm.xlu0 %1665, %v1622
  %v1667 = vpop.permute.xlu0 %1666
  %v1669 = vmul.f32 %v660, %v1667
  %v1670 = vadd.f32 %v1664, %v1669
  %1671 = vset.pattern.permute.xlu0 8
  %1672 = vperm.xlu0 %1671, %v1622
  %v1673 = vpop.permute.xlu0 %1672
  %v1675 = vmul.f32 %v669, %v1673
  %v1676 = vadd.f32 %v1670, %v1675
  %s1677 = scalar_lea.vmem %s2, 80
  %v1678 = vld [vmem:[%s1677] sm:$0xff]
  %1680 = vset.pattern.permute.xlu0 0
  %1681 = vperm.xlu0 %1680, %v1678
  %v1682 = vpop.permute.xlu0 %1681
  %v1684 = vlaneseq
  %v1685 = vshrl.u32 %v1684, 7
  %v1686 = vsub.s32 0, %v1685
  %v1687 = vrot.slane %v1676, %v1686
  %v1688 = vmul.f32 %v1682, %v1687
  %1689 = vset.pattern.permute.xlu0 1
  %1690 = vperm.xlu0 %1689, %v1678
  %v1691 = vpop.permute.xlu0 %1690
  %v1693 = vlaneseq
  %v1694 = vshrl.u32 %v1693, 7
  %v1695 = vsub.s32 1, %v1694
  %v1696 = vrot.slane %v1676, %v1695
  %v1697 = vmul.f32 %v1691, %v1696
  %v1698 = vadd.f32 %v1688, %v1697
  %1699 = vset.pattern.permute.xlu0 2
  %1700 = vperm.xlu0 %1699, %v1678
  %v1701 = vpop.permute.xlu0 %1700
  %v1703 = vlaneseq
  %v1704 = vshrl.u32 %v1703, 7
  %v1705 = vsub.s32 2, %v1704
  %v1706 = vrot.slane %v1676, %v1705
  %v1707 = vmul.f32 %v1701, %v1706
  %v1708 = vadd.f32 %v1698, %v1707
  %1709 = vset.pattern.permute.xlu0 3
  %1710 = vperm.xlu0 %1709, %v1678
  %v1711 = vpop.permute.xlu0 %1710
  %v1713 = vlaneseq
  %v1714 = vshrl.u32 %v1713, 7
  %v1715 = vsub.s32 3, %v1714
  %v1716 = vrot.slane %v1676, %v1715
  %v1717 = vmul.f32 %v1711, %v1716
  %v1718 = vadd.f32 %v1708, %v1717
  %1719 = vset.pattern.permute.xlu0 4
  %1720 = vperm.xlu0 %1719, %v1678
  %v1721 = vpop.permute.xlu0 %1720
  %v1723 = vlaneseq
  %v1724 = vshrl.u32 %v1723, 7
  %v1725 = vsub.s32 4, %v1724
  %v1726 = vrot.slane %v1676, %v1725
  %v1727 = vmul.f32 %v1721, %v1726
  %v1728 = vadd.f32 %v1718, %v1727
  %1729 = vset.pattern.permute.xlu0 5
  %1730 = vperm.xlu0 %1729, %v1678
  %v1731 = vpop.permute.xlu0 %1730
  %v1733 = vlaneseq
  %v1734 = vshrl.u32 %v1733, 7
  %v1735 = vsub.s32 5, %v1734
  %v1736 = vrot.slane %v1676, %v1735
  %v1737 = vmul.f32 %v1731, %v1736
  %v1738 = vadd.f32 %v1728, %v1737
  %1739 = vset.pattern.permute.xlu0 6
  %1740 = vperm.xlu0 %1739, %v1678
  %v1741 = vpop.permute.xlu0 %1740
  %v1743 = vlaneseq
  %v1744 = vshrl.u32 %v1743, 7
  %v1745 = vsub.s32 6, %v1744
  %v1746 = vrot.slane %v1676, %v1745
  %v1747 = vmul.f32 %v1741, %v1746
  %v1748 = vadd.f32 %v1738, %v1747
  %1749 = vset.pattern.permute.xlu0 7
  %1750 = vperm.xlu0 %1749, %v1678
  %v1751 = vpop.permute.xlu0 %1750
  %v1753 = vlaneseq
  %v1754 = vshrl.u32 %v1753, 7
  %v1755 = vsub.s32 7, %v1754
  %v1756 = vrot.slane %v1676, %v1755
  %v1757 = vmul.f32 %v1751, %v1756
  %v1758 = vadd.f32 %v1748, %v1757
  %s1759 = scalar_lea.vmem %s3, 80
  %v1760 = vld [vmem:[%s1759] sm:$0xff]
  %1762 = vset.pattern.permute.xlu0 0
  %1763 = vperm.xlu0 %1762, %v1760
  %v1764 = vpop.permute.xlu0 %1763
  %v1766 = vmul.f32 %v1758, %v1764
  %s1767 = scalar_lea.vmem %s4, 80
  %v1768 = vld [vmem:[%s1767] sm:$0xff]
  %1770 = vset.pattern.permute.xlu0 0
  %1771 = vperm.xlu0 %1770, %v1768
  %v1772 = vpop.permute.xlu0 %1771
  %v1774 = vadd.f32 %v1766, %v1772
  %v1775 = vmax.f32 %v1774, 0.0
  %s1776 = scalar_lea.vmem %s5, 72
  %v1777 = vld [vmem:[%s1776] sm:$0xff]
  %1778 = vrot.lane.b32.xlu0 %v1775, 9
  %v1779 = vpop.permute.xlu0 %1778
  %v1780 = vmul.f32 %v1779, %v227
  %1782 = vset.pattern.permute.xlu0 0
  %1783 = vperm.xlu0 %1782, %v1777
  %v1784 = vpop.permute.xlu0 %1783
  %v1786 = vmul.f32 %v1780, %v1784
  %1787 = vrot.lane.b32.xlu0 %v1775, 8
  %v1788 = vpop.permute.xlu0 %1787
  %v1789 = vmul.f32 %v1788, %v238
  %1790 = vset.pattern.permute.xlu0 1
  %1791 = vperm.xlu0 %1790, %v1777
  %v1792 = vpop.permute.xlu0 %1791
  %v1794 = vmul.f32 %v1789, %v1792
  %v1795 = vadd.f32 %v1786, %v1794
  %1796 = vrot.lane.b32.xlu0 %v1775, 7
  %v1797 = vpop.permute.xlu0 %1796
  %v1798 = vmul.f32 %v1797, %v249
  %1799 = vset.pattern.permute.xlu0 2
  %1800 = vperm.xlu0 %1799, %v1777
  %v1801 = vpop.permute.xlu0 %1800
  %v1803 = vmul.f32 %v1798, %v1801
  %v1804 = vadd.f32 %v1795, %v1803
  %1805 = vrot.lane.b32.xlu0 %v1775, 1
  %v1806 = vpop.permute.xlu0 %1805
  %v1807 = vmul.f32 %v1806, %v260
  %1808 = vset.pattern.permute.xlu0 3
  %1809 = vperm.xlu0 %1808, %v1777
  %v1810 = vpop.permute.xlu0 %1809
  %v1812 = vmul.f32 %v1807, %v1810
  %v1813 = vadd.f32 %v1804, %v1812
  %1814 = vset.pattern.permute.xlu0 4
  %1815 = vperm.xlu0 %1814, %v1777
  %v1816 = vpop.permute.xlu0 %1815
  %v1818 = vmul.f32 %v1775, %v1816
  %v1819 = vadd.f32 %v1813, %v1818
  %1820 = vrot.lane.b32.xlu0 %v1775, 127
  %v1821 = vpop.permute.xlu0 %1820
  %v1822 = vmul.f32 %v1821, %v277
  %1823 = vset.pattern.permute.xlu0 5
  %1824 = vperm.xlu0 %1823, %v1777
  %v1825 = vpop.permute.xlu0 %1824
  %v1827 = vmul.f32 %v1822, %v1825
  %v1828 = vadd.f32 %v1819, %v1827
  %1829 = vrot.lane.b32.xlu0 %v1775, 121
  %v1830 = vpop.permute.xlu0 %1829
  %v1831 = vmul.f32 %v1830, %v288
  %1832 = vset.pattern.permute.xlu0 6
  %1833 = vperm.xlu0 %1832, %v1777
  %v1834 = vpop.permute.xlu0 %1833
  %v1836 = vmul.f32 %v1831, %v1834
  %v1837 = vadd.f32 %v1828, %v1836
  %1838 = vrot.lane.b32.xlu0 %v1775, 120
  %v1839 = vpop.permute.xlu0 %1838
  %v1840 = vmul.f32 %v1839, %v299
  %1841 = vset.pattern.permute.xlu0 7
  %1842 = vperm.xlu0 %1841, %v1777
  %v1843 = vpop.permute.xlu0 %1842
  %v1845 = vmul.f32 %v1840, %v1843
  %v1846 = vadd.f32 %v1837, %v1845
  %1847 = vrot.lane.b32.xlu0 %v1775, 119
  %v1848 = vpop.permute.xlu0 %1847
  %v1849 = vmul.f32 %v1848, %v310
  %1850 = vset.pattern.permute.xlu0 8
  %1851 = vperm.xlu0 %1850, %v1777
  %v1852 = vpop.permute.xlu0 %1851
  %v1854 = vmul.f32 %v1849, %v1852
  %v1855 = vadd.f32 %v1846, %v1854
  %s1856 = scalar_lea.vmem %s2, 88
  %v1857 = vld [vmem:[%s1856] sm:$0xff]
  %1859 = vset.pattern.permute.xlu0 0
  %1860 = vperm.xlu0 %1859, %v1857
  %v1861 = vpop.permute.xlu0 %1860
  %v1863 = vlaneseq
  %v1864 = vshrl.u32 %v1863, 7
  %v1865 = vsub.s32 0, %v1864
  %v1866 = vrot.slane %v1855, %v1865
  %v1867 = vmul.f32 %v1861, %v1866
  %1868 = vset.pattern.permute.xlu0 1
  %1869 = vperm.xlu0 %1868, %v1857
  %v1870 = vpop.permute.xlu0 %1869
  %v1872 = vlaneseq
  %v1873 = vshrl.u32 %v1872, 7
  %v1874 = vsub.s32 1, %v1873
  %v1875 = vrot.slane %v1855, %v1874
  %v1876 = vmul.f32 %v1870, %v1875
  %v1877 = vadd.f32 %v1867, %v1876
  %1878 = vset.pattern.permute.xlu0 2
  %1879 = vperm.xlu0 %1878, %v1857
  %v1880 = vpop.permute.xlu0 %1879
  %v1882 = vlaneseq
  %v1883 = vshrl.u32 %v1882, 7
  %v1884 = vsub.s32 2, %v1883
  %v1885 = vrot.slane %v1855, %v1884
  %v1886 = vmul.f32 %v1880, %v1885
  %v1887 = vadd.f32 %v1877, %v1886
  %1888 = vset.pattern.permute.xlu0 3
  %1889 = vperm.xlu0 %1888, %v1857
  %v1890 = vpop.permute.xlu0 %1889
  %v1892 = vlaneseq
  %v1893 = vshrl.u32 %v1892, 7
  %v1894 = vsub.s32 3, %v1893
  %v1895 = vrot.slane %v1855, %v1894
  %v1896 = vmul.f32 %v1890, %v1895
  %v1897 = vadd.f32 %v1887, %v1896
  %1898 = vset.pattern.permute.xlu0 4
  %1899 = vperm.xlu0 %1898, %v1857
  %v1900 = vpop.permute.xlu0 %1899
  %v1902 = vlaneseq
  %v1903 = vshrl.u32 %v1902, 7
  %v1904 = vsub.s32 4, %v1903
  %v1905 = vrot.slane %v1855, %v1904
  %v1906 = vmul.f32 %v1900, %v1905
  %v1907 = vadd.f32 %v1897, %v1906
  %1908 = vset.pattern.permute.xlu0 5
  %1909 = vperm.xlu0 %1908, %v1857
  %v1910 = vpop.permute.xlu0 %1909
  %v1912 = vlaneseq
  %v1913 = vshrl.u32 %v1912, 7
  %v1914 = vsub.s32 5, %v1913
  %v1915 = vrot.slane %v1855, %v1914
  %v1916 = vmul.f32 %v1910, %v1915
  %v1917 = vadd.f32 %v1907, %v1916
  %1918 = vset.pattern.permute.xlu0 6
  %1919 = vperm.xlu0 %1918, %v1857
  %v1920 = vpop.permute.xlu0 %1919
  %v1922 = vlaneseq
  %v1923 = vshrl.u32 %v1922, 7
  %v1924 = vsub.s32 6, %v1923
  %v1925 = vrot.slane %v1855, %v1924
  %v1926 = vmul.f32 %v1920, %v1925
  %v1927 = vadd.f32 %v1917, %v1926
  %1928 = vset.pattern.permute.xlu0 7
  %1929 = vperm.xlu0 %1928, %v1857
  %v1930 = vpop.permute.xlu0 %1929
  %v1932 = vlaneseq
  %v1933 = vshrl.u32 %v1932, 7
  %v1934 = vsub.s32 7, %v1933
  %v1935 = vrot.slane %v1855, %v1934
  %v1936 = vmul.f32 %v1930, %v1935
  %v1937 = vadd.f32 %v1927, %v1936
  %s1938 = scalar_lea.vmem %s3, 88
  %v1939 = vld [vmem:[%s1938] sm:$0xff]
  %1941 = vset.pattern.permute.xlu0 0
  %1942 = vperm.xlu0 %1941, %v1939
  %v1943 = vpop.permute.xlu0 %1942
  %v1945 = vmul.f32 %v1937, %v1943
  %s1946 = scalar_lea.vmem %s4, 88
  %v1947 = vld [vmem:[%s1946] sm:$0xff]
  %1949 = vset.pattern.permute.xlu0 0
  %1950 = vperm.xlu0 %1949, %v1947
  %v1951 = vpop.permute.xlu0 %1950
  %v1953 = vadd.f32 %v1945, %v1951
  %v1954 = vadd.f32 %v1953, %v122
  %v1955 = vmax.f32 %v953, 0.0
  %s1956 = scalar_lea.vmem %s5, 80
  %v1957 = vld [vmem:[%s1956] sm:$0xff]
  %1958 = vrot.lane.b32.xlu0 %v1955, 18
  %v1959 = vpop.permute.xlu0 %1958
  %s1960 = scalar_lea.vmem %s6, 72
  %v1961 = vld [vmem:[%s1960] sm:$0xff]
  %v1962 = vmul.f32 %v1959, %v1961
  %1964 = vset.pattern.permute.xlu0 0
  %1965 = vperm.xlu0 %1964, %v1957
  %v1966 = vpop.permute.xlu0 %1965
  %v1968 = vmul.f32 %v1962, %v1966
  %1969 = vrot.lane.b32.xlu0 %v1955, 16
  %v1970 = vpop.permute.xlu0 %1969
  %s1971 = scalar_lea.vmem %s6, 80
  %v1972 = vld [vmem:[%s1971] sm:$0xff]
  %v1973 = vmul.f32 %v1970, %v1972
  %1974 = vset.pattern.permute.xlu0 1
  %1975 = vperm.xlu0 %1974, %v1957
  %v1976 = vpop.permute.xlu0 %1975
  %v1978 = vmul.f32 %v1973, %v1976
  %v1979 = vadd.f32 %v1968, %v1978
  %1980 = vrot.lane.b32.xlu0 %v1955, 14
  %v1981 = vpop.permute.xlu0 %1980
  %s1982 = scalar_lea.vmem %s6, 88
  %v1983 = vld [vmem:[%s1982] sm:$0xff]
  %v1984 = vmul.f32 %v1981, %v1983
  %1985 = vset.pattern.permute.xlu0 2
  %1986 = vperm.xlu0 %1985, %v1957
  %v1987 = vpop.permute.xlu0 %1986
  %v1989 = vmul.f32 %v1984, %v1987
  %v1990 = vadd.f32 %v1979, %v1989
  %1991 = vrot.lane.b32.xlu0 %v1955, 2
  %v1992 = vpop.permute.xlu0 %1991
  %s1993 = scalar_lea.vmem %s6, 96
  %v1994 = vld [vmem:[%s1993] sm:$0xff]
  %v1995 = vmul.f32 %v1992, %v1994
  %1996 = vset.pattern.permute.xlu0 3
  %1997 = vperm.xlu0 %1996, %v1957
  %v1998 = vpop.permute.xlu0 %1997
  %v2000 = vmul.f32 %v1995, %v1998
  %v2001 = vadd.f32 %v1990, %v2000
  %2002 = vset.pattern.permute.xlu0 4
  %2003 = vperm.xlu0 %2002, %v1957
  %v2004 = vpop.permute.xlu0 %2003
  %v2006 = vmul.f32 %v1955, %v2004
  %v2007 = vadd.f32 %v2001, %v2006
  %2008 = vrot.lane.b32.xlu0 %v1955, 126
  %v2009 = vpop.permute.xlu0 %2008
  %s2010 = scalar_lea.vmem %s6, 112
  %v2011 = vld [vmem:[%s2010] sm:$0xff]
  %v2012 = vmul.f32 %v2009, %v2011
  %2013 = vset.pattern.permute.xlu0 5
  %2014 = vperm.xlu0 %2013, %v1957
  %v2015 = vpop.permute.xlu0 %2014
  %v2017 = vmul.f32 %v2012, %v2015
  %v2018 = vadd.f32 %v2007, %v2017
  %2019 = vrot.lane.b32.xlu0 %v1955, 114
  %v2020 = vpop.permute.xlu0 %2019
  %s2021 = scalar_lea.vmem %s6, 120
  %v2022 = vld [vmem:[%s2021] sm:$0xff]
  %v2023 = vmul.f32 %v2020, %v2022
  %2024 = vset.pattern.permute.xlu0 6
  %2025 = vperm.xlu0 %2024, %v1957
  %v2026 = vpop.permute.xlu0 %2025
  %v2028 = vmul.f32 %v2023, %v2026
  %v2029 = vadd.f32 %v2018, %v2028
  %2030 = vrot.lane.b32.xlu0 %v1955, 112
  %v2031 = vpop.permute.xlu0 %2030
  %s2032 = scalar_lea.vmem %s6, 128
  %v2033 = vld [vmem:[%s2032] sm:$0xff]
  %v2034 = vmul.f32 %v2031, %v2033
  %2035 = vset.pattern.permute.xlu0 7
  %2036 = vperm.xlu0 %2035, %v1957
  %v2037 = vpop.permute.xlu0 %2036
  %v2039 = vmul.f32 %v2034, %v2037
  %v2040 = vadd.f32 %v2029, %v2039
  %2041 = vrot.lane.b32.xlu0 %v1955, 110
  %v2042 = vpop.permute.xlu0 %2041
  %s2043 = scalar_lea.vmem %s6, 136
  %v2044 = vld [vmem:[%s2043] sm:$0xff]
  %v2045 = vmul.f32 %v2042, %v2044
  %2046 = vset.pattern.permute.xlu0 8
  %2047 = vperm.xlu0 %2046, %v1957
  %v2048 = vpop.permute.xlu0 %2047
  %v2050 = vmul.f32 %v2045, %v2048
  %v2051 = vadd.f32 %v2040, %v2050
  %s2052 = scalar_lea.vmem %s2, 96
  %v2053 = vld [vmem:[%s2052] sm:$0xff]
  %2055 = vset.pattern.permute.xlu0 0
  %2056 = vperm.xlu0 %2055, %v2053
  %v2057 = vpop.permute.xlu0 %2056
  %v2059 = vlaneseq
  %v2060 = vshrl.u32 %v2059, 7
  %v2061 = vsub.s32 0, %v2060
  %v2062 = vrot.slane %v2051, %v2061
  %v2063 = vmul.f32 %v2057, %v2062
  %2064 = vset.pattern.permute.xlu0 1
  %2065 = vperm.xlu0 %2064, %v2053
  %v2066 = vpop.permute.xlu0 %2065
  %v2068 = vlaneseq
  %v2069 = vshrl.u32 %v2068, 7
  %v2070 = vsub.s32 1, %v2069
  %v2071 = vrot.slane %v2051, %v2070
  %v2072 = vmul.f32 %v2066, %v2071
  %v2073 = vadd.f32 %v2063, %v2072
  %2074 = vset.pattern.permute.xlu0 2
  %2075 = vperm.xlu0 %2074, %v2053
  %v2076 = vpop.permute.xlu0 %2075
  %v2078 = vlaneseq
  %v2079 = vshrl.u32 %v2078, 7
  %v2080 = vsub.s32 2, %v2079
  %v2081 = vrot.slane %v2051, %v2080
  %v2082 = vmul.f32 %v2076, %v2081
  %v2083 = vadd.f32 %v2073, %v2082
  %2084 = vset.pattern.permute.xlu0 3
  %2085 = vperm.xlu0 %2084, %v2053
  %v2086 = vpop.permute.xlu0 %2085
  %v2088 = vlaneseq
  %v2089 = vshrl.u32 %v2088, 7
  %v2090 = vsub.s32 3, %v2089
  %v2091 = vrot.slane %v2051, %v2090
  %v2092 = vmul.f32 %v2086, %v2091
  %v2093 = vadd.f32 %v2083, %v2092
  %2094 = vset.pattern.permute.xlu0 4
  %2095 = vperm.xlu0 %2094, %v2053
  %v2096 = vpop.permute.xlu0 %2095
  %v2098 = vlaneseq
  %v2099 = vshrl.u32 %v2098, 7
  %v2100 = vsub.s32 4, %v2099
  %v2101 = vrot.slane %v2051, %v2100
  %v2102 = vmul.f32 %v2096, %v2101
  %v2103 = vadd.f32 %v2093, %v2102
  %2104 = vset.pattern.permute.xlu0 5
  %2105 = vperm.xlu0 %2104, %v2053
  %v2106 = vpop.permute.xlu0 %2105
  %v2108 = vlaneseq
  %v2109 = vshrl.u32 %v2108, 7
  %v2110 = vsub.s32 5, %v2109
  %v2111 = vrot.slane %v2051, %v2110
  %v2112 = vmul.f32 %v2106, %v2111
  %v2113 = vadd.f32 %v2103, %v2112
  %2114 = vset.pattern.permute.xlu0 6
  %2115 = vperm.xlu0 %2114, %v2053
  %v2116 = vpop.permute.xlu0 %2115
  %v2118 = vlaneseq
  %v2119 = vshrl.u32 %v2118, 7
  %v2120 = vsub.s32 6, %v2119
  %v2121 = vrot.slane %v2051, %v2120
  %v2122 = vmul.f32 %v2116, %v2121
  %v2123 = vadd.f32 %v2113, %v2122
  %2124 = vset.pattern.permute.xlu0 7
  %2125 = vperm.xlu0 %2124, %v2053
  %v2126 = vpop.permute.xlu0 %2125
  %v2128 = vlaneseq
  %v2129 = vshrl.u32 %v2128, 7
  %v2130 = vsub.s32 7, %v2129
  %v2131 = vrot.slane %v2051, %v2130
  %v2132 = vmul.f32 %v2126, %v2131
  %v2133 = vadd.f32 %v2123, %v2132
  %s2134 = scalar_lea.vmem %s3, 96
  %v2135 = vld [vmem:[%s2134] sm:$0xff]
  %2137 = vset.pattern.permute.xlu0 0
  %2138 = vperm.xlu0 %2137, %v2135
  %v2139 = vpop.permute.xlu0 %2138
  %v2141 = vmul.f32 %v2133, %v2139
  %s2142 = scalar_lea.vmem %s4, 96
  %v2143 = vld [vmem:[%s2142] sm:$0xff]
  %2145 = vset.pattern.permute.xlu0 0
  %2146 = vperm.xlu0 %2145, %v2143
  %v2147 = vpop.permute.xlu0 %2146
  %v2149 = vadd.f32 %v2141, %v2147
  %v2150 = vadd.f32 %v122, %v2149
  %2151 = vst [vmem:[%s7] sm:$0xff] %v953
  %2152 = vst [vmem:[%s7 + $0x8] sm:$0xff] %v1620
  %2153 = vst [vmem:[%s7 + $0x10] sm:$0xff] %v1954
  %2154 = vst [vmem:[%s7 + $0x18] sm:$0xff] %v2150
  // Predicated region
  $region30: #{cell_forward_pallas.1} parent=0 // pred_check
    _
  $region31: #{cell_forward_pallas.1} parent=0 // pred_check_branch
    %2156 = sbr.rel (0) target = $region33
  $region32: #{cell_forward_pallas.1} parent=0 // pred_region
    _
  $region33: #{cell_forward_pallas.1} parent=0 // pred_fallthru
    _
  // Predicated region
  $region34: #{cell_forward_pallas.1} parent=0 // pred_check
    _
  $region35: #{cell_forward_pallas.1} parent=0 // pred_check_branch
    %2158 = sbr.rel (0) target = $region37
  $region36: #{cell_forward_pallas.1} parent=0 // pred_region
    _
  $region37: #{cell_forward_pallas.1} parent=0 // pred_fallthru
    _

</llo_original>
